<compile_context>
chip_gen: v7x
topology: tpu7x:2x2x1
jax: 0.10.0
libtpu: 0.0.40
codegen_flags: <defaults>
</compile_context>

<pallas_src>
import functools

import jax
import jax.numpy as jnp
import numpy as np
from jax import lax
from jax.experimental import pallas as pl
from jax.experimental.pallas import tpu as pltpu


# ----------------------------------------------------------------------------
# Fused Pallas kernel
# ----------------------------------------------------------------------------
def double_conv_kernel(x_ref, t1_ref, g1_ref, b1_ref, f1_ref, f1t_ref,
                       t2_ref, g2_ref, b2_ref, f2_ref, f2t_ref,
                       o_ref, *, k_size, pad):
    """conv1 -> BN1 -> ReLU -> conv2 -> BN2 -> ReLU, fully on-chip.

    x_ref : (N, H+2p, W*Cin)        H-padded input, (w, c) flattened on lanes
    t1_ref: (KH, W*Cin,   Wo1*Cmid) per-tap block-Toeplitz weight of conv1
    t2_ref: (KH, Wo1*Cmid, Wo2*Cout) per-tap block-Toeplitz weight of conv2
    g*/b* : (1, C)                  BN affine params
    f*    : (Wo*C, C)  0/1 fold matrix (sum over the Wo lane groups)
    f*t   : (C, Wo*C)  its transpose (per-channel -> per-lane broadcast)
    o_ref : (N, Ho2, Wo2*Cout)      per-image aligned output slabs
    """
    f32 = jnp.float32
    n = x_ref.shape[0]
    c_mid = g1_ref.shape[1]
    c_out = g2_ref.shape[1]
    q1 = t1_ref.shape[2]
    q2 = t2_ref.shape[2]
    ho1 = x_ref.shape[1] - k_size + 1          # input already H-padded
    wo1 = q1 // c_mid
    ho2 = ho1 + 2 * pad - k_size + 1
    wo2 = q2 // c_out

    def conv_bn_relu(get_slab, t_ref, gamma, beta, f_ref, ft_ref, ho, wo, c):
        # KH-accumulation conv (no im2row), train-mode BN with the channel
        # fold/broadcast done on the MXU, then ReLU.
        ys = []
        s = jnp.zeros((1, wo * c), f32)
        ss = jnp.zeros((1, wo * c), f32)
        for img in range(n):
            acc = jnp.zeros((ho, wo * c), f32)
            for kh in range(k_size):
                acc = acc + jnp.dot(get_slab(img, kh, ho), t_ref[kh],
                                    preferred_element_type=f32)
            ys.append(acc)
            s = s + jnp.sum(acc, axis=0, keepdims=True)
            ss = ss + jnp.sum(acc * acc, axis=0, keepdims=True)
        inv_cnt = 1.0 / float(n * ho * wo)
        s_c = jnp.dot(s, f_ref[...], preferred_element_type=f32)    # (1, c)
        ss_c = jnp.dot(ss, f_ref[...], preferred_element_type=f32)  # (1, c)
        mean = s_c * inv_cnt
        var = jnp.maximum(ss_c * inv_cnt - mean * mean, 0.0)  # clamp 1-pass var
        inv = lax.rsqrt(var + 1e-5)                            # EUP
        scale = inv * gamma                                    # (1, c)
        shift = beta - mean * scale
        scale_b = jnp.dot(scale, ft_ref[...], preferred_element_type=f32)
        shift_b = jnp.dot(shift, ft_ref[...], preferred_element_type=f32)
        return [jnp.maximum(y * scale_b + shift_b, 0.0) for y in ys]

    # ---- stage 1: conv1 + BN1 + ReLU (input already H-padded by wrapper) ----
    a1 = conv_bn_relu(
        lambda img, kh, ho: x_ref[img, kh:kh + ho, :].astype(f32),
        t1_ref, g1_ref[...], b1_ref[...], f1_ref, f1t_ref, ho1, wo1, c_mid)

    # H-pad the stage-1 activations in registers (one sublane concat / image).
    zrow = jnp.zeros((pad, q1), f32)
    a1p = [jnp.concatenate([zrow, a, zrow], axis=0) for a in a1]

    # ---- stage 2: conv2 + BN2 + ReLU, fed straight from registers ----------
    a2 = conv_bn_relu(
        lambda img, kh, ho: a1p[img][kh:kh + ho, :],
        t2_ref, g2_ref[...], b2_ref[...], f2_ref, f2t_ref, ho2, wo2, c_out)

    for img in range(n):
        o_ref[img] = a2[img].astype(o_ref.dtype)


# ----------------------------------------------------------------------------
# Wrapper: per-tap block-Toeplitz weights, BN fold matrices, pallas_call
# ----------------------------------------------------------------------------
def _toeplitz_slabs(w_hwio, w_in, pad):
    """Fold the KW taps and W zero-padding into per-kh weight slabs.

    Returns T of shape (KH, w_in*Cin, Wo*Cout) with
        T[kh, (w, ci), (wo, co)] = w_hwio[kh, w - wo + pad, ci, co]
    (zero where the tap index falls outside [0, KW)).  The conv becomes
        out[ho, (wo,co)] = sum_kh  x_Hpad[ho+kh, :, :] @ T[kh].
    """
    kh_size, kw_size, cin, cout = w_hwio.shape
    wo = w_in + 2 * pad - kw_size + 1
    w_idx = jnp.arange(w_in)[:, None]                  # (w_in, 1)
    wo_idx = jnp.arange(wo)[None, :]                   # (1, wo)
    kw = w_idx - wo_idx + pad                          # (w_in, wo)
    valid = (kw >= 0) & (kw < kw_size)
    kw_c = jnp.clip(kw, 0, kw_size - 1)
    g = w_hwio[:, kw_c, :, :]                          # (kh, w_in, wo, cin, cout)
    g = g * valid[None, :, :, None, None].astype(w_hwio.dtype)
    t = jnp.transpose(g, (0, 1, 3, 2, 4))              # (kh, w_in, cin, wo, cout)
    return t.reshape(kh_size, w_in * cin, wo * cout)


@jax.jit
def double_conv_pallas(x_nchw, w1, g1, b1, w2, g2, b2):
    N, Cin, H, W = x_nchw.shape
    KH, KW, _, Cmid = w1.shape
    Cout = w2.shape[3]
    pad = 1
    Ho1, Wo1 = H + 2 * pad - KH + 1, W + 2 * pad - KW + 1
    Ho2, Wo2 = Ho1 + 2 * pad - KH + 1, Wo1 + 2 * pad - KW + 1
    WC1 = W * Cin
    Q1, Q2 = Wo1 * Cmid, Wo2 * Cout
    Hp1 = H + 2 * pad

    # NCHW -> (N, H, W*Cin) channels-last lanes, then H zero-padding (fuses
    # with the same XLA copy — no in-kernel padding / zero-fill needed).
    x = jnp.transpose(x_nchw, (0, 2, 3, 1)).reshape(N, H, WC1).astype(jnp.float32)
    x = jnp.pad(x, ((0, 0), (pad, pad), (0, 0)))

    # Per-kh block-Toeplitz weight slabs (tiny, built XLA-side).
    t1 = _toeplitz_slabs(w1.astype(jnp.float32), W, pad)    # (KH, WC1, Q1)
    t2 = _toeplitz_slabs(w2.astype(jnp.float32), Wo1, pad)  # (KH, Q1, Q2)

    # 0/1 channel-fold matrices for the BN stats / broadcast (run on the MXU).
    f1 = jnp.tile(jnp.eye(Cmid, dtype=jnp.float32), (Wo1, 1))   # (Q1, Cmid)
    f2 = jnp.tile(jnp.eye(Cout, dtype=jnp.float32), (Wo2, 1))   # (Q2, Cout)
    f1t = f1.T                                                  # (Cmid, Q1)
    f2t = f2.T                                                  # (Cout, Q2)

    g1r = g1.reshape(1, Cmid).astype(jnp.float32)
    b1r = b1.reshape(1, Cmid).astype(jnp.float32)
    g2r = g2.reshape(1, Cout).astype(jnp.float32)
    b2r = b2.reshape(1, Cout).astype(jnp.float32)

    kernel = functools.partial(double_conv_kernel, k_size=KH, pad=pad)

    out = pl.pallas_call(
        kernel,
        out_shape=jax.ShapeDtypeStruct((N, Ho2, Q2), jnp.float32),
        grid_spec=pltpu.PrefetchScalarGridSpec(
            num_scalar_prefetch=0,
            grid=(1,),
            in_specs=[
                pl.BlockSpec((N, Hp1, WC1), lambda i: (0, 0, 0)),   # x (H-padded)
                pl.BlockSpec((KH, WC1, Q1), lambda i: (0, 0, 0)),   # t1
                pl.BlockSpec((1, Cmid), lambda i: (0, 0)),          # gamma1
                pl.BlockSpec((1, Cmid), lambda i: (0, 0)),          # beta1
                pl.BlockSpec((Q1, Cmid), lambda i: (0, 0)),         # f1
                pl.BlockSpec((Cmid, Q1), lambda i: (0, 0)),         # f1^T
                pl.BlockSpec((KH, Q1, Q2), lambda i: (0, 0, 0)),    # t2
                pl.BlockSpec((1, Cout), lambda i: (0, 0)),          # gamma2
                pl.BlockSpec((1, Cout), lambda i: (0, 0)),          # beta2
                pl.BlockSpec((Q2, Cout), lambda i: (0, 0)),         # f2
                pl.BlockSpec((Cout, Q2), lambda i: (0, 0)),         # f2^T
            ],
            out_specs=pl.BlockSpec((N, Ho2, Q2), lambda i: (0, 0, 0)),
            scratch_shapes=[],
        ),
        compiler_params=pltpu.CompilerParams(
            dimension_semantics=("arbitrary",)),
    )(x, t1, g1r, b1r, f1, f1t, t2, g2r, b2r, f2, f2t)

    # (N, Ho2, Wo2*Cout) -> NCHW (cheap XLA-side layout plumbing).
    out = out.reshape(N, Ho2, Wo2, Cout)
    return jnp.transpose(out, (0, 3, 1, 2))


# ----------------------------------------------------------------------------
# Pure-JAX reference (training-mode BatchNorm semantics)
# ----------------------------------------------------------------------------
def double_conv_ref(x_nchw, w1, g1, b1, w2, g2, b2):
    def conv(x_nhwc, w):
        return lax.conv_general_dilated(
            x_nhwc, w, window_strides=(1, 1), padding=((1, 1), (1, 1)),
            dimension_numbers=("NHWC", "HWIO", "NHWC"),
            precision=lax.Precision.HIGHEST)

    def bn_relu(x_nhwc, g, b):
        mean = jnp.mean(x_nhwc, axis=(0, 1, 2), keepdims=True)
        var = jnp.mean((x_nhwc - mean) ** 2, axis=(0, 1, 2), keepdims=True)
        y = (x_nhwc - mean) * lax.rsqrt(var + 1e-5) * g + b
        return jnp.maximum(y, 0.0)

    x = jnp.transpose(x_nchw, (0, 2, 3, 1))
    x = bn_relu(conv(x, w1), g1, b1)
    x = bn_relu(conv(x, w2), g2, b2)
    return jnp.transpose(x, (0, 3, 1, 2))


# ----------------------------------------------------------------------------
if __name__ == "__main__":
    in_channels, mid_channels, out_channels = 4, 8, 8
    N, H, W = 2, 16, 16
    KH = KW = 9

    key = jax.random.PRNGKey(0)
    kx, kw1, kw2 = jax.random.split(key, 3)

    x = jax.random.normal(kx, (N, in_channels, H, W), jnp.float32)

    # Conv weights stored as (KH, KW, Cin, Cout); PyTorch's (Cout,Cin,KH,KW)
    # is the same tensor transposed.
    fan1 = in_channels * KH * KW
    fan2 = mid_channels * KH * KW
    w1 = jax.random.normal(kw1, (KH, KW, in_channels, mid_channels),
                           jnp.float32) * (1.0 / np.sqrt(fan1))
    w2 = jax.random.normal(kw2, (KH, KW, mid_channels, out_channels),
                           jnp.float32) * (1.0 / np.sqrt(fan2))

    # BatchNorm affine params: PyTorch default init (gamma=1, beta=0).
    g1 = jnp.ones((mid_channels,), jnp.float32)
    b1 = jnp.zeros((mid_channels,), jnp.float32)
    g2 = jnp.ones((out_channels,), jnp.float32)
    b2 = jnp.zeros((out_channels,), jnp.float32)

    out = double_conv_pallas(x, w1, g1, b1, w2, g2, b2)
    out = jax.block_until_ready(out)

    # Shape check: 16 -> (16+2-9+1)=10 -> (10+2-9+1)=4
    assert out.shape == (N, out_channels, 4, 4), out.shape

    ref = double_conv_ref(x, w1, g1, b1, w2, g2, b2)
    np.testing.assert_allclose(np.asarray(out), np.asarray(ref),
                               rtol=1e-3, atol=1e-3)

    print("KERNEL_OK")
</pallas_src>

<mosaic_0001>
module attributes {stable_mosaic.version = 11 : i64} {
  func.func @double_conv_kernel(%arg0: i32, %arg1: memref<2x18x64xf32, #tpu.memory_space<vmem>>, %arg2: memref<9x64x80xf32, #tpu.memory_space<vmem>>, %arg3: memref<1x8xf32, #tpu.memory_space<vmem>>, %arg4: memref<1x8xf32, #tpu.memory_space<vmem>>, %arg5: memref<80x8xf32, #tpu.memory_space<vmem>>, %arg6: memref<8x80xf32, #tpu.memory_space<vmem>>, %arg7: memref<9x80x32xf32, #tpu.memory_space<vmem>>, %arg8: memref<1x8xf32, #tpu.memory_space<vmem>>, %arg9: memref<1x8xf32, #tpu.memory_space<vmem>>, %arg10: memref<32x8xf32, #tpu.memory_space<vmem>>, %arg11: memref<8x32xf32, #tpu.memory_space<vmem>>, %arg12: memref<2x4x32xf32, #tpu.memory_space<vmem>>) attributes {dimension_semantics = [#tpu.dimension_semantics<arbitrary>], iteration_bounds = array<i64: 1>, scalar_prefetch = 0 : i64, scratch_operands = 0 : i64, tpu.core_type = #tpu.core_type<tc>, window_params = [{pipeline_mode = #tpu.pipeline_mode<synchronous>, transform_indices = @transform_0, window_bounds = array<i64: 2, 18, 64>}, {pipeline_mode = #tpu.pipeline_mode<synchronous>, transform_indices = @transform_1, window_bounds = array<i64: 9, 64, 80>}, {pipeline_mode = #tpu.pipeline_mode<synchronous>, transform_indices = @transform_2, window_bounds = array<i64: 1, 8>}, {pipeline_mode = #tpu.pipeline_mode<synchronous>, transform_indices = @transform_3, window_bounds = array<i64: 1, 8>}, {pipeline_mode = #tpu.pipeline_mode<synchronous>, transform_indices = @transform_4, window_bounds = array<i64: 80, 8>}, {pipeline_mode = #tpu.pipeline_mode<synchronous>, transform_indices = @transform_5, window_bounds = array<i64: 8, 80>}, {pipeline_mode = #tpu.pipeline_mode<synchronous>, transform_indices = @transform_6, window_bounds = array<i64: 9, 80, 32>}, {pipeline_mode = #tpu.pipeline_mode<synchronous>, transform_indices = @transform_7, window_bounds = array<i64: 1, 8>}, {pipeline_mode = #tpu.pipeline_mode<synchronous>, transform_indices = @transform_8, window_bounds = array<i64: 1, 8>}, {pipeline_mode = #tpu.pipeline_mode<synchronous>, transform_indices = @transform_9, window_bounds = array<i64: 32, 8>}, {pipeline_mode = #tpu.pipeline_mode<synchronous>, transform_indices = @transform_10, window_bounds = array<i64: 8, 32>}, {pipeline_mode = #tpu.pipeline_mode<synchronous>, transform_indices = @transform_11, window_bounds = array<i64: 2, 4, 32>}]} {
    %c0 = arith.constant 0 : index
    %c0_0 = arith.constant 0 : index
    %0 = vector.load %arg3[%c0, %c0_0] : memref<1x8xf32, #tpu.memory_space<vmem>>, vector<1x8xf32>
    %c0_1 = arith.constant 0 : index
    %c0_2 = arith.constant 0 : index
    %1 = vector.load %arg4[%c0_1, %c0_2] : memref<1x8xf32, #tpu.memory_space<vmem>>, vector<1x8xf32>
    %cst = arith.constant 0.000000e+00 : f32
    %2 = vector.broadcast %cst : f32 to vector<1x80xf32>
    %cst_3 = arith.constant 0.000000e+00 : f32
    %3 = vector.broadcast %cst_3 : f32 to vector<1x80xf32>
    %cst_4 = arith.constant 0.000000e+00 : f32
    %4 = vector.broadcast %cst_4 : f32 to vector<10x80xf32>
    %c0_5 = arith.constant 0 : index
    %c0_6 = arith.constant 0 : index
    %c0_7 = arith.constant 0 : index
    %5 = vector.load %arg1[%c0_5, %c0_6, %c0_7] : memref<2x18x64xf32, #tpu.memory_space<vmem>>, vector<1x10x64xf32>
    %6 = vector.shape_cast %5 : vector<1x10x64xf32> to vector<10x64xf32>
    %c0_8 = arith.constant 0 : index
    %c0_9 = arith.constant 0 : index
    %c0_10 = arith.constant 0 : index
    %7 = vector.load %arg2[%c0_8, %c0_9, %c0_10] : memref<9x64x80xf32, #tpu.memory_space<vmem>>, vector<1x64x80xf32>
    %8 = vector.shape_cast %7 : vector<1x64x80xf32> to vector<64x80xf32>
    %cst_11 = arith.constant dense<0.000000e+00> : vector<10x80xf32>
    %9 = tpu.matmul %6, %8, %cst_11 {dimension_numbers = #tpu.dot_dimension_numbers<[1], [0], [0], [1], [0, 0, 1, 1], [], []>} : vector<10x64xf32>, vector<64x80xf32>, vector<10x80xf32> -> vector<10x80xf32>
    %10 = arith.addf %4, %9 : vector<10x80xf32>
    %c0_12 = arith.constant 0 : index
    %c1 = arith.constant 1 : index
    %c0_13 = arith.constant 0 : index
    %11 = vector.load %arg1[%c0_12, %c1, %c0_13] : memref<2x18x64xf32, #tpu.memory_space<vmem>>, vector<1x10x64xf32>
    %12 = vector.shape_cast %11 : vector<1x10x64xf32> to vector<10x64xf32>
    %c1_14 = arith.constant 1 : index
    %c0_15 = arith.constant 0 : index
    %c0_16 = arith.constant 0 : index
    %13 = vector.load %arg2[%c1_14, %c0_15, %c0_16] : memref<9x64x80xf32, #tpu.memory_space<vmem>>, vector<1x64x80xf32>
    %14 = vector.shape_cast %13 : vector<1x64x80xf32> to vector<64x80xf32>
    %cst_17 = arith.constant dense<0.000000e+00> : vector<10x80xf32>
    %15 = tpu.matmul %12, %14, %cst_17 {dimension_numbers = #tpu.dot_dimension_numbers<[1], [0], [0], [1], [0, 0, 1, 1], [], []>} : vector<10x64xf32>, vector<64x80xf32>, vector<10x80xf32> -> vector<10x80xf32>
    %16 = arith.addf %10, %15 : vector<10x80xf32>
    %c0_18 = arith.constant 0 : index
    %c2 = arith.constant 2 : index
    %c0_19 = arith.constant 0 : index
    %17 = vector.load %arg1[%c0_18, %c2, %c0_19] : memref<2x18x64xf32, #tpu.memory_space<vmem>>, vector<1x10x64xf32>
    %18 = vector.shape_cast %17 : vector<1x10x64xf32> to vector<10x64xf32>
    %c2_20 = arith.constant 2 : index
    %c0_21 = arith.constant 0 : index
    %c0_22 = arith.constant 0 : index
    %19 = vector.load %arg2[%c2_20, %c0_21, %c0_22] : memref<9x64x80xf32, #tpu.memory_space<vmem>>, vector<1x64x80xf32>
    %20 = vector.shape_cast %19 : vector<1x64x80xf32> to vector<64x80xf32>
    %cst_23 = arith.constant dense<0.000000e+00> : vector<10x80xf32>
    %21 = tpu.matmul %18, %20, %cst_23 {dimension_numbers = #tpu.dot_dimension_numbers<[1], [0], [0], [1], [0, 0, 1, 1], [], []>} : vector<10x64xf32>, vector<64x80xf32>, vector<10x80xf32> -> vector<10x80xf32>
    %22 = arith.addf %16, %21 : vector<10x80xf32>
    %c0_24 = arith.constant 0 : index
    %c3 = arith.constant 3 : index
    %c0_25 = arith.constant 0 : index
    %23 = vector.load %arg1[%c0_24, %c3, %c0_25] : memref<2x18x64xf32, #tpu.memory_space<vmem>>, vector<1x10x64xf32>
    %24 = vector.shape_cast %23 : vector<1x10x64xf32> to vector<10x64xf32>
    %c3_26 = arith.constant 3 : index
    %c0_27 = arith.constant 0 : index
    %c0_28 = arith.constant 0 : index
    %25 = vector.load %arg2[%c3_26, %c0_27, %c0_28] : memref<9x64x80xf32, #tpu.memory_space<vmem>>, vector<1x64x80xf32>
    %26 = vector.shape_cast %25 : vector<1x64x80xf32> to vector<64x80xf32>
    %cst_29 = arith.constant dense<0.000000e+00> : vector<10x80xf32>
    %27 = tpu.matmul %24, %26, %cst_29 {dimension_numbers = #tpu.dot_dimension_numbers<[1], [0], [0], [1], [0, 0, 1, 1], [], []>} : vector<10x64xf32>, vector<64x80xf32>, vector<10x80xf32> -> vector<10x80xf32>
    %28 = arith.addf %22, %27 : vector<10x80xf32>
    %c0_30 = arith.constant 0 : index
    %c4 = arith.constant 4 : index
    %c0_31 = arith.constant 0 : index
    %29 = vector.load %arg1[%c0_30, %c4, %c0_31] : memref<2x18x64xf32, #tpu.memory_space<vmem>>, vector<1x10x64xf32>
    %30 = vector.shape_cast %29 : vector<1x10x64xf32> to vector<10x64xf32>
    %c4_32 = arith.constant 4 : index
    %c0_33 = arith.constant 0 : index
    %c0_34 = arith.constant 0 : index
    %31 = vector.load %arg2[%c4_32, %c0_33, %c0_34] : memref<9x64x80xf32, #tpu.memory_space<vmem>>, vector<1x64x80xf32>
    %32 = vector.shape_cast %31 : vector<1x64x80xf32> to vector<64x80xf32>
    %cst_35 = arith.constant dense<0.000000e+00> : vector<10x80xf32>
    %33 = tpu.matmul %30, %32, %cst_35 {dimension_numbers = #tpu.dot_dimension_numbers<[1], [0], [0], [1], [0, 0, 1, 1], [], []>} : vector<10x64xf32>, vector<64x80xf32>, vector<10x80xf32> -> vector<10x80xf32>
    %34 = arith.addf %28, %33 : vector<10x80xf32>
    %c0_36 = arith.constant 0 : index
    %c5 = arith.constant 5 : index
    %c0_37 = arith.constant 0 : index
    %35 = vector.load %arg1[%c0_36, %c5, %c0_37] : memref<2x18x64xf32, #tpu.memory_space<vmem>>, vector<1x10x64xf32>
    %36 = vector.shape_cast %35 : vector<1x10x64xf32> to vector<10x64xf32>
    %c5_38 = arith.constant 5 : index
    %c0_39 = arith.constant 0 : index
    %c0_40 = arith.constant 0 : index
    %37 = vector.load %arg2[%c5_38, %c0_39, %c0_40] : memref<9x64x80xf32, #tpu.memory_space<vmem>>, vector<1x64x80xf32>
    %38 = vector.shape_cast %37 : vector<1x64x80xf32> to vector<64x80xf32>
    %cst_41 = arith.constant dense<0.000000e+00> : vector<10x80xf32>
    %39 = tpu.matmul %36, %38, %cst_41 {dimension_numbers = #tpu.dot_dimension_numbers<[1], [0], [0], [1], [0, 0, 1, 1], [], []>} : vector<10x64xf32>, vector<64x80xf32>, vector<10x80xf32> -> vector<10x80xf32>
    %40 = arith.addf %34, %39 : vector<10x80xf32>
    %c0_42 = arith.constant 0 : index
    %c6 = arith.constant 6 : index
    %c0_43 = arith.constant 0 : index
    %41 = vector.load %arg1[%c0_42, %c6, %c0_43] : memref<2x18x64xf32, #tpu.memory_space<vmem>>, vector<1x10x64xf32>
    %42 = vector.shape_cast %41 : vector<1x10x64xf32> to vector<10x64xf32>
    %c6_44 = arith.constant 6 : index
    %c0_45 = arith.constant 0 : index
    %c0_46 = arith.constant 0 : index
    %43 = vector.load %arg2[%c6_44, %c0_45, %c0_46] : memref<9x64x80xf32, #tpu.memory_space<vmem>>, vector<1x64x80xf32>
    %44 = vector.shape_cast %43 : vector<1x64x80xf32> to vector<64x80xf32>
    %cst_47 = arith.constant dense<0.000000e+00> : vector<10x80xf32>
    %45 = tpu.matmul %42, %44, %cst_47 {dimension_numbers = #tpu.dot_dimension_numbers<[1], [0], [0], [1], [0, 0, 1, 1], [], []>} : vector<10x64xf32>, vector<64x80xf32>, vector<10x80xf32> -> vector<10x80xf32>
    %46 = arith.addf %40, %45 : vector<10x80xf32>
    %c0_48 = arith.constant 0 : index
    %c7 = arith.constant 7 : index
    %c0_49 = arith.constant 0 : index
    %47 = vector.load %arg1[%c0_48, %c7, %c0_49] : memref<2x18x64xf32, #tpu.memory_space<vmem>>, vector<1x10x64xf32>
    %48 = vector.shape_cast %47 : vector<1x10x64xf32> to vector<10x64xf32>
    %c7_50 = arith.constant 7 : index
    %c0_51 = arith.constant 0 : index
    %c0_52 = arith.constant 0 : index
    %49 = vector.load %arg2[%c7_50, %c0_51, %c0_52] : memref<9x64x80xf32, #tpu.memory_space<vmem>>, vector<1x64x80xf32>
    %50 = vector.shape_cast %49 : vector<1x64x80xf32> to vector<64x80xf32>
    %cst_53 = arith.constant dense<0.000000e+00> : vector<10x80xf32>
    %51 = tpu.matmul %48, %50, %cst_53 {dimension_numbers = #tpu.dot_dimension_numbers<[1], [0], [0], [1], [0, 0, 1, 1], [], []>} : vector<10x64xf32>, vector<64x80xf32>, vector<10x80xf32> -> vector<10x80xf32>
    %52 = arith.addf %46, %51 : vector<10x80xf32>
    %c0_54 = arith.constant 0 : index
    %c8 = arith.constant 8 : index
    %c0_55 = arith.constant 0 : index
    %53 = vector.load %arg1[%c0_54, %c8, %c0_55] : memref<2x18x64xf32, #tpu.memory_space<vmem>>, vector<1x10x64xf32>
    %54 = vector.shape_cast %53 : vector<1x10x64xf32> to vector<10x64xf32>
    %c8_56 = arith.constant 8 : index
    %c0_57 = arith.constant 0 : index
    %c0_58 = arith.constant 0 : index
    %55 = vector.load %arg2[%c8_56, %c0_57, %c0_58] : memref<9x64x80xf32, #tpu.memory_space<vmem>>, vector<1x64x80xf32>
    %56 = vector.shape_cast %55 : vector<1x64x80xf32> to vector<64x80xf32>
    %cst_59 = arith.constant dense<0.000000e+00> : vector<10x80xf32>
    %57 = tpu.matmul %54, %56, %cst_59 {dimension_numbers = #tpu.dot_dimension_numbers<[1], [0], [0], [1], [0, 0, 1, 1], [], []>} : vector<10x64xf32>, vector<64x80xf32>, vector<10x80xf32> -> vector<10x80xf32>
    %58 = arith.addf %52, %57 : vector<10x80xf32>
    %cst_60 = arith.constant dense<0.000000e+00> : vector<80xf32>
    %59 = vector.multi_reduction <add>, %58, %cst_60 [0] : vector<10x80xf32> to vector<80xf32>
    %60 = vector.shape_cast %59 : vector<80xf32> to vector<1x80xf32>
    %61 = arith.addf %2, %60 : vector<1x80xf32>
    %62 = arith.mulf %58, %58 : vector<10x80xf32>
    %cst_61 = arith.constant dense<0.000000e+00> : vector<80xf32>
    %63 = vector.multi_reduction <add>, %62, %cst_61 [0] : vector<10x80xf32> to vector<80xf32>
    %64 = vector.shape_cast %63 : vector<80xf32> to vector<1x80xf32>
    %65 = arith.addf %3, %64 : vector<1x80xf32>
    %cst_62 = arith.constant 0.000000e+00 : f32
    %66 = vector.broadcast %cst_62 : f32 to vector<10x80xf32>
    %c1_63 = arith.constant 1 : index
    %c0_64 = arith.constant 0 : index
    %c0_65 = arith.constant 0 : index
    %67 = vector.load %arg1[%c1_63, %c0_64, %c0_65] : memref<2x18x64xf32, #tpu.memory_space<vmem>>, vector<1x10x64xf32>
    %68 = vector.shape_cast %67 : vector<1x10x64xf32> to vector<10x64xf32>
    %c0_66 = arith.constant 0 : index
    %c0_67 = arith.constant 0 : index
    %c0_68 = arith.constant 0 : index
    %69 = vector.load %arg2[%c0_66, %c0_67, %c0_68] : memref<9x64x80xf32, #tpu.memory_space<vmem>>, vector<1x64x80xf32>
    %70 = vector.shape_cast %69 : vector<1x64x80xf32> to vector<64x80xf32>
    %cst_69 = arith.constant dense<0.000000e+00> : vector<10x80xf32>
    %71 = tpu.matmul %68, %70, %cst_69 {dimension_numbers = #tpu.dot_dimension_numbers<[1], [0], [0], [1], [0, 0, 1, 1], [], []>} : vector<10x64xf32>, vector<64x80xf32>, vector<10x80xf32> -> vector<10x80xf32>
    %72 = arith.addf %66, %71 : vector<10x80xf32>
    %c1_70 = arith.constant 1 : index
    %c1_71 = arith.constant 1 : index
    %c0_72 = arith.constant 0 : index
    %73 = vector.load %arg1[%c1_70, %c1_71, %c0_72] : memref<2x18x64xf32, #tpu.memory_space<vmem>>, vector<1x10x64xf32>
    %74 = vector.shape_cast %73 : vector<1x10x64xf32> to vector<10x64xf32>
    %c1_73 = arith.constant 1 : index
    %c0_74 = arith.constant 0 : index
    %c0_75 = arith.constant 0 : index
    %75 = vector.load %arg2[%c1_73, %c0_74, %c0_75] : memref<9x64x80xf32, #tpu.memory_space<vmem>>, vector<1x64x80xf32>
    %76 = vector.shape_cast %75 : vector<1x64x80xf32> to vector<64x80xf32>
    %cst_76 = arith.constant dense<0.000000e+00> : vector<10x80xf32>
    %77 = tpu.matmul %74, %76, %cst_76 {dimension_numbers = #tpu.dot_dimension_numbers<[1], [0], [0], [1], [0, 0, 1, 1], [], []>} : vector<10x64xf32>, vector<64x80xf32>, vector<10x80xf32> -> vector<10x80xf32>
    %78 = arith.addf %72, %77 : vector<10x80xf32>
    %c1_77 = arith.constant 1 : index
    %c2_78 = arith.constant 2 : index
    %c0_79 = arith.constant 0 : index
    %79 = vector.load %arg1[%c1_77, %c2_78, %c0_79] : memref<2x18x64xf32, #tpu.memory_space<vmem>>, vector<1x10x64xf32>
    %80 = vector.shape_cast %79 : vector<1x10x64xf32> to vector<10x64xf32>
    %c2_80 = arith.constant 2 : index
    %c0_81 = arith.constant 0 : index
    %c0_82 = arith.constant 0 : index
    %81 = vector.load %arg2[%c2_80, %c0_81, %c0_82] : memref<9x64x80xf32, #tpu.memory_space<vmem>>, vector<1x64x80xf32>
    %82 = vector.shape_cast %81 : vector<1x64x80xf32> to vector<64x80xf32>
    %cst_83 = arith.constant dense<0.000000e+00> : vector<10x80xf32>
    %83 = tpu.matmul %80, %82, %cst_83 {dimension_numbers = #tpu.dot_dimension_numbers<[1], [0], [0], [1], [0, 0, 1, 1], [], []>} : vector<10x64xf32>, vector<64x80xf32>, vector<10x80xf32> -> vector<10x80xf32>
    %84 = arith.addf %78, %83 : vector<10x80xf32>
    %c1_84 = arith.constant 1 : index
    %c3_85 = arith.constant 3 : index
    %c0_86 = arith.constant 0 : index
    %85 = vector.load %arg1[%c1_84, %c3_85, %c0_86] : memref<2x18x64xf32, #tpu.memory_space<vmem>>, vector<1x10x64xf32>
    %86 = vector.shape_cast %85 : vector<1x10x64xf32> to vector<10x64xf32>
    %c3_87 = arith.constant 3 : index
    %c0_88 = arith.constant 0 : index
    %c0_89 = arith.constant 0 : index
    %87 = vector.load %arg2[%c3_87, %c0_88, %c0_89] : memref<9x64x80xf32, #tpu.memory_space<vmem>>, vector<1x64x80xf32>
    %88 = vector.shape_cast %87 : vector<1x64x80xf32> to vector<64x80xf32>
    %cst_90 = arith.constant dense<0.000000e+00> : vector<10x80xf32>
    %89 = tpu.matmul %86, %88, %cst_90 {dimension_numbers = #tpu.dot_dimension_numbers<[1], [0], [0], [1], [0, 0, 1, 1], [], []>} : vector<10x64xf32>, vector<64x80xf32>, vector<10x80xf32> -> vector<10x80xf32>
    %90 = arith.addf %84, %89 : vector<10x80xf32>
    %c1_91 = arith.constant 1 : index
    %c4_92 = arith.constant 4 : index
    %c0_93 = arith.constant 0 : index
    %91 = vector.load %arg1[%c1_91, %c4_92, %c0_93] : memref<2x18x64xf32, #tpu.memory_space<vmem>>, vector<1x10x64xf32>
    %92 = vector.shape_cast %91 : vector<1x10x64xf32> to vector<10x64xf32>
    %c4_94 = arith.constant 4 : index
    %c0_95 = arith.constant 0 : index
    %c0_96 = arith.constant 0 : index
    %93 = vector.load %arg2[%c4_94, %c0_95, %c0_96] : memref<9x64x80xf32, #tpu.memory_space<vmem>>, vector<1x64x80xf32>
    %94 = vector.shape_cast %93 : vector<1x64x80xf32> to vector<64x80xf32>
    %cst_97 = arith.constant dense<0.000000e+00> : vector<10x80xf32>
    %95 = tpu.matmul %92, %94, %cst_97 {dimension_numbers = #tpu.dot_dimension_numbers<[1], [0], [0], [1], [0, 0, 1, 1], [], []>} : vector<10x64xf32>, vector<64x80xf32>, vector<10x80xf32> -> vector<10x80xf32>
    %96 = arith.addf %90, %95 : vector<10x80xf32>
    %c1_98 = arith.constant 1 : index
    %c5_99 = arith.constant 5 : index
    %c0_100 = arith.constant 0 : index
    %97 = vector.load %arg1[%c1_98, %c5_99, %c0_100] : memref<2x18x64xf32, #tpu.memory_space<vmem>>, vector<1x10x64xf32>
    %98 = vector.shape_cast %97 : vector<1x10x64xf32> to vector<10x64xf32>
    %c5_101 = arith.constant 5 : index
    %c0_102 = arith.constant 0 : index
    %c0_103 = arith.constant 0 : index
    %99 = vector.load %arg2[%c5_101, %c0_102, %c0_103] : memref<9x64x80xf32, #tpu.memory_space<vmem>>, vector<1x64x80xf32>
    %100 = vector.shape_cast %99 : vector<1x64x80xf32> to vector<64x80xf32>
    %cst_104 = arith.constant dense<0.000000e+00> : vector<10x80xf32>
    %101 = tpu.matmul %98, %100, %cst_104 {dimension_numbers = #tpu.dot_dimension_numbers<[1], [0], [0], [1], [0, 0, 1, 1], [], []>} : vector<10x64xf32>, vector<64x80xf32>, vector<10x80xf32> -> vector<10x80xf32>
    %102 = arith.addf %96, %101 : vector<10x80xf32>
    %c1_105 = arith.constant 1 : index
    %c6_106 = arith.constant 6 : index
    %c0_107 = arith.constant 0 : index
    %103 = vector.load %arg1[%c1_105, %c6_106, %c0_107] : memref<2x18x64xf32, #tpu.memory_space<vmem>>, vector<1x10x64xf32>
    %104 = vector.shape_cast %103 : vector<1x10x64xf32> to vector<10x64xf32>
    %c6_108 = arith.constant 6 : index
    %c0_109 = arith.constant 0 : index
    %c0_110 = arith.constant 0 : index
    %105 = vector.load %arg2[%c6_108, %c0_109, %c0_110] : memref<9x64x80xf32, #tpu.memory_space<vmem>>, vector<1x64x80xf32>
    %106 = vector.shape_cast %105 : vector<1x64x80xf32> to vector<64x80xf32>
    %cst_111 = arith.constant dense<0.000000e+00> : vector<10x80xf32>
    %107 = tpu.matmul %104, %106, %cst_111 {dimension_numbers = #tpu.dot_dimension_numbers<[1], [0], [0], [1], [0, 0, 1, 1], [], []>} : vector<10x64xf32>, vector<64x80xf32>, vector<10x80xf32> -> vector<10x80xf32>
    %108 = arith.addf %102, %107 : vector<10x80xf32>
    %c1_112 = arith.constant 1 : index
    %c7_113 = arith.constant 7 : index
    %c0_114 = arith.constant 0 : index
    %109 = vector.load %arg1[%c1_112, %c7_113, %c0_114] : memref<2x18x64xf32, #tpu.memory_space<vmem>>, vector<1x10x64xf32>
    %110 = vector.shape_cast %109 : vector<1x10x64xf32> to vector<10x64xf32>
    %c7_115 = arith.constant 7 : index
    %c0_116 = arith.constant 0 : index
    %c0_117 = arith.constant 0 : index
    %111 = vector.load %arg2[%c7_115, %c0_116, %c0_117] : memref<9x64x80xf32, #tpu.memory_space<vmem>>, vector<1x64x80xf32>
    %112 = vector.shape_cast %111 : vector<1x64x80xf32> to vector<64x80xf32>
    %cst_118 = arith.constant dense<0.000000e+00> : vector<10x80xf32>
    %113 = tpu.matmul %110, %112, %cst_118 {dimension_numbers = #tpu.dot_dimension_numbers<[1], [0], [0], [1], [0, 0, 1, 1], [], []>} : vector<10x64xf32>, vector<64x80xf32>, vector<10x80xf32> -> vector<10x80xf32>
    %114 = arith.addf %108, %113 : vector<10x80xf32>
    %c1_119 = arith.constant 1 : index
    %c8_120 = arith.constant 8 : index
    %c0_121 = arith.constant 0 : index
    %115 = vector.load %arg1[%c1_119, %c8_120, %c0_121] : memref<2x18x64xf32, #tpu.memory_space<vmem>>, vector<1x10x64xf32>
    %116 = vector.shape_cast %115 : vector<1x10x64xf32> to vector<10x64xf32>
    %c8_122 = arith.constant 8 : index
    %c0_123 = arith.constant 0 : index
    %c0_124 = arith.constant 0 : index
    %117 = vector.load %arg2[%c8_122, %c0_123, %c0_124] : memref<9x64x80xf32, #tpu.memory_space<vmem>>, vector<1x64x80xf32>
    %118 = vector.shape_cast %117 : vector<1x64x80xf32> to vector<64x80xf32>
    %cst_125 = arith.constant dense<0.000000e+00> : vector<10x80xf32>
    %119 = tpu.matmul %116, %118, %cst_125 {dimension_numbers = #tpu.dot_dimension_numbers<[1], [0], [0], [1], [0, 0, 1, 1], [], []>} : vector<10x64xf32>, vector<64x80xf32>, vector<10x80xf32> -> vector<10x80xf32>
    %120 = arith.addf %114, %119 : vector<10x80xf32>
    %cst_126 = arith.constant dense<0.000000e+00> : vector<80xf32>
    %121 = vector.multi_reduction <add>, %120, %cst_126 [0] : vector<10x80xf32> to vector<80xf32>
    %122 = vector.shape_cast %121 : vector<80xf32> to vector<1x80xf32>
    %123 = arith.addf %61, %122 : vector<1x80xf32>
    %124 = arith.mulf %120, %120 : vector<10x80xf32>
    %cst_127 = arith.constant dense<0.000000e+00> : vector<80xf32>
    %125 = vector.multi_reduction <add>, %124, %cst_127 [0] : vector<10x80xf32> to vector<80xf32>
    %126 = vector.shape_cast %125 : vector<80xf32> to vector<1x80xf32>
    %127 = arith.addf %65, %126 : vector<1x80xf32>
    %c0_128 = arith.constant 0 : index
    %c0_129 = arith.constant 0 : index
    %128 = vector.load %arg5[%c0_128, %c0_129] : memref<80x8xf32, #tpu.memory_space<vmem>>, vector<80x8xf32>
    %cst_130 = arith.constant dense<0.000000e+00> : vector<1x8xf32>
    %129 = tpu.matmul %123, %128, %cst_130 {dimension_numbers = #tpu.dot_dimension_numbers<[1], [0], [0], [1], [0, 0, 1, 1], [], []>} : vector<1x80xf32>, vector<80x8xf32>, vector<1x8xf32> -> vector<1x8xf32>
    %c0_131 = arith.constant 0 : index
    %c0_132 = arith.constant 0 : index
    %130 = vector.load %arg5[%c0_131, %c0_132] : memref<80x8xf32, #tpu.memory_space<vmem>>, vector<80x8xf32>
    %cst_133 = arith.constant dense<0.000000e+00> : vector<1x8xf32>
    %131 = tpu.matmul %127, %130, %cst_133 {dimension_numbers = #tpu.dot_dimension_numbers<[1], [0], [0], [1], [0, 0, 1, 1], [], []>} : vector<1x80xf32>, vector<80x8xf32>, vector<1x8xf32> -> vector<1x8xf32>
    %cst_134 = arith.constant 5.000000e-03 : f32
    %132 = vector.broadcast %cst_134 : f32 to vector<1x8xf32>
    %133 = arith.mulf %129, %132 : vector<1x8xf32>
    %cst_135 = arith.constant 5.000000e-03 : f32
    %134 = vector.broadcast %cst_135 : f32 to vector<1x8xf32>
    %135 = arith.mulf %131, %134 : vector<1x8xf32>
    %136 = arith.mulf %133, %133 : vector<1x8xf32>
    %137 = arith.subf %135, %136 : vector<1x8xf32>
    %cst_136 = arith.constant 0.000000e+00 : f32
    %138 = vector.broadcast %cst_136 : f32 to vector<1x8xf32>
    %139 = arith.maximumf %137, %138 : vector<1x8xf32>
    %cst_137 = arith.constant 9.99999974E-6 : f32
    %140 = vector.broadcast %cst_137 : f32 to vector<1x8xf32>
    %141 = arith.addf %139, %140 : vector<1x8xf32>
    %142 = math.rsqrt %141 : vector<1x8xf32>
    %143 = arith.mulf %142, %0 : vector<1x8xf32>
    %144 = arith.mulf %133, %143 : vector<1x8xf32>
    %145 = arith.subf %1, %144 : vector<1x8xf32>
    %c0_138 = arith.constant 0 : index
    %c0_139 = arith.constant 0 : index
    %146 = vector.load %arg6[%c0_138, %c0_139] : memref<8x80xf32, #tpu.memory_space<vmem>>, vector<8x80xf32>
    %cst_140 = arith.constant dense<0.000000e+00> : vector<1x80xf32>
    %147 = tpu.matmul %143, %146, %cst_140 {dimension_numbers = #tpu.dot_dimension_numbers<[1], [0], [0], [1], [0, 0, 1, 1], [], []>} : vector<1x8xf32>, vector<8x80xf32>, vector<1x80xf32> -> vector<1x80xf32>
    %c0_141 = arith.constant 0 : index
    %c0_142 = arith.constant 0 : index
    %148 = vector.load %arg6[%c0_141, %c0_142] : memref<8x80xf32, #tpu.memory_space<vmem>>, vector<8x80xf32>
    %cst_143 = arith.constant dense<0.000000e+00> : vector<1x80xf32>
    %149 = tpu.matmul %145, %148, %cst_143 {dimension_numbers = #tpu.dot_dimension_numbers<[1], [0], [0], [1], [0, 0, 1, 1], [], []>} : vector<1x8xf32>, vector<8x80xf32>, vector<1x80xf32> -> vector<1x80xf32>
    %150 = vector.broadcast %147 : vector<1x80xf32> to vector<10x80xf32>
    %151 = arith.mulf %58, %150 : vector<10x80xf32>
    %152 = vector.broadcast %149 : vector<1x80xf32> to vector<10x80xf32>
    %153 = arith.addf %151, %152 : vector<10x80xf32>
    %cst_144 = arith.constant 0.000000e+00 : f32
    %154 = vector.broadcast %cst_144 : f32 to vector<10x80xf32>
    %155 = arith.maximumf %153, %154 : vector<10x80xf32>
    %156 = vector.broadcast %147 : vector<1x80xf32> to vector<10x80xf32>
    %157 = arith.mulf %120, %156 : vector<10x80xf32>
    %158 = vector.broadcast %149 : vector<1x80xf32> to vector<10x80xf32>
    %159 = arith.addf %157, %158 : vector<10x80xf32>
    %cst_145 = arith.constant 0.000000e+00 : f32
    %160 = vector.broadcast %cst_145 : f32 to vector<10x80xf32>
    %161 = arith.maximumf %159, %160 : vector<10x80xf32>
    %cst_146 = arith.constant 0.000000e+00 : f32
    %162 = vector.broadcast %cst_146 : f32 to vector<1x80xf32>
    %163 = tpu.concatenate %162, %155, %162 in 0 : vector<1x80xf32>, vector<10x80xf32>, vector<1x80xf32> -> vector<12x80xf32>
    %164 = tpu.concatenate %162, %161, %162 in 0 : vector<1x80xf32>, vector<10x80xf32>, vector<1x80xf32> -> vector<12x80xf32>
    %c0_147 = arith.constant 0 : index
    %c0_148 = arith.constant 0 : index
    %165 = vector.load %arg8[%c0_147, %c0_148] : memref<1x8xf32, #tpu.memory_space<vmem>>, vector<1x8xf32>
    %c0_149 = arith.constant 0 : index
    %c0_150 = arith.constant 0 : index
    %166 = vector.load %arg9[%c0_149, %c0_150] : memref<1x8xf32, #tpu.memory_space<vmem>>, vector<1x8xf32>
    %cst_151 = arith.constant 0.000000e+00 : f32
    %167 = vector.broadcast %cst_151 : f32 to vector<1x32xf32>
    %cst_152 = arith.constant 0.000000e+00 : f32
    %168 = vector.broadcast %cst_152 : f32 to vector<1x32xf32>
    %cst_153 = arith.constant 0.000000e+00 : f32
    %169 = vector.broadcast %cst_153 : f32 to vector<4x32xf32>
    %170 = vector.extract_strided_slice %163 {offsets = [0, 0], sizes = [4, 80], strides = [1, 1]} : vector<12x80xf32> to vector<4x80xf32>
    %c0_154 = arith.constant 0 : index
    %c0_155 = arith.constant 0 : index
    %c0_156 = arith.constant 0 : index
    %171 = vector.load %arg7[%c0_154, %c0_155, %c0_156] : memref<9x80x32xf32, #tpu.memory_space<vmem>>, vector<1x80x32xf32>
    %172 = vector.shape_cast %171 : vector<1x80x32xf32> to vector<80x32xf32>
    %cst_157 = arith.constant dense<0.000000e+00> : vector<4x32xf32>
    %173 = tpu.matmul %170, %172, %cst_157 {dimension_numbers = #tpu.dot_dimension_numbers<[1], [0], [0], [1], [0, 0, 1, 1], [], []>} : vector<4x80xf32>, vector<80x32xf32>, vector<4x32xf32> -> vector<4x32xf32>
    %174 = arith.addf %169, %173 : vector<4x32xf32>
    %175 = vector.extract_strided_slice %163 {offsets = [1, 0], sizes = [4, 80], strides = [1, 1]} : vector<12x80xf32> to vector<4x80xf32>
    %c1_158 = arith.constant 1 : index
    %c0_159 = arith.constant 0 : index
    %c0_160 = arith.constant 0 : index
    %176 = vector.load %arg7[%c1_158, %c0_159, %c0_160] : memref<9x80x32xf32, #tpu.memory_space<vmem>>, vector<1x80x32xf32>
    %177 = vector.shape_cast %176 : vector<1x80x32xf32> to vector<80x32xf32>
    %cst_161 = arith.constant dense<0.000000e+00> : vector<4x32xf32>
    %178 = tpu.matmul %175, %177, %cst_161 {dimension_numbers = #tpu.dot_dimension_numbers<[1], [0], [0], [1], [0, 0, 1, 1], [], []>} : vector<4x80xf32>, vector<80x32xf32>, vector<4x32xf32> -> vector<4x32xf32>
    %179 = arith.addf %174, %178 : vector<4x32xf32>
    %180 = vector.extract_strided_slice %163 {offsets = [2, 0], sizes = [4, 80], strides = [1, 1]} : vector<12x80xf32> to vector<4x80xf32>
    %c2_162 = arith.constant 2 : index
    %c0_163 = arith.constant 0 : index
    %c0_164 = arith.constant 0 : index
    %181 = vector.load %arg7[%c2_162, %c0_163, %c0_164] : memref<9x80x32xf32, #tpu.memory_space<vmem>>, vector<1x80x32xf32>
    %182 = vector.shape_cast %181 : vector<1x80x32xf32> to vector<80x32xf32>
    %cst_165 = arith.constant dense<0.000000e+00> : vector<4x32xf32>
    %183 = tpu.matmul %180, %182, %cst_165 {dimension_numbers = #tpu.dot_dimension_numbers<[1], [0], [0], [1], [0, 0, 1, 1], [], []>} : vector<4x80xf32>, vector<80x32xf32>, vector<4x32xf32> -> vector<4x32xf32>
    %184 = arith.addf %179, %183 : vector<4x32xf32>
    %185 = vector.extract_strided_slice %163 {offsets = [3, 0], sizes = [4, 80], strides = [1, 1]} : vector<12x80xf32> to vector<4x80xf32>
    %c3_166 = arith.constant 3 : index
    %c0_167 = arith.constant 0 : index
    %c0_168 = arith.constant 0 : index
    %186 = vector.load %arg7[%c3_166, %c0_167, %c0_168] : memref<9x80x32xf32, #tpu.memory_space<vmem>>, vector<1x80x32xf32>
    %187 = vector.shape_cast %186 : vector<1x80x32xf32> to vector<80x32xf32>
    %cst_169 = arith.constant dense<0.000000e+00> : vector<4x32xf32>
    %188 = tpu.matmul %185, %187, %cst_169 {dimension_numbers = #tpu.dot_dimension_numbers<[1], [0], [0], [1], [0, 0, 1, 1], [], []>} : vector<4x80xf32>, vector<80x32xf32>, vector<4x32xf32> -> vector<4x32xf32>
    %189 = arith.addf %184, %188 : vector<4x32xf32>
    %190 = vector.extract_strided_slice %163 {offsets = [4, 0], sizes = [4, 80], strides = [1, 1]} : vector<12x80xf32> to vector<4x80xf32>
    %c4_170 = arith.constant 4 : index
    %c0_171 = arith.constant 0 : index
    %c0_172 = arith.constant 0 : index
    %191 = vector.load %arg7[%c4_170, %c0_171, %c0_172] : memref<9x80x32xf32, #tpu.memory_space<vmem>>, vector<1x80x32xf32>
    %192 = vector.shape_cast %191 : vector<1x80x32xf32> to vector<80x32xf32>
    %cst_173 = arith.constant dense<0.000000e+00> : vector<4x32xf32>
    %193 = tpu.matmul %190, %192, %cst_173 {dimension_numbers = #tpu.dot_dimension_numbers<[1], [0], [0], [1], [0, 0, 1, 1], [], []>} : vector<4x80xf32>, vector<80x32xf32>, vector<4x32xf32> -> vector<4x32xf32>
    %194 = arith.addf %189, %193 : vector<4x32xf32>
    %195 = vector.extract_strided_slice %163 {offsets = [5, 0], sizes = [4, 80], strides = [1, 1]} : vector<12x80xf32> to vector<4x80xf32>
    %c5_174 = arith.constant 5 : index
    %c0_175 = arith.constant 0 : index
    %c0_176 = arith.constant 0 : index
    %196 = vector.load %arg7[%c5_174, %c0_175, %c0_176] : memref<9x80x32xf32, #tpu.memory_space<vmem>>, vector<1x80x32xf32>
    %197 = vector.shape_cast %196 : vector<1x80x32xf32> to vector<80x32xf32>
    %cst_177 = arith.constant dense<0.000000e+00> : vector<4x32xf32>
    %198 = tpu.matmul %195, %197, %cst_177 {dimension_numbers = #tpu.dot_dimension_numbers<[1], [0], [0], [1], [0, 0, 1, 1], [], []>} : vector<4x80xf32>, vector<80x32xf32>, vector<4x32xf32> -> vector<4x32xf32>
    %199 = arith.addf %194, %198 : vector<4x32xf32>
    %200 = vector.extract_strided_slice %163 {offsets = [6, 0], sizes = [4, 80], strides = [1, 1]} : vector<12x80xf32> to vector<4x80xf32>
    %c6_178 = arith.constant 6 : index
    %c0_179 = arith.constant 0 : index
    %c0_180 = arith.constant 0 : index
    %201 = vector.load %arg7[%c6_178, %c0_179, %c0_180] : memref<9x80x32xf32, #tpu.memory_space<vmem>>, vector<1x80x32xf32>
    %202 = vector.shape_cast %201 : vector<1x80x32xf32> to vector<80x32xf32>
    %cst_181 = arith.constant dense<0.000000e+00> : vector<4x32xf32>
    %203 = tpu.matmul %200, %202, %cst_181 {dimension_numbers = #tpu.dot_dimension_numbers<[1], [0], [0], [1], [0, 0, 1, 1], [], []>} : vector<4x80xf32>, vector<80x32xf32>, vector<4x32xf32> -> vector<4x32xf32>
    %204 = arith.addf %199, %203 : vector<4x32xf32>
    %205 = vector.extract_strided_slice %163 {offsets = [7, 0], sizes = [4, 80], strides = [1, 1]} : vector<12x80xf32> to vector<4x80xf32>
    %c7_182 = arith.constant 7 : index
    %c0_183 = arith.constant 0 : index
    %c0_184 = arith.constant 0 : index
    %206 = vector.load %arg7[%c7_182, %c0_183, %c0_184] : memref<9x80x32xf32, #tpu.memory_space<vmem>>, vector<1x80x32xf32>
    %207 = vector.shape_cast %206 : vector<1x80x32xf32> to vector<80x32xf32>
    %cst_185 = arith.constant dense<0.000000e+00> : vector<4x32xf32>
    %208 = tpu.matmul %205, %207, %cst_185 {dimension_numbers = #tpu.dot_dimension_numbers<[1], [0], [0], [1], [0, 0, 1, 1], [], []>} : vector<4x80xf32>, vector<80x32xf32>, vector<4x32xf32> -> vector<4x32xf32>
    %209 = arith.addf %204, %208 : vector<4x32xf32>
    %210 = vector.extract_strided_slice %163 {offsets = [8, 0], sizes = [4, 80], strides = [1, 1]} : vector<12x80xf32> to vector<4x80xf32>
    %c8_186 = arith.constant 8 : index
    %c0_187 = arith.constant 0 : index
    %c0_188 = arith.constant 0 : index
    %211 = vector.load %arg7[%c8_186, %c0_187, %c0_188] : memref<9x80x32xf32, #tpu.memory_space<vmem>>, vector<1x80x32xf32>
    %212 = vector.shape_cast %211 : vector<1x80x32xf32> to vector<80x32xf32>
    %cst_189 = arith.constant dense<0.000000e+00> : vector<4x32xf32>
    %213 = tpu.matmul %210, %212, %cst_189 {dimension_numbers = #tpu.dot_dimension_numbers<[1], [0], [0], [1], [0, 0, 1, 1], [], []>} : vector<4x80xf32>, vector<80x32xf32>, vector<4x32xf32> -> vector<4x32xf32>
    %214 = arith.addf %209, %213 : vector<4x32xf32>
    %cst_190 = arith.constant dense<0.000000e+00> : vector<32xf32>
    %215 = vector.multi_reduction <add>, %214, %cst_190 [0] : vector<4x32xf32> to vector<32xf32>
    %216 = vector.shape_cast %215 : vector<32xf32> to vector<1x32xf32>
    %217 = arith.addf %167, %216 : vector<1x32xf32>
    %218 = arith.mulf %214, %214 : vector<4x32xf32>
    %cst_191 = arith.constant dense<0.000000e+00> : vector<32xf32>
    %219 = vector.multi_reduction <add>, %218, %cst_191 [0] : vector<4x32xf32> to vector<32xf32>
    %220 = vector.shape_cast %219 : vector<32xf32> to vector<1x32xf32>
    %221 = arith.addf %168, %220 : vector<1x32xf32>
    %cst_192 = arith.constant 0.000000e+00 : f32
    %222 = vector.broadcast %cst_192 : f32 to vector<4x32xf32>
    %223 = vector.extract_strided_slice %164 {offsets = [0, 0], sizes = [4, 80], strides = [1, 1]} : vector<12x80xf32> to vector<4x80xf32>
    %c0_193 = arith.constant 0 : index
    %c0_194 = arith.constant 0 : index
    %c0_195 = arith.constant 0 : index
    %224 = vector.load %arg7[%c0_193, %c0_194, %c0_195] : memref<9x80x32xf32, #tpu.memory_space<vmem>>, vector<1x80x32xf32>
    %225 = vector.shape_cast %224 : vector<1x80x32xf32> to vector<80x32xf32>
    %cst_196 = arith.constant dense<0.000000e+00> : vector<4x32xf32>
    %226 = tpu.matmul %223, %225, %cst_196 {dimension_numbers = #tpu.dot_dimension_numbers<[1], [0], [0], [1], [0, 0, 1, 1], [], []>} : vector<4x80xf32>, vector<80x32xf32>, vector<4x32xf32> -> vector<4x32xf32>
    %227 = arith.addf %222, %226 : vector<4x32xf32>
    %228 = vector.extract_strided_slice %164 {offsets = [1, 0], sizes = [4, 80], strides = [1, 1]} : vector<12x80xf32> to vector<4x80xf32>
    %c1_197 = arith.constant 1 : index
    %c0_198 = arith.constant 0 : index
    %c0_199 = arith.constant 0 : index
    %229 = vector.load %arg7[%c1_197, %c0_198, %c0_199] : memref<9x80x32xf32, #tpu.memory_space<vmem>>, vector<1x80x32xf32>
    %230 = vector.shape_cast %229 : vector<1x80x32xf32> to vector<80x32xf32>
    %cst_200 = arith.constant dense<0.000000e+00> : vector<4x32xf32>
    %231 = tpu.matmul %228, %230, %cst_200 {dimension_numbers = #tpu.dot_dimension_numbers<[1], [0], [0], [1], [0, 0, 1, 1], [], []>} : vector<4x80xf32>, vector<80x32xf32>, vector<4x32xf32> -> vector<4x32xf32>
    %232 = arith.addf %227, %231 : vector<4x32xf32>
    %233 = vector.extract_strided_slice %164 {offsets = [2, 0], sizes = [4, 80], strides = [1, 1]} : vector<12x80xf32> to vector<4x80xf32>
    %c2_201 = arith.constant 2 : index
    %c0_202 = arith.constant 0 : index
    %c0_203 = arith.constant 0 : index
    %234 = vector.load %arg7[%c2_201, %c0_202, %c0_203] : memref<9x80x32xf32, #tpu.memory_space<vmem>>, vector<1x80x32xf32>
    %235 = vector.shape_cast %234 : vector<1x80x32xf32> to vector<80x32xf32>
    %cst_204 = arith.constant dense<0.000000e+00> : vector<4x32xf32>
    %236 = tpu.matmul %233, %235, %cst_204 {dimension_numbers = #tpu.dot_dimension_numbers<[1], [0], [0], [1], [0, 0, 1, 1], [], []>} : vector<4x80xf32>, vector<80x32xf32>, vector<4x32xf32> -> vector<4x32xf32>
    %237 = arith.addf %232, %236 : vector<4x32xf32>
    %238 = vector.extract_strided_slice %164 {offsets = [3, 0], sizes = [4, 80], strides = [1, 1]} : vector<12x80xf32> to vector<4x80xf32>
    %c3_205 = arith.constant 3 : index
    %c0_206 = arith.constant 0 : index
    %c0_207 = arith.constant 0 : index
    %239 = vector.load %arg7[%c3_205, %c0_206, %c0_207] : memref<9x80x32xf32, #tpu.memory_space<vmem>>, vector<1x80x32xf32>
    %240 = vector.shape_cast %239 : vector<1x80x32xf32> to vector<80x32xf32>
    %cst_208 = arith.constant dense<0.000000e+00> : vector<4x32xf32>
    %241 = tpu.matmul %238, %240, %cst_208 {dimension_numbers = #tpu.dot_dimension_numbers<[1], [0], [0], [1], [0, 0, 1, 1], [], []>} : vector<4x80xf32>, vector<80x32xf32>, vector<4x32xf32> -> vector<4x32xf32>
    %242 = arith.addf %237, %241 : vector<4x32xf32>
    %243 = vector.extract_strided_slice %164 {offsets = [4, 0], sizes = [4, 80], strides = [1, 1]} : vector<12x80xf32> to vector<4x80xf32>
    %c4_209 = arith.constant 4 : index
    %c0_210 = arith.constant 0 : index
    %c0_211 = arith.constant 0 : index
    %244 = vector.load %arg7[%c4_209, %c0_210, %c0_211] : memref<9x80x32xf32, #tpu.memory_space<vmem>>, vector<1x80x32xf32>
    %245 = vector.shape_cast %244 : vector<1x80x32xf32> to vector<80x32xf32>
    %cst_212 = arith.constant dense<0.000000e+00> : vector<4x32xf32>
    %246 = tpu.matmul %243, %245, %cst_212 {dimension_numbers = #tpu.dot_dimension_numbers<[1], [0], [0], [1], [0, 0, 1, 1], [], []>} : vector<4x80xf32>, vector<80x32xf32>, vector<4x32xf32> -> vector<4x32xf32>
    %247 = arith.addf %242, %246 : vector<4x32xf32>
    %248 = vector.extract_strided_slice %164 {offsets = [5, 0], sizes = [4, 80], strides = [1, 1]} : vector<12x80xf32> to vector<4x80xf32>
    %c5_213 = arith.constant 5 : index
    %c0_214 = arith.constant 0 : index
    %c0_215 = arith.constant 0 : index
    %249 = vector.load %arg7[%c5_213, %c0_214, %c0_215] : memref<9x80x32xf32, #tpu.memory_space<vmem>>, vector<1x80x32xf32>
    %250 = vector.shape_cast %249 : vector<1x80x32xf32> to vector<80x32xf32>
    %cst_216 = arith.constant dense<0.000000e+00> : vector<4x32xf32>
    %251 = tpu.matmul %248, %250, %cst_216 {dimension_numbers = #tpu.dot_dimension_numbers<[1], [0], [0], [1], [0, 0, 1, 1], [], []>} : vector<4x80xf32>, vector<80x32xf32>, vector<4x32xf32> -> vector<4x32xf32>
    %252 = arith.addf %247, %251 : vector<4x32xf32>
    %253 = vector.extract_strided_slice %164 {offsets = [6, 0], sizes = [4, 80], strides = [1, 1]} : vector<12x80xf32> to vector<4x80xf32>
    %c6_217 = arith.constant 6 : index
    %c0_218 = arith.constant 0 : index
    %c0_219 = arith.constant 0 : index
    %254 = vector.load %arg7[%c6_217, %c0_218, %c0_219] : memref<9x80x32xf32, #tpu.memory_space<vmem>>, vector<1x80x32xf32>
    %255 = vector.shape_cast %254 : vector<1x80x32xf32> to vector<80x32xf32>
    %cst_220 = arith.constant dense<0.000000e+00> : vector<4x32xf32>
    %256 = tpu.matmul %253, %255, %cst_220 {dimension_numbers = #tpu.dot_dimension_numbers<[1], [0], [0], [1], [0, 0, 1, 1], [], []>} : vector<4x80xf32>, vector<80x32xf32>, vector<4x32xf32> -> vector<4x32xf32>
    %257 = arith.addf %252, %256 : vector<4x32xf32>
    %258 = vector.extract_strided_slice %164 {offsets = [7, 0], sizes = [4, 80], strides = [1, 1]} : vector<12x80xf32> to vector<4x80xf32>
    %c7_221 = arith.constant 7 : index
    %c0_222 = arith.constant 0 : index
    %c0_223 = arith.constant 0 : index
    %259 = vector.load %arg7[%c7_221, %c0_222, %c0_223] : memref<9x80x32xf32, #tpu.memory_space<vmem>>, vector<1x80x32xf32>
    %260 = vector.shape_cast %259 : vector<1x80x32xf32> to vector<80x32xf32>
    %cst_224 = arith.constant dense<0.000000e+00> : vector<4x32xf32>
    %261 = tpu.matmul %258, %260, %cst_224 {dimension_numbers = #tpu.dot_dimension_numbers<[1], [0], [0], [1], [0, 0, 1, 1], [], []>} : vector<4x80xf32>, vector<80x32xf32>, vector<4x32xf32> -> vector<4x32xf32>
    %262 = arith.addf %257, %261 : vector<4x32xf32>
    %263 = vector.extract_strided_slice %164 {offsets = [8, 0], sizes = [4, 80], strides = [1, 1]} : vector<12x80xf32> to vector<4x80xf32>
    %c8_225 = arith.constant 8 : index
    %c0_226 = arith.constant 0 : index
    %c0_227 = arith.constant 0 : index
    %264 = vector.load %arg7[%c8_225, %c0_226, %c0_227] : memref<9x80x32xf32, #tpu.memory_space<vmem>>, vector<1x80x32xf32>
    %265 = vector.shape_cast %264 : vector<1x80x32xf32> to vector<80x32xf32>
    %cst_228 = arith.constant dense<0.000000e+00> : vector<4x32xf32>
    %266 = tpu.matmul %263, %265, %cst_228 {dimension_numbers = #tpu.dot_dimension_numbers<[1], [0], [0], [1], [0, 0, 1, 1], [], []>} : vector<4x80xf32>, vector<80x32xf32>, vector<4x32xf32> -> vector<4x32xf32>
    %267 = arith.addf %262, %266 : vector<4x32xf32>
    %cst_229 = arith.constant dense<0.000000e+00> : vector<32xf32>
    %268 = vector.multi_reduction <add>, %267, %cst_229 [0] : vector<4x32xf32> to vector<32xf32>
    %269 = vector.shape_cast %268 : vector<32xf32> to vector<1x32xf32>
    %270 = arith.addf %217, %269 : vector<1x32xf32>
    %271 = arith.mulf %267, %267 : vector<4x32xf32>
    %cst_230 = arith.constant dense<0.000000e+00> : vector<32xf32>
    %272 = vector.multi_reduction <add>, %271, %cst_230 [0] : vector<4x32xf32> to vector<32xf32>
    %273 = vector.shape_cast %272 : vector<32xf32> to vector<1x32xf32>
    %274 = arith.addf %221, %273 : vector<1x32xf32>
    %c0_231 = arith.constant 0 : index
    %c0_232 = arith.constant 0 : index
    %275 = vector.load %arg10[%c0_231, %c0_232] : memref<32x8xf32, #tpu.memory_space<vmem>>, vector<32x8xf32>
    %cst_233 = arith.constant dense<0.000000e+00> : vector<1x8xf32>
    %276 = tpu.matmul %270, %275, %cst_233 {dimension_numbers = #tpu.dot_dimension_numbers<[1], [0], [0], [1], [0, 0, 1, 1], [], []>} : vector<1x32xf32>, vector<32x8xf32>, vector<1x8xf32> -> vector<1x8xf32>
    %c0_234 = arith.constant 0 : index
    %c0_235 = arith.constant 0 : index
    %277 = vector.load %arg10[%c0_234, %c0_235] : memref<32x8xf32, #tpu.memory_space<vmem>>, vector<32x8xf32>
    %cst_236 = arith.constant dense<0.000000e+00> : vector<1x8xf32>
    %278 = tpu.matmul %274, %277, %cst_236 {dimension_numbers = #tpu.dot_dimension_numbers<[1], [0], [0], [1], [0, 0, 1, 1], [], []>} : vector<1x32xf32>, vector<32x8xf32>, vector<1x8xf32> -> vector<1x8xf32>
    %cst_237 = arith.constant 3.125000e-02 : f32
    %279 = vector.broadcast %cst_237 : f32 to vector<1x8xf32>
    %280 = arith.mulf %276, %279 : vector<1x8xf32>
    %cst_238 = arith.constant 3.125000e-02 : f32
    %281 = vector.broadcast %cst_238 : f32 to vector<1x8xf32>
    %282 = arith.mulf %278, %281 : vector<1x8xf32>
    %283 = arith.mulf %280, %280 : vector<1x8xf32>
    %284 = arith.subf %282, %283 : vector<1x8xf32>
    %cst_239 = arith.constant 0.000000e+00 : f32
    %285 = vector.broadcast %cst_239 : f32 to vector<1x8xf32>
    %286 = arith.maximumf %284, %285 : vector<1x8xf32>
    %cst_240 = arith.constant 9.99999974E-6 : f32
    %287 = vector.broadcast %cst_240 : f32 to vector<1x8xf32>
    %288 = arith.addf %286, %287 : vector<1x8xf32>
    %289 = math.rsqrt %288 : vector<1x8xf32>
    %290 = arith.mulf %289, %165 : vector<1x8xf32>
    %291 = arith.mulf %280, %290 : vector<1x8xf32>
    %292 = arith.subf %166, %291 : vector<1x8xf32>
    %c0_241 = arith.constant 0 : index
    %c0_242 = arith.constant 0 : index
    %293 = vector.load %arg11[%c0_241, %c0_242] : memref<8x32xf32, #tpu.memory_space<vmem>>, vector<8x32xf32>
    %cst_243 = arith.constant dense<0.000000e+00> : vector<1x32xf32>
    %294 = tpu.matmul %290, %293, %cst_243 {dimension_numbers = #tpu.dot_dimension_numbers<[1], [0], [0], [1], [0, 0, 1, 1], [], []>} : vector<1x8xf32>, vector<8x32xf32>, vector<1x32xf32> -> vector<1x32xf32>
    %c0_244 = arith.constant 0 : index
    %c0_245 = arith.constant 0 : index
    %295 = vector.load %arg11[%c0_244, %c0_245] : memref<8x32xf32, #tpu.memory_space<vmem>>, vector<8x32xf32>
    %cst_246 = arith.constant dense<0.000000e+00> : vector<1x32xf32>
    %296 = tpu.matmul %292, %295, %cst_246 {dimension_numbers = #tpu.dot_dimension_numbers<[1], [0], [0], [1], [0, 0, 1, 1], [], []>} : vector<1x8xf32>, vector<8x32xf32>, vector<1x32xf32> -> vector<1x32xf32>
    %297 = vector.broadcast %294 : vector<1x32xf32> to vector<4x32xf32>
    %298 = arith.mulf %214, %297 : vector<4x32xf32>
    %299 = vector.broadcast %296 : vector<1x32xf32> to vector<4x32xf32>
    %300 = arith.addf %298, %299 : vector<4x32xf32>
    %cst_247 = arith.constant 0.000000e+00 : f32
    %301 = vector.broadcast %cst_247 : f32 to vector<4x32xf32>
    %302 = arith.maximumf %300, %301 : vector<4x32xf32>
    %303 = vector.broadcast %294 : vector<1x32xf32> to vector<4x32xf32>
    %304 = arith.mulf %267, %303 : vector<4x32xf32>
    %305 = vector.broadcast %296 : vector<1x32xf32> to vector<4x32xf32>
    %306 = arith.addf %304, %305 : vector<4x32xf32>
    %cst_248 = arith.constant 0.000000e+00 : f32
    %307 = vector.broadcast %cst_248 : f32 to vector<4x32xf32>
    %308 = arith.maximumf %306, %307 : vector<4x32xf32>
    %c0_249 = arith.constant 0 : index
    %c0_250 = arith.constant 0 : index
    %c0_251 = arith.constant 0 : index
    %309 = vector.load %arg12[%c0_249, %c0_250, %c0_251] : memref<2x4x32xf32, #tpu.memory_space<vmem>>, vector<1x4x32xf32>
    %310 = vector.shape_cast %309 : vector<1x4x32xf32> to vector<4x32xf32>
    %311 = vector.shape_cast %302 : vector<4x32xf32> to vector<1x4x32xf32>
    tpu.vector_store %arg12[%c0_249, %c0_250, %c0_251], %311 {strides = array<i32>} : memref<2x4x32xf32, #tpu.memory_space<vmem>>, vector<1x4x32xf32>,
    %c1_252 = arith.constant 1 : index
    %c0_253 = arith.constant 0 : index
    %c0_254 = arith.constant 0 : index
    %312 = vector.load %arg12[%c1_252, %c0_253, %c0_254] : memref<2x4x32xf32, #tpu.memory_space<vmem>>, vector<1x4x32xf32>
    %313 = vector.shape_cast %312 : vector<1x4x32xf32> to vector<4x32xf32>
    %314 = vector.shape_cast %308 : vector<4x32xf32> to vector<1x4x32xf32>
    tpu.vector_store %arg12[%c1_252, %c0_253, %c0_254], %314 {strides = array<i32>} : memref<2x4x32xf32, #tpu.memory_space<vmem>>, vector<1x4x32xf32>,
    return
  }
  func.func @transform_0(%arg0: i32) -> (i32, i32, i32) {
    %c0_i32 = arith.constant 0 : i32
    %c0_i32_0 = arith.constant 0 : i32
    %c0_i32_1 = arith.constant 0 : i32
    %c0_i32_2 = arith.constant 0 : i32
    return %c0_i32, %c0_i32_0, %c0_i32_1 : i32, i32, i32
  }
  func.func @transform_1(%arg0: i32) -> (i32, i32, i32) {
    %c0_i32 = arith.constant 0 : i32
    %c0_i32_0 = arith.constant 0 : i32
    %c0_i32_1 = arith.constant 0 : i32
    %c0_i32_2 = arith.constant 0 : i32
    return %c0_i32, %c0_i32_0, %c0_i32_1 : i32, i32, i32
  }
  func.func @transform_2(%arg0: i32) -> (i32, i32) {
    %c0_i32 = arith.constant 0 : i32
    %c0_i32_0 = arith.constant 0 : i32
    %c0_i32_1 = arith.constant 0 : i32
    return %c0_i32, %c0_i32_0 : i32, i32
  }
  func.func @transform_3(%arg0: i32) -> (i32, i32) {
    %c0_i32 = arith.constant 0 : i32
    %c0_i32_0 = arith.constant 0 : i32
    %c0_i32_1 = arith.constant 0 : i32
    return %c0_i32, %c0_i32_0 : i32, i32
  }
  func.func @transform_4(%arg0: i32) -> (i32, i32) {
    %c0_i32 = arith.constant 0 : i32
    %c0_i32_0 = arith.constant 0 : i32
    %c0_i32_1 = arith.constant 0 : i32
    return %c0_i32, %c0_i32_0 : i32, i32
  }
  func.func @transform_5(%arg0: i32) -> (i32, i32) {
    %c0_i32 = arith.constant 0 : i32
    %c0_i32_0 = arith.constant 0 : i32
    %c0_i32_1 = arith.constant 0 : i32
    return %c0_i32, %c0_i32_0 : i32, i32
  }
  func.func @transform_6(%arg0: i32) -> (i32, i32, i32) {
    %c0_i32 = arith.constant 0 : i32
    %c0_i32_0 = arith.constant 0 : i32
    %c0_i32_1 = arith.constant 0 : i32
    %c0_i32_2 = arith.constant 0 : i32
    return %c0_i32, %c0_i32_0, %c0_i32_1 : i32, i32, i32
  }
  func.func @transform_7(%arg0: i32) -> (i32, i32) {
    %c0_i32 = arith.constant 0 : i32
    %c0_i32_0 = arith.constant 0 : i32
    %c0_i32_1 = arith.constant 0 : i32
    return %c0_i32, %c0_i32_0 : i32, i32
  }
  func.func @transform_8(%arg0: i32) -> (i32, i32) {
    %c0_i32 = arith.constant 0 : i32
    %c0_i32_0 = arith.constant 0 : i32
    %c0_i32_1 = arith.constant 0 : i32
    return %c0_i32, %c0_i32_0 : i32, i32
  }
  func.func @transform_9(%arg0: i32) -> (i32, i32) {
    %c0_i32 = arith.constant 0 : i32
    %c0_i32_0 = arith.constant 0 : i32
    %c0_i32_1 = arith.constant 0 : i32
    return %c0_i32, %c0_i32_0 : i32, i32
  }
  func.func @transform_10(%arg0: i32) -> (i32, i32) {
    %c0_i32 = arith.constant 0 : i32
    %c0_i32_0 = arith.constant 0 : i32
    %c0_i32_1 = arith.constant 0 : i32
    return %c0_i32, %c0_i32_0 : i32, i32
  }
  func.func @transform_11(%arg0: i32) -> (i32, i32, i32) {
    %c0_i32 = arith.constant 0 : i32
    %c0_i32_0 = arith.constant 0 : i32
    %c0_i32_1 = arith.constant 0 : i32
    %c0_i32_2 = arith.constant 0 : i32
    return %c0_i32, %c0_i32_0, %c0_i32_1 : i32, i32, i32
  }
}

</mosaic_0001>

<llo_original>
// kernel: tile.14
$region0: #{tile.14}
  %s0 = inlined_call_operand.vmem [shape: f32[10,8,8], index: 0, kind: input, shape index: {}]
  %s1 = inlined_call_operand.vmem [shape: f32[80,8], index: 1, kind: output, shape index: {}]
  %s2 = smov 3
  %v3 = vld [vmem:[%s0] ss:$16 sm:%s2]
  %s4 = smov 12
  %v5 = vld [vmem:[%s0] ss:$16 sm:%s4]
  %vm6 = vcmask 1043458
  %v7 = vsel %vm6, %v5, %v3
  %s8 = smov 48
  %v9 = vld [vmem:[%s0] ss:$16 sm:%s8]
  %vm10 = vcmask 1045508
  %v11 = vsel %vm10, %v9, %v7
  %s12 = smov 192
  %v13 = vld [vmem:[%s0] ss:$16 sm:%s12]
  %vm14 = vcmask 1047558
  %v15 = vsel %vm14, %v13, %v11
  %vm16 = vcmask 64512
  %17 = vst.msk [vmem:[%s1] sm:$0xff] %vm16, %v15
  %s18 = scalar_lea.vmem %s0, 9
  %s19 = smov 3
  %v20 = vld [vmem:[%s18] ss:$16 sm:%s19]
  %s21 = scalar_lea.vmem %s0, 9
  %s22 = smov 12
  %v23 = vld [vmem:[%s21] ss:$16 sm:%s22]
  %vm24 = vcmask 1043458
  %v25 = vsel %vm24, %v23, %v20
  %s26 = scalar_lea.vmem %s0, 9
  %s27 = smov 48
  %v28 = vld [vmem:[%s26] ss:$16 sm:%s27]
  %vm29 = vcmask 1045508
  %v30 = vsel %vm29, %v28, %v25
  %s31 = scalar_lea.vmem %s0, 9
  %s32 = smov 192
  %v33 = vld [vmem:[%s31] ss:$16 sm:%s32]
  %vm34 = vcmask 1047558
  %v35 = vsel %vm34, %v33, %v30
  %36 = vrot.lane.b32.xlu0 %v35, 72
  %v37 = vpop.permute.xlu0 %36
  %vm38 = vcmask 654912
  %39 = vst.msk [vmem:[%s1] sm:$0xff] %vm38, %v37
  %s40 = scalar_lea.vmem %s0, 8
  %s41 = smov 3
  %v42 = vld [vmem:[%s40] ss:$16 sm:%s41]
  %s43 = scalar_lea.vmem %s0, 8
  %s44 = smov 12
  %v45 = vld [vmem:[%s43] ss:$16 sm:%s44]
  %vm46 = vcmask 1043458
  %v47 = vsel %vm46, %v45, %v42
  %s48 = scalar_lea.vmem %s0, 8
  %s49 = smov 48
  %v50 = vld [vmem:[%s48] ss:$16 sm:%s49]
  %vm51 = vcmask 1045508
  %v52 = vsel %vm51, %v50, %v47
  %s53 = scalar_lea.vmem %s0, 8
  %s54 = smov 192
  %v55 = vld [vmem:[%s53] ss:$16 sm:%s54]
  %vm56 = vcmask 1047558
  %v57 = vsel %vm56, %v55, %v52
  %58 = vrot.lane.b32.xlu0 %v57, 64
  %v59 = vpop.permute.xlu0 %58
  %vm60 = vcmask 589312
  %61 = vst.msk [vmem:[%s1] sm:$0xff] %vm60, %v59
  %s62 = scalar_lea.vmem %s0, 7
  %s63 = smov 3
  %v64 = vld [vmem:[%s62] ss:$16 sm:%s63]
  %s65 = scalar_lea.vmem %s0, 7
  %s66 = smov 12
  %v67 = vld [vmem:[%s65] ss:$16 sm:%s66]
  %vm68 = vcmask 1043458
  %v69 = vsel %vm68, %v67, %v64
  %s70 = scalar_lea.vmem %s0, 7
  %s71 = smov 48
  %v72 = vld [vmem:[%s70] ss:$16 sm:%s71]
  %vm73 = vcmask 1045508
  %v74 = vsel %vm73, %v72, %v69
  %s75 = scalar_lea.vmem %s0, 7
  %s76 = smov 192
  %v77 = vld [vmem:[%s75] ss:$16 sm:%s76]
  %vm78 = vcmask 1047558
  %v79 = vsel %vm78, %v77, %v74
  %80 = vrot.lane.b32.xlu0 %v79, 56
  %v81 = vpop.permute.xlu0 %80
  %vm82 = vcmask 523712
  %83 = vst.msk [vmem:[%s1] sm:$0xff] %vm82, %v81
  %s84 = scalar_lea.vmem %s0, 6
  %s85 = smov 3
  %v86 = vld [vmem:[%s84] ss:$16 sm:%s85]
  %s87 = scalar_lea.vmem %s0, 6
  %s88 = smov 12
  %v89 = vld [vmem:[%s87] ss:$16 sm:%s88]
  %vm90 = vcmask 1043458
  %v91 = vsel %vm90, %v89, %v86
  %s92 = scalar_lea.vmem %s0, 6
  %s93 = smov 48
  %v94 = vld [vmem:[%s92] ss:$16 sm:%s93]
  %vm95 = vcmask 1045508
  %v96 = vsel %vm95, %v94, %v91
  %s97 = scalar_lea.vmem %s0, 6
  %s98 = smov 192
  %v99 = vld [vmem:[%s97] ss:$16 sm:%s98]
  %vm100 = vcmask 1047558
  %v101 = vsel %vm100, %v99, %v96
  %102 = vrot.lane.b32.xlu0 %v101, 48
  %v103 = vpop.permute.xlu0 %102
  %vm104 = vcmask 458112
  %105 = vst.msk [vmem:[%s1] sm:$0xff] %vm104, %v103
  %s106 = scalar_lea.vmem %s0, 5
  %s107 = smov 3
  %v108 = vld [vmem:[%s106] ss:$16 sm:%s107]
  %s109 = scalar_lea.vmem %s0, 5
  %s110 = smov 12
  %v111 = vld [vmem:[%s109] ss:$16 sm:%s110]
  %vm112 = vcmask 1043458
  %v113 = vsel %vm112, %v111, %v108
  %s114 = scalar_lea.vmem %s0, 5
  %s115 = smov 48
  %v116 = vld [vmem:[%s114] ss:$16 sm:%s115]
  %vm117 = vcmask 1045508
  %v118 = vsel %vm117, %v116, %v113
  %s119 = scalar_lea.vmem %s0, 5
  %s120 = smov 192
  %v121 = vld [vmem:[%s119] ss:$16 sm:%s120]
  %vm122 = vcmask 1047558
  %v123 = vsel %vm122, %v121, %v118
  %124 = vrot.lane.b32.xlu0 %v123, 40
  %v125 = vpop.permute.xlu0 %124
  %vm126 = vcmask 392512
  %127 = vst.msk [vmem:[%s1] sm:$0xff] %vm126, %v125
  %s128 = scalar_lea.vmem %s0, 4
  %s129 = smov 3
  %v130 = vld [vmem:[%s128] ss:$16 sm:%s129]
  %s131 = scalar_lea.vmem %s0, 4
  %s132 = smov 12
  %v133 = vld [vmem:[%s131] ss:$16 sm:%s132]
  %vm134 = vcmask 1043458
  %v135 = vsel %vm134, %v133, %v130
  %s136 = scalar_lea.vmem %s0, 4
  %s137 = smov 48
  %v138 = vld [vmem:[%s136] ss:$16 sm:%s137]
  %vm139 = vcmask 1045508
  %v140 = vsel %vm139, %v138, %v135
  %s141 = scalar_lea.vmem %s0, 4
  %s142 = smov 192
  %v143 = vld [vmem:[%s141] ss:$16 sm:%s142]
  %vm144 = vcmask 1047558
  %v145 = vsel %vm144, %v143, %v140
  %146 = vrot.lane.b32.xlu0 %v145, 32
  %v147 = vpop.permute.xlu0 %146
  %vm148 = vcmask 326912
  %149 = vst.msk [vmem:[%s1] sm:$0xff] %vm148, %v147
  %s150 = scalar_lea.vmem %s0, 3
  %s151 = smov 3
  %v152 = vld [vmem:[%s150] ss:$16 sm:%s151]
  %s153 = scalar_lea.vmem %s0, 3
  %s154 = smov 12
  %v155 = vld [vmem:[%s153] ss:$16 sm:%s154]
  %vm156 = vcmask 1043458
  %v157 = vsel %vm156, %v155, %v152
  %s158 = scalar_lea.vmem %s0, 3
  %s159 = smov 48
  %v160 = vld [vmem:[%s158] ss:$16 sm:%s159]
  %vm161 = vcmask 1045508
  %v162 = vsel %vm161, %v160, %v157
  %s163 = scalar_lea.vmem %s0, 3
  %s164 = smov 192
  %v165 = vld [vmem:[%s163] ss:$16 sm:%s164]
  %vm166 = vcmask 1047558
  %v167 = vsel %vm166, %v165, %v162
  %168 = vrot.lane.b32.xlu0 %v167, 24
  %v169 = vpop.permute.xlu0 %168
  %vm170 = vcmask 261312
  %171 = vst.msk [vmem:[%s1] sm:$0xff] %vm170, %v169
  %s172 = scalar_lea.vmem %s0, 2
  %s173 = smov 3
  %v174 = vld [vmem:[%s172] ss:$16 sm:%s173]
  %s175 = scalar_lea.vmem %s0, 2
  %s176 = smov 12
  %v177 = vld [vmem:[%s175] ss:$16 sm:%s176]
  %vm178 = vcmask 1043458
  %v179 = vsel %vm178, %v177, %v174
  %s180 = scalar_lea.vmem %s0, 2
  %s181 = smov 48
  %v182 = vld [vmem:[%s180] ss:$16 sm:%s181]
  %vm183 = vcmask 1045508
  %v184 = vsel %vm183, %v182, %v179
  %s185 = scalar_lea.vmem %s0, 2
  %s186 = smov 192
  %v187 = vld [vmem:[%s185] ss:$16 sm:%s186]
  %vm188 = vcmask 1047558
  %v189 = vsel %vm188, %v187, %v184
  %190 = vrot.lane.b32.xlu0 %v189, 16
  %v191 = vpop.permute.xlu0 %190
  %vm192 = vcmask 195712
  %193 = vst.msk [vmem:[%s1] sm:$0xff] %vm192, %v191
  %s194 = scalar_lea.vmem %s0, 1
  %s195 = smov 3
  %v196 = vld [vmem:[%s194] ss:$16 sm:%s195]
  %s197 = scalar_lea.vmem %s0, 1
  %s198 = smov 12
  %v199 = vld [vmem:[%s197] ss:$16 sm:%s198]
  %vm200 = vcmask 1043458
  %v201 = vsel %vm200, %v199, %v196
  %s202 = scalar_lea.vmem %s0, 1
  %s203 = smov 48
  %v204 = vld [vmem:[%s202] ss:$16 sm:%s203]
  %vm205 = vcmask 1045508
  %v206 = vsel %vm205, %v204, %v201
  %s207 = scalar_lea.vmem %s0, 1
  %s208 = smov 192
  %v209 = vld [vmem:[%s207] ss:$16 sm:%s208]
  %vm210 = vcmask 1047558
  %v211 = vsel %vm210, %v209, %v206
  %212 = vrot.lane.b32.xlu0 %v211, 8
  %v213 = vpop.permute.xlu0 %212
  %vm214 = vcmask 130112
  %215 = vst.msk [vmem:[%s1] sm:$0xff] %vm214, %v213

// kernel: tile.19
$region0: #{tile.19}
  %s0 = inlined_call_operand.vmem [shape: f32[4,8,8], index: 0, kind: input, shape index: {}]
  %s1 = inlined_call_operand.vmem [shape: f32[32,8], index: 1, kind: output, shape index: {}]
  $region1: #{tile.19} parent=0
    #allocation0 [shape = 'u8[32768]{0}', space=vmem, size = 0x8000, scoped, tag = 'scoped mem for input reshape']
    %s3 = sshllo.u32 0, 4
    %s4 = smul.addr 4, 7
    %s5 = scalar_lea.vmem %s0, %s4
    %v6 = vld [vmem:[%s5] sm:%s3]
    %s7 = scalar_lea.vmem [#allocation0], 56
    %8 = vst [vmem:[%s7] sm:%s3] %v6
    %s9 = smul.addr 4, 6
    %s10 = scalar_lea.vmem %s0, %s9
    %v11 = vld [vmem:[%s10] sm:%s3]
    %s12 = scalar_lea.vmem [#allocation0], 48
    %13 = vst [vmem:[%s12] sm:%s3] %v11
    %s14 = smul.addr 4, 5
    %s15 = scalar_lea.vmem %s0, %s14
    %v16 = vld [vmem:[%s15] sm:%s3]
    %s17 = scalar_lea.vmem [#allocation0], 40
    %18 = vst [vmem:[%s17] sm:%s3] %v16
    %s19 = smul.addr 4, 4
    %s20 = scalar_lea.vmem %s0, %s19
    %v21 = vld [vmem:[%s20] sm:%s3]
    %s22 = scalar_lea.vmem [#allocation0], 32
    %23 = vst [vmem:[%s22] sm:%s3] %v21
    %s24 = smul.addr 4, 3
    %s25 = scalar_lea.vmem %s0, %s24
    %v26 = vld [vmem:[%s25] sm:%s3]
    %s27 = scalar_lea.vmem [#allocation0], 24
    %28 = vst [vmem:[%s27] sm:%s3] %v26
    %s29 = smul.addr 4, 2
    %s30 = scalar_lea.vmem %s0, %s29
    %v31 = vld [vmem:[%s30] sm:%s3]
    %s32 = scalar_lea.vmem [#allocation0], 16
    %33 = vst [vmem:[%s32] sm:%s3] %v31
    %s34 = scalar_lea.vmem %s0, 4
    %v35 = vld [vmem:[%s34] sm:%s3]
    %s36 = scalar_lea.vmem [#allocation0], 8
    %37 = vst [vmem:[%s36] sm:%s3] %v35
    %v38 = vld [vmem:[%s0] sm:%s3]
    %39 = vst [vmem:[#allocation0] sm:%s3] %v38
    %v40 = vld [vmem:[#allocation0] ss:$8 sm:$0xf]
    %v41 = vld [vmem:[#allocation0] ss:$8 sm:$0xf0]
    %vm42 = vcmask 1047556
    %v43 = vsel %vm42, %v41, %v40
    %vm44 = vcmask 64512
    %45 = vst.msk [vmem:[%s1] sm:$0xff] %vm44, %v43
    %s46 = scalar_lea.vmem [#allocation0], 3
    %v47 = vld [vmem:[%s46] ss:$8 sm:$0xf]
    %s48 = scalar_lea.vmem [#allocation0], 3
    %v49 = vld [vmem:[%s48] ss:$8 sm:$0xf0]
    %vm50 = vcmask 1047556
    %v51 = vsel %vm50, %v49, %v47
    %52 = vrot.lane.b32.xlu0 %v51, 24
    %v53 = vpop.permute.xlu0 %52
    %vm54 = vcmask 261312
    %55 = vst.msk [vmem:[%s1] sm:$0xff] %vm54, %v53
    %s56 = scalar_lea.vmem [#allocation0], 2
    %v57 = vld [vmem:[%s56] ss:$8 sm:$0xf]
    %s58 = scalar_lea.vmem [#allocation0], 2
    %v59 = vld [vmem:[%s58] ss:$8 sm:$0xf0]
    %vm60 = vcmask 1047556
    %v61 = vsel %vm60, %v59, %v57
    %62 = vrot.lane.b32.xlu0 %v61, 16
    %v63 = vpop.permute.xlu0 %62
    %vm64 = vcmask 195712
    %65 = vst.msk [vmem:[%s1] sm:$0xff] %vm64, %v63
    %s66 = scalar_lea.vmem [#allocation0], 1
    %v67 = vld [vmem:[%s66] ss:$8 sm:$0xf]
    %s68 = scalar_lea.vmem [#allocation0], 1
    %v69 = vld [vmem:[%s68] ss:$8 sm:$0xf0]
    %vm70 = vcmask 1047556
    %v71 = vsel %vm70, %v69, %v67
    %72 = vrot.lane.b32.xlu0 %v71, 8
    %v73 = vpop.permute.xlu0 %72
    %vm74 = vcmask 130112
    %75 = vst.msk [vmem:[%s1] sm:$0xff] %vm74, %v73

// kernel: double_conv_pallas.1
$region0: #{double_conv_pallas.1}
  #allocation0 [shape = 'u32[]', space=smem, size = 0x4, offset = 0x4, fixed_abs, tag = 'smem constant byte address 0x4 - core index']
  #allocation1 [shape = 'u32[144,128]{1,0:T(1,128)}', space=vmem, size = 0x12000, scoped, tag = 'internal scratch']
  %s0 = inlined_call_operand.vmem [shape: f32[2,18,64], index: 0, kind: input, shape index: {}]
  %s1 = inlined_call_operand.vmem [shape: f32[9,64,80], index: 1, kind: input, shape index: {}]
  %s2 = inlined_call_operand.vmem [shape: f32[1,8], index: 2, kind: input, shape index: {}]
  %s3 = inlined_call_operand.vmem [shape: f32[1,8], index: 3, kind: input, shape index: {}]
  %s4 = inlined_call_operand.vmem [shape: f32[80,8], index: 4, kind: input, shape index: {}]
  %s5 = inlined_call_operand.vmem [shape: f32[8,80], index: 5, kind: input, shape index: {}]
  %s6 = inlined_call_operand.vmem [shape: f32[9,80,32], index: 6, kind: input, shape index: {}]
  %s7 = inlined_call_operand.vmem [shape: f32[1,8], index: 7, kind: input, shape index: {}]
  %s8 = inlined_call_operand.vmem [shape: f32[1,8], index: 8, kind: input, shape index: {}]
  %s9 = inlined_call_operand.vmem [shape: f32[32,8], index: 9, kind: input, shape index: {}]
  %s10 = inlined_call_operand.vmem [shape: f32[8,32], index: 10, kind: input, shape index: {}]
  %s11 = inlined_call_operand.vmem [shape: f32[2,4,32], index: 11, kind: output, shape index: {}]
  %s12 = sld [smem:[#allocation0]]
  $region54: #{double_conv_pallas.1} parent=0
    _
  %s14 = ssub.s32 1, %s12
  %s15 = scalar_select 0, %s14, %s12
  // Predicated region
  $region2: #{double_conv_pallas.1} parent=0 // pred_check
    _
  $region3: #{double_conv_pallas.1} parent=0 // pred_check_branch
    %17 = sbr.rel (0) target = $region5
  $region4: #{double_conv_pallas.1} parent=0 // pred_region
    _
  $region5: #{double_conv_pallas.1} parent=0 // pred_fallthru
    _
  // Predicated region
  $region6: #{double_conv_pallas.1} parent=0 // pred_check
    _
  $region7: #{double_conv_pallas.1} parent=0 // pred_check_branch
    %19 = sbr.rel (0) target = $region9
  $region8: #{double_conv_pallas.1} parent=0 // pred_region
    _
  $region9: #{double_conv_pallas.1} parent=0 // pred_fallthru
    _
  // Predicated region
  $region10: #{double_conv_pallas.1} parent=0 // pred_check
    _
  $region11: #{double_conv_pallas.1} parent=0 // pred_check_branch
    %21 = sbr.rel (0) target = $region13
  $region12: #{double_conv_pallas.1} parent=0 // pred_region
    _
  $region13: #{double_conv_pallas.1} parent=0 // pred_fallthru
    _
  // Predicated region
  $region14: #{double_conv_pallas.1} parent=0 // pred_check
    _
  $region15: #{double_conv_pallas.1} parent=0 // pred_check_branch
    %23 = sbr.rel (0) target = $region17
  $region16: #{double_conv_pallas.1} parent=0 // pred_region
    _
  $region17: #{double_conv_pallas.1} parent=0 // pred_fallthru
    _
  // Predicated region
  $region18: #{double_conv_pallas.1} parent=0 // pred_check
    _
  $region19: #{double_conv_pallas.1} parent=0 // pred_check_branch
    %25 = sbr.rel (0) target = $region21
  $region20: #{double_conv_pallas.1} parent=0 // pred_region
    _
  $region21: #{double_conv_pallas.1} parent=0 // pred_fallthru
    _
  // Predicated region
  $region22: #{double_conv_pallas.1} parent=0 // pred_check
    _
  $region23: #{double_conv_pallas.1} parent=0 // pred_check_branch
    %27 = sbr.rel (0) target = $region25
  $region24: #{double_conv_pallas.1} parent=0 // pred_region
    _
  $region25: #{double_conv_pallas.1} parent=0 // pred_fallthru
    _
  // Predicated region
  $region26: #{double_conv_pallas.1} parent=0 // pred_check
    _
  $region27: #{double_conv_pallas.1} parent=0 // pred_check_branch
    %29 = sbr.rel (0) target = $region29
  $region28: #{double_conv_pallas.1} parent=0 // pred_region
    _
  $region29: #{double_conv_pallas.1} parent=0 // pred_fallthru
    _
  // Predicated region
  $region30: #{double_conv_pallas.1} parent=0 // pred_check
    _
  $region31: #{double_conv_pallas.1} parent=0 // pred_check_branch
    %31 = sbr.rel (0) target = $region33
  $region32: #{double_conv_pallas.1} parent=0 // pred_region
    _
  $region33: #{double_conv_pallas.1} parent=0 // pred_fallthru
    _
  // Predicated region
  $region34: #{double_conv_pallas.1} parent=0 // pred_check
    _
  $region35: #{double_conv_pallas.1} parent=0 // pred_check_branch
    %33 = sbr.rel (0) target = $region37
  $region36: #{double_conv_pallas.1} parent=0 // pred_region
    _
  $region37: #{double_conv_pallas.1} parent=0 // pred_fallthru
    _
  // Predicated region
  $region38: #{double_conv_pallas.1} parent=0 // pred_check
    _
  $region39: #{double_conv_pallas.1} parent=0 // pred_check_branch
    %35 = sbr.rel (0) target = $region41
  $region40: #{double_conv_pallas.1} parent=0 // pred_region
    _
  $region41: #{double_conv_pallas.1} parent=0 // pred_fallthru
    _
  // Predicated region
  $region42: #{double_conv_pallas.1} parent=0 // pred_check
    _
  $region43: #{double_conv_pallas.1} parent=0 // pred_check_branch
    %37 = sbr.rel (0) target = $region45
  $region44: #{double_conv_pallas.1} parent=0 // pred_region
    _
  $region45: #{double_conv_pallas.1} parent=0 // pred_fallthru
    _
  %v38 = vld [vmem:[%s2] sm:$0x1]
  %v39 = vld [vmem:[%s3] sm:$0x1]
  %v40 = vld [vmem:[%s0] sm:$0xff]
  %v41 = vld [vmem:[%s0 + $0x8] sm:$0x3]
  %v42 = vld [vmem:[%s1] sm:$0xff]
  %v43 = vld [vmem:[%s1 + $0x8] sm:$0xff]
  %v44 = vld [vmem:[%s1 + $0x10] sm:$0xff]
  %v45 = vld [vmem:[%s1 + $0x18] sm:$0xff]
  %v46 = vld [vmem:[%s1 + $0x20] sm:$0xff]
  %v47 = vld [vmem:[%s1 + $0x28] sm:$0xff]
  %v48 = vld [vmem:[%s1 + $0x30] sm:$0xff]
  %v49 = vld [vmem:[%s1 + $0x38] sm:$0xff]
  %v50 = vld [vmem:[%s0 + $0x1] sm:$0xff]
  %v51 = vld [vmem:[%s0 + $0x9] sm:$0x3]
  %s52 = scalar_lea.vmem %s1, 64
  %v53 = vld [vmem:[%s52] sm:$0xff]
  %v54 = vld [vmem:[%s52 + $0x8] sm:$0xff]
  %v55 = vld [vmem:[%s52 + $0x10] sm:$0xff]
  %v56 = vld [vmem:[%s52 + $0x18] sm:$0xff]
  %v57 = vld [vmem:[%s52 + $0x20] sm:$0xff]
  %v58 = vld [vmem:[%s52 + $0x28] sm:$0xff]
  %v59 = vld [vmem:[%s52 + $0x30] sm:$0xff]
  %v60 = vld [vmem:[%s52 + $0x38] sm:$0xff]
  %vm61 = vcmask 523264
  %v63 = vsel %vm61, %v50, 0
  %v66 = vsel %vm61, %v51, 0
  %68 = vmatprep.subr.mxu0 0.0
  %69 = vmatpush1.msra.mxu0 %v53
  %70 = vmatprep.subr.mxu0 0.0
  %71 = vmatpush1.msra.mxu0 %v54
  %72 = vmatprep.subr.mxu0 0.0
  %73 = vmatpush1.msra.mxu0 %v55
  %74 = vmatprep.subr.mxu0 0.0
  %75 = vmatpush1.msra.mxu0 %v56
  %76 = vmatprep.subr.mxu0 0.0
  %77 = vmatpush1.msra.mxu0 %v57
  %78 = vmatprep.subr.mxu0 0.0
  %79 = vmatpush1.msra.mxu0 %v58
  %80 = vmatprep.subr.mxu0 0.0
  %81 = vmatpush1.msra.mxu0 %v59
  %82 = vmatprep.subr.mxu0 0.0
  %83 = vmatpush1.msra.mxu0 %v60
  %84 = vmatprep.subr.mxu0 0.0
  %85 = vmatpush1.msra.mxu0 0.0
  %86 = vmatprep.subr.mxu0 0.0
  %87 = vmatpush1.msra.mxu0 0.0
  %88 = vmatprep.subr.mxu0 0.0
  %89 = vmatpush1.msra.mxu0 0.0
  %90 = vmatprep.subr.mxu0 0.0
  %91 = vmatpush1.msra.mxu0 0.0
  %92 = vmatprep.subr.mxu0 0.0
  %93 = vmatpush1.msra.mxu0 0.0
  %94 = vmatprep.subr.mxu0 0.0
  %95 = vmatpush1.msra.mxu0 0.0
  %96 = vmatprep.subr.mxu0 0.0
  %97 = vmatpush1.msra.mxu0 0.0
  %98 = vmatprep.subr.mxu0 0.0
  %99 = vmatpush1.msra.mxu0 0.0
  %100 = vmatprep.subr.mxu0 0.0
  %101 = vmatpush1.msra.mxu0 0.0
  %102 = vmatprep.subr.mxu0 0.0
  %103 = vmatpush1.msra.mxu0 0.0
  %104 = vmatprep.subr.mxu0 0.0
  %105 = vmatpush1.msra.mxu0 0.0
  %106 = vmatprep.subr.mxu0 0.0
  %107 = vmatpush1.msra.mxu0 0.0
  %108 = vmatprep.subr.mxu0 0.0
  %109 = vmatpush1.msra.mxu0 0.0
  %110 = vmatprep.subr.mxu0 0.0
  %111 = vmatpush1.msra.mxu0 0.0
  %112 = vmatprep.subr.mxu0 0.0
  %113 = vmatpush1.msra.mxu0 0.0
  %114 = vmatprep.subr.mxu0 0.0
  %115 = vmatpush1.msra.mxu0 0.0
  %116 = vmatprep.subr.mxu0 0.0
  %117 = vmatpush1.msra.mxu0 0.0
  %118 = vmatprep.subr.mxu0 0.0
  %119 = vmatpush1.msra.mxu0 0.0
  %120 = vmatprep.subr.mxu0 0.0
  %121 = vmatpush1.msra.mxu0 0.0
  %122 = vmatprep.subr.mxu0 0.0
  %123 = vmatpush1.msra.mxu0 0.0
  %124 = vmatprep.subr.mxu0 0.0
  %125 = vmatpush1.msra.mxu0 0.0
  %126 = vmatprep.subr.mxu0 0.0
  %127 = vmatpush1.msra.mxu0 0.0
  %128 = vmatprep.subr.mxu0 0.0
  %129 = vmatpush1.msra.mxu0 0.0
  %130 = vmatprep.subr.mxu0 0.0
  %131 = vmatpush1.msra.mxu0 0.0
  %132 = vmatprep.mubr.f32.mxu0 0.0
  %133 = vmatmul.mubr.f32.gmra.mrb[0].mxu0 %v63
  %v134 = vpop.f32.mrb[0].mxu0
  %v135 = vadd.f32 0.0, %v134
  %v136 = vpop.f32.mrb[0].mxu0
  %137 = vmatprep.mubr.f32.mxu0 0.0
  %138 = vmatmul.mubr.f32.gmra.mrb[0].mxu0 %v66
  %v139 = vpop.f32.mrb[0].mxu0
  %v140 = vadd.f32 0.0, %v139
  %v141 = vpop.f32.mrb[0].mxu0
  %142 = vdwg.mxu0
  %v144 = vsel %vm61, %v40, 0
  %v147 = vsel %vm61, %v41, 0
  %149 = vmatprep.subr.mxu0 0.0
  %150 = vmatpush1.msra.mxu0 %v42
  %151 = vmatprep.subr.mxu0 0.0
  %152 = vmatpush1.msra.mxu0 %v43
  %153 = vmatprep.subr.mxu0 0.0
  %154 = vmatpush1.msra.mxu0 %v44
  %155 = vmatprep.subr.mxu0 0.0
  %156 = vmatpush1.msra.mxu0 %v45
  %157 = vmatprep.subr.mxu0 0.0
  %158 = vmatpush1.msra.mxu0 %v46
  %159 = vmatprep.subr.mxu0 0.0
  %160 = vmatpush1.msra.mxu0 %v47
  %161 = vmatprep.subr.mxu0 0.0
  %162 = vmatpush1.msra.mxu0 %v48
  %163 = vmatprep.subr.mxu0 0.0
  %164 = vmatpush1.msra.mxu0 %v49
  %165 = vmatprep.subr.mxu0 0.0
  %166 = vmatpush1.msra.mxu0 0.0
  %167 = vmatprep.subr.mxu0 0.0
  %168 = vmatpush1.msra.mxu0 0.0
  %169 = vmatprep.subr.mxu0 0.0
  %170 = vmatpush1.msra.mxu0 0.0
  %171 = vmatprep.subr.mxu0 0.0
  %172 = vmatpush1.msra.mxu0 0.0
  %173 = vmatprep.subr.mxu0 0.0
  %174 = vmatpush1.msra.mxu0 0.0
  %175 = vmatprep.subr.mxu0 0.0
  %176 = vmatpush1.msra.mxu0 0.0
  %177 = vmatprep.subr.mxu0 0.0
  %178 = vmatpush1.msra.mxu0 0.0
  %179 = vmatprep.subr.mxu0 0.0
  %180 = vmatpush1.msra.mxu0 0.0
  %181 = vmatprep.subr.mxu0 0.0
  %182 = vmatpush1.msra.mxu0 0.0
  %183 = vmatprep.subr.mxu0 0.0
  %184 = vmatpush1.msra.mxu0 0.0
  %185 = vmatprep.subr.mxu0 0.0
  %186 = vmatpush1.msra.mxu0 0.0
  %187 = vmatprep.subr.mxu0 0.0
  %188 = vmatpush1.msra.mxu0 0.0
  %189 = vmatprep.subr.mxu0 0.0
  %190 = vmatpush1.msra.mxu0 0.0
  %191 = vmatprep.subr.mxu0 0.0
  %192 = vmatpush1.msra.mxu0 0.0
  %193 = vmatprep.subr.mxu0 0.0
  %194 = vmatpush1.msra.mxu0 0.0
  %195 = vmatprep.subr.mxu0 0.0
  %196 = vmatpush1.msra.mxu0 0.0
  %197 = vmatprep.subr.mxu0 0.0
  %198 = vmatpush1.msra.mxu0 0.0
  %199 = vmatprep.subr.mxu0 0.0
  %200 = vmatpush1.msra.mxu0 0.0
  %201 = vmatprep.subr.mxu0 0.0
  %202 = vmatpush1.msra.mxu0 0.0
  %203 = vmatprep.subr.mxu0 0.0
  %204 = vmatpush1.msra.mxu0 0.0
  %205 = vmatprep.subr.mxu0 0.0
  %206 = vmatpush1.msra.mxu0 0.0
  %207 = vmatprep.subr.mxu0 0.0
  %208 = vmatpush1.msra.mxu0 0.0
  %209 = vmatprep.subr.mxu0 0.0
  %210 = vmatpush1.msra.mxu0 0.0
  %211 = vmatprep.subr.mxu0 0.0
  %212 = vmatpush1.msra.mxu0 0.0
  %213 = vmatprep.mubr.f32.mxu0 0.0
  %214 = vmatmul.mubr.f32.gmra.mrb[0].mxu0 %v144
  %v215 = vpop.f32.mrb[0].mxu0
  %v216 = vadd.f32 %v135, %v215
  %v217 = vpop.f32.mrb[0].mxu0
  %218 = vmatprep.mubr.f32.mxu0 0.0
  %219 = vmatmul.mubr.f32.gmra.mrb[0].mxu0 %v147
  %v220 = vpop.f32.mrb[0].mxu0
  %v221 = vadd.f32 %v140, %v220
  %v222 = vpop.f32.mrb[0].mxu0
  %223 = vdwg.mxu0
  %v224 = vld [vmem:[%s0 + $0x2] sm:$0xff]
  %v225 = vld [vmem:[%s0 + $0xa] sm:$0x3]
  %s226 = scalar_lea.vmem %s1, 128
  %v227 = vld [vmem:[%s226] sm:$0xff]
  %v228 = vld [vmem:[%s226 + $0x8] sm:$0xff]
  %v229 = vld [vmem:[%s226 + $0x10] sm:$0xff]
  %v230 = vld [vmem:[%s226 + $0x18] sm:$0xff]
  %v231 = vld [vmem:[%s226 + $0x20] sm:$0xff]
  %v232 = vld [vmem:[%s226 + $0x28] sm:$0xff]
  %v233 = vld [vmem:[%s226 + $0x30] sm:$0xff]
  %v234 = vld [vmem:[%s226 + $0x38] sm:$0xff]
  %v236 = vsel %vm61, %v224, 0
  %v239 = vsel %vm61, %v225, 0
  %241 = vmatprep.subr.mxu0 0.0
  %242 = vmatpush1.msra.mxu0 %v227
  %243 = vmatprep.subr.mxu0 0.0
  %244 = vmatpush1.msra.mxu0 %v228
  %245 = vmatprep.subr.mxu0 0.0
  %246 = vmatpush1.msra.mxu0 %v229
  %247 = vmatprep.subr.mxu0 0.0
  %248 = vmatpush1.msra.mxu0 %v230
  %249 = vmatprep.subr.mxu0 0.0
  %250 = vmatpush1.msra.mxu0 %v231
  %251 = vmatprep.subr.mxu0 0.0
  %252 = vmatpush1.msra.mxu0 %v232
  %253 = vmatprep.subr.mxu0 0.0
  %254 = vmatpush1.msra.mxu0 %v233
  %255 = vmatprep.subr.mxu0 0.0
  %256 = vmatpush1.msra.mxu0 %v234
  %257 = vmatprep.subr.mxu0 0.0
  %258 = vmatpush1.msra.mxu0 0.0
  %259 = vmatprep.subr.mxu0 0.0
  %260 = vmatpush1.msra.mxu0 0.0
  %261 = vmatprep.subr.mxu0 0.0
  %262 = vmatpush1.msra.mxu0 0.0
  %263 = vmatprep.subr.mxu0 0.0
  %264 = vmatpush1.msra.mxu0 0.0
  %265 = vmatprep.subr.mxu0 0.0
  %266 = vmatpush1.msra.mxu0 0.0
  %267 = vmatprep.subr.mxu0 0.0
  %268 = vmatpush1.msra.mxu0 0.0
  %269 = vmatprep.subr.mxu0 0.0
  %270 = vmatpush1.msra.mxu0 0.0
  %271 = vmatprep.subr.mxu0 0.0
  %272 = vmatpush1.msra.mxu0 0.0
  %273 = vmatprep.subr.mxu0 0.0
  %274 = vmatpush1.msra.mxu0 0.0
  %275 = vmatprep.subr.mxu0 0.0
  %276 = vmatpush1.msra.mxu0 0.0
  %277 = vmatprep.subr.mxu0 0.0
  %278 = vmatpush1.msra.mxu0 0.0
  %279 = vmatprep.subr.mxu0 0.0
  %280 = vmatpush1.msra.mxu0 0.0
  %281 = vmatprep.subr.mxu0 0.0
  %282 = vmatpush1.msra.mxu0 0.0
  %283 = vmatprep.subr.mxu0 0.0
  %284 = vmatpush1.msra.mxu0 0.0
  %285 = vmatprep.subr.mxu0 0.0
  %286 = vmatpush1.msra.mxu0 0.0
  %287 = vmatprep.subr.mxu0 0.0
  %288 = vmatpush1.msra.mxu0 0.0
  %289 = vmatprep.subr.mxu0 0.0
  %290 = vmatpush1.msra.mxu0 0.0
  %291 = vmatprep.subr.mxu0 0.0
  %292 = vmatpush1.msra.mxu0 0.0
  %293 = vmatprep.subr.mxu0 0.0
  %294 = vmatpush1.msra.mxu0 0.0
  %295 = vmatprep.subr.mxu0 0.0
  %296 = vmatpush1.msra.mxu0 0.0
  %297 = vmatprep.subr.mxu0 0.0
  %298 = vmatpush1.msra.mxu0 0.0
  %299 = vmatprep.subr.mxu0 0.0
  %300 = vmatpush1.msra.mxu0 0.0
  %301 = vmatprep.subr.mxu0 0.0
  %302 = vmatpush1.msra.mxu0 0.0
  %303 = vmatprep.subr.mxu0 0.0
  %304 = vmatpush1.msra.mxu0 0.0
  %305 = vmatprep.mubr.f32.mxu0 0.0
  %306 = vmatmul.mubr.f32.gmra.mrb[0].mxu0 %v236
  %v307 = vpop.f32.mrb[0].mxu0
  %v308 = vadd.f32 0.0, %v307
  %v309 = vpop.f32.mrb[0].mxu0
  %310 = vmatprep.mubr.f32.mxu0 0.0
  %311 = vmatmul.mubr.f32.gmra.mrb[0].mxu0 %v239
  %v312 = vpop.f32.mrb[0].mxu0
  %v313 = vadd.f32 0.0, %v312
  %v314 = vpop.f32.mrb[0].mxu0
  %315 = vdwg.mxu0
  %v316 = vadd.f32 %v216, %v308
  %v317 = vadd.f32 %v221, %v313
  %v318 = vld [vmem:[%s0 + $0x3] sm:$0xff]
  %v319 = vld [vmem:[%s0 + $0xb] sm:$0x3]
  %s320 = scalar_lea.vmem %s1, 192
  %v321 = vld [vmem:[%s320] sm:$0xff]
  %v322 = vld [vmem:[%s320 + $0x8] sm:$0xff]
  %v323 = vld [vmem:[%s320 + $0x10] sm:$0xff]
  %v324 = vld [vmem:[%s320 + $0x18] sm:$0xff]
  %v325 = vld [vmem:[%s320 + $0x20] sm:$0xff]
  %v326 = vld [vmem:[%s320 + $0x28] sm:$0xff]
  %v327 = vld [vmem:[%s320 + $0x30] sm:$0xff]
  %v328 = vld [vmem:[%s320 + $0x38] sm:$0xff]
  %v330 = vsel %vm61, %v318, 0
  %v333 = vsel %vm61, %v319, 0
  %335 = vmatprep.subr.mxu0 0.0
  %336 = vmatpush1.msra.mxu0 %v321
  %337 = vmatprep.subr.mxu0 0.0
  %338 = vmatpush1.msra.mxu0 %v322
  %339 = vmatprep.subr.mxu0 0.0
  %340 = vmatpush1.msra.mxu0 %v323
  %341 = vmatprep.subr.mxu0 0.0
  %342 = vmatpush1.msra.mxu0 %v324
  %343 = vmatprep.subr.mxu0 0.0
  %344 = vmatpush1.msra.mxu0 %v325
  %345 = vmatprep.subr.mxu0 0.0
  %346 = vmatpush1.msra.mxu0 %v326
  %347 = vmatprep.subr.mxu0 0.0
  %348 = vmatpush1.msra.mxu0 %v327
  %349 = vmatprep.subr.mxu0 0.0
  %350 = vmatpush1.msra.mxu0 %v328
  %351 = vmatprep.subr.mxu0 0.0
  %352 = vmatpush1.msra.mxu0 0.0
  %353 = vmatprep.subr.mxu0 0.0
  %354 = vmatpush1.msra.mxu0 0.0
  %355 = vmatprep.subr.mxu0 0.0
  %356 = vmatpush1.msra.mxu0 0.0
  %357 = vmatprep.subr.mxu0 0.0
  %358 = vmatpush1.msra.mxu0 0.0
  %359 = vmatprep.subr.mxu0 0.0
  %360 = vmatpush1.msra.mxu0 0.0
  %361 = vmatprep.subr.mxu0 0.0
  %362 = vmatpush1.msra.mxu0 0.0
  %363 = vmatprep.subr.mxu0 0.0
  %364 = vmatpush1.msra.mxu0 0.0
  %365 = vmatprep.subr.mxu0 0.0
  %366 = vmatpush1.msra.mxu0 0.0
  %367 = vmatprep.subr.mxu0 0.0
  %368 = vmatpush1.msra.mxu0 0.0
  %369 = vmatprep.subr.mxu0 0.0
  %370 = vmatpush1.msra.mxu0 0.0
  %371 = vmatprep.subr.mxu0 0.0
  %372 = vmatpush1.msra.mxu0 0.0
  %373 = vmatprep.subr.mxu0 0.0
  %374 = vmatpush1.msra.mxu0 0.0
  %375 = vmatprep.subr.mxu0 0.0
  %376 = vmatpush1.msra.mxu0 0.0
  %377 = vmatprep.subr.mxu0 0.0
  %378 = vmatpush1.msra.mxu0 0.0
  %379 = vmatprep.subr.mxu0 0.0
  %380 = vmatpush1.msra.mxu0 0.0
  %381 = vmatprep.subr.mxu0 0.0
  %382 = vmatpush1.msra.mxu0 0.0
  %383 = vmatprep.subr.mxu0 0.0
  %384 = vmatpush1.msra.mxu0 0.0
  %385 = vmatprep.subr.mxu0 0.0
  %386 = vmatpush1.msra.mxu0 0.0
  %387 = vmatprep.subr.mxu0 0.0
  %388 = vmatpush1.msra.mxu0 0.0
  %389 = vmatprep.subr.mxu0 0.0
  %390 = vmatpush1.msra.mxu0 0.0
  %391 = vmatprep.subr.mxu0 0.0
  %392 = vmatpush1.msra.mxu0 0.0
  %393 = vmatprep.subr.mxu0 0.0
  %394 = vmatpush1.msra.mxu0 0.0
  %395 = vmatprep.subr.mxu0 0.0
  %396 = vmatpush1.msra.mxu0 0.0
  %397 = vmatprep.subr.mxu0 0.0
  %398 = vmatpush1.msra.mxu0 0.0
  %399 = vmatprep.mubr.f32.mxu0 0.0
  %400 = vmatmul.mubr.f32.gmra.mrb[0].mxu0 %v330
  %v401 = vpop.f32.mrb[0].mxu0
  %v402 = vadd.f32 0.0, %v401
  %v403 = vpop.f32.mrb[0].mxu0
  %404 = vmatprep.mubr.f32.mxu0 0.0
  %405 = vmatmul.mubr.f32.gmra.mrb[0].mxu0 %v333
  %v406 = vpop.f32.mrb[0].mxu0
  %v407 = vadd.f32 0.0, %v406
  %v408 = vpop.f32.mrb[0].mxu0
  %409 = vdwg.mxu0
  %v410 = vadd.f32 %v316, %v402
  %v411 = vadd.f32 %v317, %v407
  %v412 = vld [vmem:[%s0 + $0x4] sm:$0xff]
  %v413 = vld [vmem:[%s0 + $0xc] sm:$0x3]
  %s414 = scalar_lea.vmem %s1, 256
  %v415 = vld [vmem:[%s414] sm:$0xff]
  %v416 = vld [vmem:[%s414 + $0x8] sm:$0xff]
  %v417 = vld [vmem:[%s414 + $0x10] sm:$0xff]
  %v418 = vld [vmem:[%s414 + $0x18] sm:$0xff]
  %v419 = vld [vmem:[%s414 + $0x20] sm:$0xff]
  %v420 = vld [vmem:[%s414 + $0x28] sm:$0xff]
  %v421 = vld [vmem:[%s414 + $0x30] sm:$0xff]
  %v422 = vld [vmem:[%s414 + $0x38] sm:$0xff]
  %v424 = vsel %vm61, %v412, 0
  %v427 = vsel %vm61, %v413, 0
  %429 = vmatprep.subr.mxu0 0.0
  %430 = vmatpush1.msra.mxu0 %v415
  %431 = vmatprep.subr.mxu0 0.0
  %432 = vmatpush1.msra.mxu0 %v416
  %433 = vmatprep.subr.mxu0 0.0
  %434 = vmatpush1.msra.mxu0 %v417
  %435 = vmatprep.subr.mxu0 0.0
  %436 = vmatpush1.msra.mxu0 %v418
  %437 = vmatprep.subr.mxu0 0.0
  %438 = vmatpush1.msra.mxu0 %v419
  %439 = vmatprep.subr.mxu0 0.0
  %440 = vmatpush1.msra.mxu0 %v420
  %441 = vmatprep.subr.mxu0 0.0
  %442 = vmatpush1.msra.mxu0 %v421
  %443 = vmatprep.subr.mxu0 0.0
  %444 = vmatpush1.msra.mxu0 %v422
  %445 = vmatprep.subr.mxu0 0.0
  %446 = vmatpush1.msra.mxu0 0.0
  %447 = vmatprep.subr.mxu0 0.0
  %448 = vmatpush1.msra.mxu0 0.0
  %449 = vmatprep.subr.mxu0 0.0
  %450 = vmatpush1.msra.mxu0 0.0
  %451 = vmatprep.subr.mxu0 0.0
  %452 = vmatpush1.msra.mxu0 0.0
  %453 = vmatprep.subr.mxu0 0.0
  %454 = vmatpush1.msra.mxu0 0.0
  %455 = vmatprep.subr.mxu0 0.0
  %456 = vmatpush1.msra.mxu0 0.0
  %457 = vmatprep.subr.mxu0 0.0
  %458 = vmatpush1.msra.mxu0 0.0
  %459 = vmatprep.subr.mxu0 0.0
  %460 = vmatpush1.msra.mxu0 0.0
  %461 = vmatprep.subr.mxu0 0.0
  %462 = vmatpush1.msra.mxu0 0.0
  %463 = vmatprep.subr.mxu0 0.0
  %464 = vmatpush1.msra.mxu0 0.0
  %465 = vmatprep.subr.mxu0 0.0
  %466 = vmatpush1.msra.mxu0 0.0
  %467 = vmatprep.subr.mxu0 0.0
  %468 = vmatpush1.msra.mxu0 0.0
  %469 = vmatprep.subr.mxu0 0.0
  %470 = vmatpush1.msra.mxu0 0.0
  %471 = vmatprep.subr.mxu0 0.0
  %472 = vmatpush1.msra.mxu0 0.0
  %473 = vmatprep.subr.mxu0 0.0
  %474 = vmatpush1.msra.mxu0 0.0
  %475 = vmatprep.subr.mxu0 0.0
  %476 = vmatpush1.msra.mxu0 0.0
  %477 = vmatprep.subr.mxu0 0.0
  %478 = vmatpush1.msra.mxu0 0.0
  %479 = vmatprep.subr.mxu0 0.0
  %480 = vmatpush1.msra.mxu0 0.0
  %481 = vmatprep.subr.mxu0 0.0
  %482 = vmatpush1.msra.mxu0 0.0
  %483 = vmatprep.subr.mxu0 0.0
  %484 = vmatpush1.msra.mxu0 0.0
  %485 = vmatprep.subr.mxu0 0.0
  %486 = vmatpush1.msra.mxu0 0.0
  %487 = vmatprep.subr.mxu0 0.0
  %488 = vmatpush1.msra.mxu0 0.0
  %489 = vmatprep.subr.mxu0 0.0
  %490 = vmatpush1.msra.mxu0 0.0
  %491 = vmatprep.subr.mxu0 0.0
  %492 = vmatpush1.msra.mxu0 0.0
  %493 = vmatprep.mubr.f32.mxu0 0.0
  %494 = vmatmul.mubr.f32.gmra.mrb[0].mxu0 %v424
  %v495 = vpop.f32.mrb[0].mxu0
  %v496 = vadd.f32 0.0, %v495
  %v497 = vpop.f32.mrb[0].mxu0
  %498 = vmatprep.mubr.f32.mxu0 0.0
  %499 = vmatmul.mubr.f32.gmra.mrb[0].mxu0 %v427
  %v500 = vpop.f32.mrb[0].mxu0
  %v501 = vadd.f32 0.0, %v500
  %v502 = vpop.f32.mrb[0].mxu0
  %503 = vdwg.mxu0
  %v504 = vadd.f32 %v410, %v496
  %v505 = vadd.f32 %v411, %v501
  %v506 = vld [vmem:[%s0 + $0x5] sm:$0xff]
  %v507 = vld [vmem:[%s0 + $0xd] sm:$0x3]
  %s508 = scalar_lea.vmem %s1, 320
  %v509 = vld [vmem:[%s508] sm:$0xff]
  %v510 = vld [vmem:[%s508 + $0x8] sm:$0xff]
  %v511 = vld [vmem:[%s508 + $0x10] sm:$0xff]
  %v512 = vld [vmem:[%s508 + $0x18] sm:$0xff]
  %v513 = vld [vmem:[%s508 + $0x20] sm:$0xff]
  %v514 = vld [vmem:[%s508 + $0x28] sm:$0xff]
  %v515 = vld [vmem:[%s508 + $0x30] sm:$0xff]
  %v516 = vld [vmem:[%s508 + $0x38] sm:$0xff]
  %v518 = vsel %vm61, %v506, 0
  %v521 = vsel %vm61, %v507, 0
  %523 = vmatprep.subr.mxu0 0.0
  %524 = vmatpush1.msra.mxu0 %v509
  %525 = vmatprep.subr.mxu0 0.0
  %526 = vmatpush1.msra.mxu0 %v510
  %527 = vmatprep.subr.mxu0 0.0
  %528 = vmatpush1.msra.mxu0 %v511
  %529 = vmatprep.subr.mxu0 0.0
  %530 = vmatpush1.msra.mxu0 %v512
  %531 = vmatprep.subr.mxu0 0.0
  %532 = vmatpush1.msra.mxu0 %v513
  %533 = vmatprep.subr.mxu0 0.0
  %534 = vmatpush1.msra.mxu0 %v514
  %535 = vmatprep.subr.mxu0 0.0
  %536 = vmatpush1.msra.mxu0 %v515
  %537 = vmatprep.subr.mxu0 0.0
  %538 = vmatpush1.msra.mxu0 %v516
  %539 = vmatprep.subr.mxu0 0.0
  %540 = vmatpush1.msra.mxu0 0.0
  %541 = vmatprep.subr.mxu0 0.0
  %542 = vmatpush1.msra.mxu0 0.0
  %543 = vmatprep.subr.mxu0 0.0
  %544 = vmatpush1.msra.mxu0 0.0
  %545 = vmatprep.subr.mxu0 0.0
  %546 = vmatpush1.msra.mxu0 0.0
  %547 = vmatprep.subr.mxu0 0.0
  %548 = vmatpush1.msra.mxu0 0.0
  %549 = vmatprep.subr.mxu0 0.0
  %550 = vmatpush1.msra.mxu0 0.0
  %551 = vmatprep.subr.mxu0 0.0
  %552 = vmatpush1.msra.mxu0 0.0
  %553 = vmatprep.subr.mxu0 0.0
  %554 = vmatpush1.msra.mxu0 0.0
  %555 = vmatprep.subr.mxu0 0.0
  %556 = vmatpush1.msra.mxu0 0.0
  %557 = vmatprep.subr.mxu0 0.0
  %558 = vmatpush1.msra.mxu0 0.0
  %559 = vmatprep.subr.mxu0 0.0
  %560 = vmatpush1.msra.mxu0 0.0
  %561 = vmatprep.subr.mxu0 0.0
  %562 = vmatpush1.msra.mxu0 0.0
  %563 = vmatprep.subr.mxu0 0.0
  %564 = vmatpush1.msra.mxu0 0.0
  %565 = vmatprep.subr.mxu0 0.0
  %566 = vmatpush1.msra.mxu0 0.0
  %567 = vmatprep.subr.mxu0 0.0
  %568 = vmatpush1.msra.mxu0 0.0
  %569 = vmatprep.subr.mxu0 0.0
  %570 = vmatpush1.msra.mxu0 0.0
  %571 = vmatprep.subr.mxu0 0.0
  %572 = vmatpush1.msra.mxu0 0.0
  %573 = vmatprep.subr.mxu0 0.0
  %574 = vmatpush1.msra.mxu0 0.0
  %575 = vmatprep.subr.mxu0 0.0
  %576 = vmatpush1.msra.mxu0 0.0
  %577 = vmatprep.subr.mxu0 0.0
  %578 = vmatpush1.msra.mxu0 0.0
  %579 = vmatprep.subr.mxu0 0.0
  %580 = vmatpush1.msra.mxu0 0.0
  %581 = vmatprep.subr.mxu0 0.0
  %582 = vmatpush1.msra.mxu0 0.0
  %583 = vmatprep.subr.mxu0 0.0
  %584 = vmatpush1.msra.mxu0 0.0
  %585 = vmatprep.subr.mxu0 0.0
  %586 = vmatpush1.msra.mxu0 0.0
  %587 = vmatprep.mubr.f32.mxu0 0.0
  %588 = vmatmul.mubr.f32.gmra.mrb[0].mxu0 %v518
  %v589 = vpop.f32.mrb[0].mxu0
  %v590 = vadd.f32 0.0, %v589
  %v591 = vpop.f32.mrb[0].mxu0
  %592 = vmatprep.mubr.f32.mxu0 0.0
  %593 = vmatmul.mubr.f32.gmra.mrb[0].mxu0 %v521
  %v594 = vpop.f32.mrb[0].mxu0
  %v595 = vadd.f32 0.0, %v594
  %v596 = vpop.f32.mrb[0].mxu0
  %597 = vdwg.mxu0
  %v598 = vadd.f32 %v504, %v590
  %v599 = vadd.f32 %v505, %v595
  %v600 = vld [vmem:[%s0 + $0x6] sm:$0xff]
  %v601 = vld [vmem:[%s0 + $0xe] sm:$0x3]
  %s602 = scalar_lea.vmem %s1, 384
  %v603 = vld [vmem:[%s602] sm:$0xff]
  %v604 = vld [vmem:[%s602 + $0x8] sm:$0xff]
  %v605 = vld [vmem:[%s602 + $0x10] sm:$0xff]
  %v606 = vld [vmem:[%s602 + $0x18] sm:$0xff]
  %v607 = vld [vmem:[%s602 + $0x20] sm:$0xff]
  %v608 = vld [vmem:[%s602 + $0x28] sm:$0xff]
  %v609 = vld [vmem:[%s602 + $0x30] sm:$0xff]
  %v610 = vld [vmem:[%s602 + $0x38] sm:$0xff]
  %v612 = vsel %vm61, %v600, 0
  %v615 = vsel %vm61, %v601, 0
  %617 = vmatprep.subr.mxu0 0.0
  %618 = vmatpush1.msra.mxu0 %v603
  %619 = vmatprep.subr.mxu0 0.0
  %620 = vmatpush1.msra.mxu0 %v604
  %621 = vmatprep.subr.mxu0 0.0
  %622 = vmatpush1.msra.mxu0 %v605
  %623 = vmatprep.subr.mxu0 0.0
  %624 = vmatpush1.msra.mxu0 %v606
  %625 = vmatprep.subr.mxu0 0.0
  %626 = vmatpush1.msra.mxu0 %v607
  %627 = vmatprep.subr.mxu0 0.0
  %628 = vmatpush1.msra.mxu0 %v608
  %629 = vmatprep.subr.mxu0 0.0
  %630 = vmatpush1.msra.mxu0 %v609
  %631 = vmatprep.subr.mxu0 0.0
  %632 = vmatpush1.msra.mxu0 %v610
  %633 = vmatprep.subr.mxu0 0.0
  %634 = vmatpush1.msra.mxu0 0.0
  %635 = vmatprep.subr.mxu0 0.0
  %636 = vmatpush1.msra.mxu0 0.0
  %637 = vmatprep.subr.mxu0 0.0
  %638 = vmatpush1.msra.mxu0 0.0
  %639 = vmatprep.subr.mxu0 0.0
  %640 = vmatpush1.msra.mxu0 0.0
  %641 = vmatprep.subr.mxu0 0.0
  %642 = vmatpush1.msra.mxu0 0.0
  %643 = vmatprep.subr.mxu0 0.0
  %644 = vmatpush1.msra.mxu0 0.0
  %645 = vmatprep.subr.mxu0 0.0
  %646 = vmatpush1.msra.mxu0 0.0
  %647 = vmatprep.subr.mxu0 0.0
  %648 = vmatpush1.msra.mxu0 0.0
  %649 = vmatprep.subr.mxu0 0.0
  %650 = vmatpush1.msra.mxu0 0.0
  %651 = vmatprep.subr.mxu0 0.0
  %652 = vmatpush1.msra.mxu0 0.0
  %653 = vmatprep.subr.mxu0 0.0
  %654 = vmatpush1.msra.mxu0 0.0
  %655 = vmatprep.subr.mxu0 0.0
  %656 = vmatpush1.msra.mxu0 0.0
  %657 = vmatprep.subr.mxu0 0.0
  %658 = vmatpush1.msra.mxu0 0.0
  %659 = vmatprep.subr.mxu0 0.0
  %660 = vmatpush1.msra.mxu0 0.0
  %661 = vmatprep.subr.mxu0 0.0
  %662 = vmatpush1.msra.mxu0 0.0
  %663 = vmatprep.subr.mxu0 0.0
  %664 = vmatpush1.msra.mxu0 0.0
  %665 = vmatprep.subr.mxu0 0.0
  %666 = vmatpush1.msra.mxu0 0.0
  %667 = vmatprep.subr.mxu0 0.0
  %668 = vmatpush1.msra.mxu0 0.0
  %669 = vmatprep.subr.mxu0 0.0
  %670 = vmatpush1.msra.mxu0 0.0
  %671 = vmatprep.subr.mxu0 0.0
  %672 = vmatpush1.msra.mxu0 0.0
  %673 = vmatprep.subr.mxu0 0.0
  %674 = vmatpush1.msra.mxu0 0.0
  %675 = vmatprep.subr.mxu0 0.0
  %676 = vmatpush1.msra.mxu0 0.0
  %677 = vmatprep.subr.mxu0 0.0
  %678 = vmatpush1.msra.mxu0 0.0
  %679 = vmatprep.subr.mxu0 0.0
  %680 = vmatpush1.msra.mxu0 0.0
  %681 = vmatprep.mubr.f32.mxu0 0.0
  %682 = vmatmul.mubr.f32.gmra.mrb[0].mxu0 %v612
  %v683 = vpop.f32.mrb[0].mxu0
  %v684 = vadd.f32 0.0, %v683
  %v685 = vpop.f32.mrb[0].mxu0
  %686 = vmatprep.mubr.f32.mxu0 0.0
  %687 = vmatmul.mubr.f32.gmra.mrb[0].mxu0 %v615
  %v688 = vpop.f32.mrb[0].mxu0
  %v689 = vadd.f32 0.0, %v688
  %v690 = vpop.f32.mrb[0].mxu0
  %691 = vdwg.mxu0
  %v692 = vadd.f32 %v598, %v684
  %v693 = vadd.f32 %v599, %v689
  %v694 = vld [vmem:[%s0 + $0x7] sm:$0xff]
  %v695 = vld [vmem:[%s0 + $0xf] sm:$0x3]
  %s696 = scalar_lea.vmem %s1, 448
  %v697 = vld [vmem:[%s696] sm:$0xff]
  %v698 = vld [vmem:[%s696 + $0x8] sm:$0xff]
  %v699 = vld [vmem:[%s696 + $0x10] sm:$0xff]
  %v700 = vld [vmem:[%s696 + $0x18] sm:$0xff]
  %v701 = vld [vmem:[%s696 + $0x20] sm:$0xff]
  %v702 = vld [vmem:[%s696 + $0x28] sm:$0xff]
  %v703 = vld [vmem:[%s696 + $0x30] sm:$0xff]
  %v704 = vld [vmem:[%s696 + $0x38] sm:$0xff]
  %v706 = vsel %vm61, %v694, 0
  %v709 = vsel %vm61, %v695, 0
  %711 = vmatprep.subr.mxu0 0.0
  %712 = vmatpush1.msra.mxu0 %v697
  %713 = vmatprep.subr.mxu0 0.0
  %714 = vmatpush1.msra.mxu0 %v698
  %715 = vmatprep.subr.mxu0 0.0
  %716 = vmatpush1.msra.mxu0 %v699
  %717 = vmatprep.subr.mxu0 0.0
  %718 = vmatpush1.msra.mxu0 %v700
  %719 = vmatprep.subr.mxu0 0.0
  %720 = vmatpush1.msra.mxu0 %v701
  %721 = vmatprep.subr.mxu0 0.0
  %722 = vmatpush1.msra.mxu0 %v702
  %723 = vmatprep.subr.mxu0 0.0
  %724 = vmatpush1.msra.mxu0 %v703
  %725 = vmatprep.subr.mxu0 0.0
  %726 = vmatpush1.msra.mxu0 %v704
  %727 = vmatprep.subr.mxu0 0.0
  %728 = vmatpush1.msra.mxu0 0.0
  %729 = vmatprep.subr.mxu0 0.0
  %730 = vmatpush1.msra.mxu0 0.0
  %731 = vmatprep.subr.mxu0 0.0
  %732 = vmatpush1.msra.mxu0 0.0
  %733 = vmatprep.subr.mxu0 0.0
  %734 = vmatpush1.msra.mxu0 0.0
  %735 = vmatprep.subr.mxu0 0.0
  %736 = vmatpush1.msra.mxu0 0.0
  %737 = vmatprep.subr.mxu0 0.0
  %738 = vmatpush1.msra.mxu0 0.0
  %739 = vmatprep.subr.mxu0 0.0
  %740 = vmatpush1.msra.mxu0 0.0
  %741 = vmatprep.subr.mxu0 0.0
  %742 = vmatpush1.msra.mxu0 0.0
  %743 = vmatprep.subr.mxu0 0.0
  %744 = vmatpush1.msra.mxu0 0.0
  %745 = vmatprep.subr.mxu0 0.0
  %746 = vmatpush1.msra.mxu0 0.0
  %747 = vmatprep.subr.mxu0 0.0
  %748 = vmatpush1.msra.mxu0 0.0
  %749 = vmatprep.subr.mxu0 0.0
  %750 = vmatpush1.msra.mxu0 0.0
  %751 = vmatprep.subr.mxu0 0.0
  %752 = vmatpush1.msra.mxu0 0.0
  %753 = vmatprep.subr.mxu0 0.0
  %754 = vmatpush1.msra.mxu0 0.0
  %755 = vmatprep.subr.mxu0 0.0
  %756 = vmatpush1.msra.mxu0 0.0
  %757 = vmatprep.subr.mxu0 0.0
  %758 = vmatpush1.msra.mxu0 0.0
  %759 = vmatprep.subr.mxu0 0.0
  %760 = vmatpush1.msra.mxu0 0.0
  %761 = vmatprep.subr.mxu0 0.0
  %762 = vmatpush1.msra.mxu0 0.0
  %763 = vmatprep.subr.mxu0 0.0
  %764 = vmatpush1.msra.mxu0 0.0
  %765 = vmatprep.subr.mxu0 0.0
  %766 = vmatpush1.msra.mxu0 0.0
  %767 = vmatprep.subr.mxu0 0.0
  %768 = vmatpush1.msra.mxu0 0.0
  %769 = vmatprep.subr.mxu0 0.0
  %770 = vmatpush1.msra.mxu0 0.0
  %771 = vmatprep.subr.mxu0 0.0
  %772 = vmatpush1.msra.mxu0 0.0
  %773 = vmatprep.subr.mxu0 0.0
  %774 = vmatpush1.msra.mxu0 0.0
  %775 = vmatprep.mubr.f32.mxu0 0.0
  %776 = vmatmul.mubr.f32.gmra.mrb[0].mxu0 %v706
  %v777 = vpop.f32.mrb[0].mxu0
  %v778 = vadd.f32 0.0, %v777
  %v779 = vpop.f32.mrb[0].mxu0
  %780 = vmatprep.mubr.f32.mxu0 0.0
  %781 = vmatmul.mubr.f32.gmra.mrb[0].mxu0 %v709
  %v782 = vpop.f32.mrb[0].mxu0
  %v783 = vadd.f32 0.0, %v782
  %v784 = vpop.f32.mrb[0].mxu0
  %785 = vdwg.mxu0
  %v786 = vadd.f32 %v692, %v778
  %v787 = vadd.f32 %v693, %v783
  %v788 = vld [vmem:[%s0 + $0x8] sm:$0xff]
  %v789 = vld [vmem:[%s0 + $0x10] sm:$0x3]
  %s790 = scalar_lea.vmem %s1, 512
  %v791 = vld [vmem:[%s790] sm:$0xff]
  %v792 = vld [vmem:[%s790 + $0x8] sm:$0xff]
  %v793 = vld [vmem:[%s790 + $0x10] sm:$0xff]
  %v794 = vld [vmem:[%s790 + $0x18] sm:$0xff]
  %v795 = vld [vmem:[%s790 + $0x20] sm:$0xff]
  %v796 = vld [vmem:[%s790 + $0x28] sm:$0xff]
  %v797 = vld [vmem:[%s790 + $0x30] sm:$0xff]
  %v798 = vld [vmem:[%s790 + $0x38] sm:$0xff]
  %v800 = vsel %vm61, %v788, 0
  %v803 = vsel %vm61, %v789, 0
  %805 = vmatprep.subr.mxu0 0.0
  %806 = vmatpush1.msra.mxu0 %v791
  %807 = vmatprep.subr.mxu0 0.0
  %808 = vmatpush1.msra.mxu0 %v792
  %809 = vmatprep.subr.mxu0 0.0
  %810 = vmatpush1.msra.mxu0 %v793
  %811 = vmatprep.subr.mxu0 0.0
  %812 = vmatpush1.msra.mxu0 %v794
  %813 = vmatprep.subr.mxu0 0.0
  %814 = vmatpush1.msra.mxu0 %v795
  %815 = vmatprep.subr.mxu0 0.0
  %816 = vmatpush1.msra.mxu0 %v796
  %817 = vmatprep.subr.mxu0 0.0
  %818 = vmatpush1.msra.mxu0 %v797
  %819 = vmatprep.subr.mxu0 0.0
  %820 = vmatpush1.msra.mxu0 %v798
  %821 = vmatprep.subr.mxu0 0.0
  %822 = vmatpush1.msra.mxu0 0.0
  %823 = vmatprep.subr.mxu0 0.0
  %824 = vmatpush1.msra.mxu0 0.0
  %825 = vmatprep.subr.mxu0 0.0
  %826 = vmatpush1.msra.mxu0 0.0
  %827 = vmatprep.subr.mxu0 0.0
  %828 = vmatpush1.msra.mxu0 0.0
  %829 = vmatprep.subr.mxu0 0.0
  %830 = vmatpush1.msra.mxu0 0.0
  %831 = vmatprep.subr.mxu0 0.0
  %832 = vmatpush1.msra.mxu0 0.0
  %833 = vmatprep.subr.mxu0 0.0
  %834 = vmatpush1.msra.mxu0 0.0
  %835 = vmatprep.subr.mxu0 0.0
  %836 = vmatpush1.msra.mxu0 0.0
  %837 = vmatprep.subr.mxu0 0.0
  %838 = vmatpush1.msra.mxu0 0.0
  %839 = vmatprep.subr.mxu0 0.0
  %840 = vmatpush1.msra.mxu0 0.0
  %841 = vmatprep.subr.mxu0 0.0
  %842 = vmatpush1.msra.mxu0 0.0
  %843 = vmatprep.subr.mxu0 0.0
  %844 = vmatpush1.msra.mxu0 0.0
  %845 = vmatprep.subr.mxu0 0.0
  %846 = vmatpush1.msra.mxu0 0.0
  %847 = vmatprep.subr.mxu0 0.0
  %848 = vmatpush1.msra.mxu0 0.0
  %849 = vmatprep.subr.mxu0 0.0
  %850 = vmatpush1.msra.mxu0 0.0
  %851 = vmatprep.subr.mxu0 0.0
  %852 = vmatpush1.msra.mxu0 0.0
  %853 = vmatprep.subr.mxu0 0.0
  %854 = vmatpush1.msra.mxu0 0.0
  %855 = vmatprep.subr.mxu0 0.0
  %856 = vmatpush1.msra.mxu0 0.0
  %857 = vmatprep.subr.mxu0 0.0
  %858 = vmatpush1.msra.mxu0 0.0
  %859 = vmatprep.subr.mxu0 0.0
  %860 = vmatpush1.msra.mxu0 0.0
  %861 = vmatprep.subr.mxu0 0.0
  %862 = vmatpush1.msra.mxu0 0.0
  %863 = vmatprep.subr.mxu0 0.0
  %864 = vmatpush1.msra.mxu0 0.0
  %865 = vmatprep.subr.mxu0 0.0
  %866 = vmatpush1.msra.mxu0 0.0
  %867 = vmatprep.subr.mxu0 0.0
  %868 = vmatpush1.msra.mxu0 0.0
  %869 = vmatprep.mubr.f32.mxu0 0.0
  %870 = vmatmul.mubr.f32.gmra.mrb[0].mxu0 %v800
  %v871 = vpop.f32.mrb[0].mxu0
  %v872 = vadd.f32 0.0, %v871
  %v873 = vpop.f32.mrb[0].mxu0
  %874 = vmatprep.mubr.f32.mxu0 0.0
  %875 = vmatmul.mubr.f32.gmra.mrb[0].mxu0 %v803
  %v876 = vpop.f32.mrb[0].mxu0
  %v877 = vadd.f32 0.0, %v876
  %v878 = vpop.f32.mrb[0].mxu0
  %879 = vdwg.mxu0
  %v880 = vadd.f32 %v786, %v872
  %v881 = vadd.f32 %v787, %v877
  %vm882 = vcmask 654336
  %v883 = vsel %vm882, %v880, 0.0
  %vm884 = vcmask 648192
  %v885 = vsel %vm884, %v881, 0.0
  %v886 = vadd.f32 %v883, %v885
  %v887 = vrot.slane %v886, 4
  %v888 = vadd.f32 %v886, %v887
  %v889 = vrot.slane %v888, 2
  %v890 = vadd.f32 %v888, %v889
  %v891 = vrot.slane %v890, 1
  %v892 = vadd.f32 %v890, %v891
  %v893 = vadd.f32 %v892, 0.0
  %v894 = vmul.f32 %v880, %v880
  %v895 = vmul.f32 %v881, %v881
  %v896 = vsel %vm882, %v894, 0.0
  %v897 = vsel %vm884, %v895, 0.0
  %v898 = vadd.f32 %v896, %v897
  %v899 = vrot.slane %v898, 4
  %v900 = vadd.f32 %v898, %v899
  %v901 = vrot.slane %v900, 2
  %v902 = vadd.f32 %v900, %v901
  %v903 = vrot.slane %v902, 1
  %v904 = vadd.f32 %v902, %v903
  %v905 = vadd.f32 %v904, 0.0
  %s906 = scalar_lea.vmem %s0, 24
  %v907 = vld [vmem:[%s906] sm:$0xff]
  %v908 = vld [vmem:[%s906 + $0x8] sm:$0x3]
  %v909 = vld [vmem:[%s906 + $0x1] sm:$0xff]
  %v910 = vld [vmem:[%s906 + $0x9] sm:$0x3]
  %v912 = vsel %vm61, %v909, 0
  %v915 = vsel %vm61, %v910, 0
  %917 = vmatprep.subr.mxu0 0.0
  %918 = vmatpush1.msra.mxu0 %v53
  %919 = vmatprep.subr.mxu0 0.0
  %920 = vmatpush1.msra.mxu0 %v54
  %921 = vmatprep.subr.mxu0 0.0
  %922 = vmatpush1.msra.mxu0 %v55
  %923 = vmatprep.subr.mxu0 0.0
  %924 = vmatpush1.msra.mxu0 %v56
  %925 = vmatprep.subr.mxu0 0.0
  %926 = vmatpush1.msra.mxu0 %v57
  %927 = vmatprep.subr.mxu0 0.0
  %928 = vmatpush1.msra.mxu0 %v58
  %929 = vmatprep.subr.mxu0 0.0
  %930 = vmatpush1.msra.mxu0 %v59
  %931 = vmatprep.subr.mxu0 0.0
  %932 = vmatpush1.msra.mxu0 %v60
  %933 = vmatprep.subr.mxu0 0.0
  %934 = vmatpush1.msra.mxu0 0.0
  %935 = vmatprep.subr.mxu0 0.0
  %936 = vmatpush1.msra.mxu0 0.0
  %937 = vmatprep.subr.mxu0 0.0
  %938 = vmatpush1.msra.mxu0 0.0
  %939 = vmatprep.subr.mxu0 0.0
  %940 = vmatpush1.msra.mxu0 0.0
  %941 = vmatprep.subr.mxu0 0.0
  %942 = vmatpush1.msra.mxu0 0.0
  %943 = vmatprep.subr.mxu0 0.0
  %944 = vmatpush1.msra.mxu0 0.0
  %945 = vmatprep.subr.mxu0 0.0
  %946 = vmatpush1.msra.mxu0 0.0
  %947 = vmatprep.subr.mxu0 0.0
  %948 = vmatpush1.msra.mxu0 0.0
  %949 = vmatprep.subr.mxu0 0.0
  %950 = vmatpush1.msra.mxu0 0.0
  %951 = vmatprep.subr.mxu0 0.0
  %952 = vmatpush1.msra.mxu0 0.0
  %953 = vmatprep.subr.mxu0 0.0
  %954 = vmatpush1.msra.mxu0 0.0
  %955 = vmatprep.subr.mxu0 0.0
  %956 = vmatpush1.msra.mxu0 0.0
  %957 = vmatprep.subr.mxu0 0.0
  %958 = vmatpush1.msra.mxu0 0.0
  %959 = vmatprep.subr.mxu0 0.0
  %960 = vmatpush1.msra.mxu0 0.0
  %961 = vmatprep.subr.mxu0 0.0
  %962 = vmatpush1.msra.mxu0 0.0
  %963 = vmatprep.subr.mxu0 0.0
  %964 = vmatpush1.msra.mxu0 0.0
  %965 = vmatprep.subr.mxu0 0.0
  %966 = vmatpush1.msra.mxu0 0.0
  %967 = vmatprep.subr.mxu0 0.0
  %968 = vmatpush1.msra.mxu0 0.0
  %969 = vmatprep.subr.mxu0 0.0
  %970 = vmatpush1.msra.mxu0 0.0
  %971 = vmatprep.subr.mxu0 0.0
  %972 = vmatpush1.msra.mxu0 0.0
  %973 = vmatprep.subr.mxu0 0.0
  %974 = vmatpush1.msra.mxu0 0.0
  %975 = vmatprep.subr.mxu0 0.0
  %976 = vmatpush1.msra.mxu0 0.0
  %977 = vmatprep.subr.mxu0 0.0
  %978 = vmatpush1.msra.mxu0 0.0
  %979 = vmatprep.subr.mxu0 0.0
  %980 = vmatpush1.msra.mxu0 0.0
  %981 = vmatprep.mubr.f32.mxu0 0.0
  %982 = vmatmul.mubr.f32.gmra.mrb[0].mxu0 %v912
  %v983 = vpop.f32.mrb[0].mxu0
  %v984 = vadd.f32 0.0, %v983
  %v985 = vpop.f32.mrb[0].mxu0
  %986 = vmatprep.mubr.f32.mxu0 0.0
  %987 = vmatmul.mubr.f32.gmra.mrb[0].mxu0 %v915
  %v988 = vpop.f32.mrb[0].mxu0
  %v989 = vadd.f32 0.0, %v988
  %v990 = vpop.f32.mrb[0].mxu0
  %991 = vdwg.mxu0
  %v993 = vsel %vm61, %v907, 0
  %v996 = vsel %vm61, %v908, 0
  %998 = vmatprep.subr.mxu0 0.0
  %999 = vmatpush1.msra.mxu0 %v42
  %1000 = vmatprep.subr.mxu0 0.0
  %1001 = vmatpush1.msra.mxu0 %v43
  %1002 = vmatprep.subr.mxu0 0.0
  %1003 = vmatpush1.msra.mxu0 %v44
  %1004 = vmatprep.subr.mxu0 0.0
  %1005 = vmatpush1.msra.mxu0 %v45
  %1006 = vmatprep.subr.mxu0 0.0
  %1007 = vmatpush1.msra.mxu0 %v46
  %1008 = vmatprep.subr.mxu0 0.0
  %1009 = vmatpush1.msra.mxu0 %v47
  %1010 = vmatprep.subr.mxu0 0.0
  %1011 = vmatpush1.msra.mxu0 %v48
  %1012 = vmatprep.subr.mxu0 0.0
  %1013 = vmatpush1.msra.mxu0 %v49
  %1014 = vmatprep.subr.mxu0 0.0
  %1015 = vmatpush1.msra.mxu0 0.0
  %1016 = vmatprep.subr.mxu0 0.0
  %1017 = vmatpush1.msra.mxu0 0.0
  %1018 = vmatprep.subr.mxu0 0.0
  %1019 = vmatpush1.msra.mxu0 0.0
  %1020 = vmatprep.subr.mxu0 0.0
  %1021 = vmatpush1.msra.mxu0 0.0
  %1022 = vmatprep.subr.mxu0 0.0
  %1023 = vmatpush1.msra.mxu0 0.0
  %1024 = vmatprep.subr.mxu0 0.0
  %1025 = vmatpush1.msra.mxu0 0.0
  %1026 = vmatprep.subr.mxu0 0.0
  %1027 = vmatpush1.msra.mxu0 0.0
  %1028 = vmatprep.subr.mxu0 0.0
  %1029 = vmatpush1.msra.mxu0 0.0
  %1030 = vmatprep.subr.mxu0 0.0
  %1031 = vmatpush1.msra.mxu0 0.0
  %1032 = vmatprep.subr.mxu0 0.0
  %1033 = vmatpush1.msra.mxu0 0.0
  %1034 = vmatprep.subr.mxu0 0.0
  %1035 = vmatpush1.msra.mxu0 0.0
  %1036 = vmatprep.subr.mxu0 0.0
  %1037 = vmatpush1.msra.mxu0 0.0
  %1038 = vmatprep.subr.mxu0 0.0
  %1039 = vmatpush1.msra.mxu0 0.0
  %1040 = vmatprep.subr.mxu0 0.0
  %1041 = vmatpush1.msra.mxu0 0.0
  %1042 = vmatprep.subr.mxu0 0.0
  %1043 = vmatpush1.msra.mxu0 0.0
  %1044 = vmatprep.subr.mxu0 0.0
  %1045 = vmatpush1.msra.mxu0 0.0
  %1046 = vmatprep.subr.mxu0 0.0
  %1047 = vmatpush1.msra.mxu0 0.0
  %1048 = vmatprep.subr.mxu0 0.0
  %1049 = vmatpush1.msra.mxu0 0.0
  %1050 = vmatprep.subr.mxu0 0.0
  %1051 = vmatpush1.msra.mxu0 0.0
  %1052 = vmatprep.subr.mxu0 0.0
  %1053 = vmatpush1.msra.mxu0 0.0
  %1054 = vmatprep.subr.mxu0 0.0
  %1055 = vmatpush1.msra.mxu0 0.0
  %1056 = vmatprep.subr.mxu0 0.0
  %1057 = vmatpush1.msra.mxu0 0.0
  %1058 = vmatprep.subr.mxu0 0.0
  %1059 = vmatpush1.msra.mxu0 0.0
  %1060 = vmatprep.subr.mxu0 0.0
  %1061 = vmatpush1.msra.mxu0 0.0
  %1062 = vmatprep.mubr.f32.mxu0 0.0
  %1063 = vmatmul.mubr.f32.gmra.mrb[0].mxu0 %v993
  %v1064 = vpop.f32.mrb[0].mxu0
  %v1065 = vadd.f32 %v984, %v1064
  %v1066 = vpop.f32.mrb[0].mxu0
  %1067 = vmatprep.mubr.f32.mxu0 0.0
  %1068 = vmatmul.mubr.f32.gmra.mrb[0].mxu0 %v996
  %v1069 = vpop.f32.mrb[0].mxu0
  %v1070 = vadd.f32 %v989, %v1069
  %v1071 = vpop.f32.mrb[0].mxu0
  %1072 = vdwg.mxu0
  %v1073 = vld [vmem:[%s906 + $0x2] sm:$0xff]
  %v1074 = vld [vmem:[%s906 + $0xa] sm:$0x3]
  %v1076 = vsel %vm61, %v1073, 0
  %v1079 = vsel %vm61, %v1074, 0
  %1081 = vmatprep.subr.mxu0 0.0
  %1082 = vmatpush1.msra.mxu0 %v227
  %1083 = vmatprep.subr.mxu0 0.0
  %1084 = vmatpush1.msra.mxu0 %v228
  %1085 = vmatprep.subr.mxu0 0.0
  %1086 = vmatpush1.msra.mxu0 %v229
  %1087 = vmatprep.subr.mxu0 0.0
  %1088 = vmatpush1.msra.mxu0 %v230
  %1089 = vmatprep.subr.mxu0 0.0
  %1090 = vmatpush1.msra.mxu0 %v231
  %1091 = vmatprep.subr.mxu0 0.0
  %1092 = vmatpush1.msra.mxu0 %v232
  %1093 = vmatprep.subr.mxu0 0.0
  %1094 = vmatpush1.msra.mxu0 %v233
  %1095 = vmatprep.subr.mxu0 0.0
  %1096 = vmatpush1.msra.mxu0 %v234
  %1097 = vmatprep.subr.mxu0 0.0
  %1098 = vmatpush1.msra.mxu0 0.0
  %1099 = vmatprep.subr.mxu0 0.0
  %1100 = vmatpush1.msra.mxu0 0.0
  %1101 = vmatprep.subr.mxu0 0.0
  %1102 = vmatpush1.msra.mxu0 0.0
  %1103 = vmatprep.subr.mxu0 0.0
  %1104 = vmatpush1.msra.mxu0 0.0
  %1105 = vmatprep.subr.mxu0 0.0
  %1106 = vmatpush1.msra.mxu0 0.0
  %1107 = vmatprep.subr.mxu0 0.0
  %1108 = vmatpush1.msra.mxu0 0.0
  %1109 = vmatprep.subr.mxu0 0.0
  %1110 = vmatpush1.msra.mxu0 0.0
  %1111 = vmatprep.subr.mxu0 0.0
  %1112 = vmatpush1.msra.mxu0 0.0
  %1113 = vmatprep.subr.mxu0 0.0
  %1114 = vmatpush1.msra.mxu0 0.0
  %1115 = vmatprep.subr.mxu0 0.0
  %1116 = vmatpush1.msra.mxu0 0.0
  %1117 = vmatprep.subr.mxu0 0.0
  %1118 = vmatpush1.msra.mxu0 0.0
  %1119 = vmatprep.subr.mxu0 0.0
  %1120 = vmatpush1.msra.mxu0 0.0
  %1121 = vmatprep.subr.mxu0 0.0
  %1122 = vmatpush1.msra.mxu0 0.0
  %1123 = vmatprep.subr.mxu0 0.0
  %1124 = vmatpush1.msra.mxu0 0.0
  %1125 = vmatprep.subr.mxu0 0.0
  %1126 = vmatpush1.msra.mxu0 0.0
  %1127 = vmatprep.subr.mxu0 0.0
  %1128 = vmatpush1.msra.mxu0 0.0
  %1129 = vmatprep.subr.mxu0 0.0
  %1130 = vmatpush1.msra.mxu0 0.0
  %1131 = vmatprep.subr.mxu0 0.0
  %1132 = vmatpush1.msra.mxu0 0.0
  %1133 = vmatprep.subr.mxu0 0.0
  %1134 = vmatpush1.msra.mxu0 0.0
  %1135 = vmatprep.subr.mxu0 0.0
  %1136 = vmatpush1.msra.mxu0 0.0
  %1137 = vmatprep.subr.mxu0 0.0
  %1138 = vmatpush1.msra.mxu0 0.0
  %1139 = vmatprep.subr.mxu0 0.0
  %1140 = vmatpush1.msra.mxu0 0.0
  %1141 = vmatprep.subr.mxu0 0.0
  %1142 = vmatpush1.msra.mxu0 0.0
  %1143 = vmatprep.subr.mxu0 0.0
  %1144 = vmatpush1.msra.mxu0 0.0
  %1145 = vmatprep.mubr.f32.mxu0 0.0
  %1146 = vmatmul.mubr.f32.gmra.mrb[0].mxu0 %v1076
  %v1147 = vpop.f32.mrb[0].mxu0
  %v1148 = vadd.f32 0.0, %v1147
  %v1149 = vpop.f32.mrb[0].mxu0
  %1150 = vmatprep.mubr.f32.mxu0 0.0
  %1151 = vmatmul.mubr.f32.gmra.mrb[0].mxu0 %v1079
  %v1152 = vpop.f32.mrb[0].mxu0
  %v1153 = vadd.f32 0.0, %v1152
  %v1154 = vpop.f32.mrb[0].mxu0
  %1155 = vdwg.mxu0
  %v1156 = vadd.f32 %v1065, %v1148
  %v1157 = vadd.f32 %v1070, %v1153
  %v1158 = vld [vmem:[%s906 + $0x3] sm:$0xff]
  %v1159 = vld [vmem:[%s906 + $0xb] sm:$0x3]
  %v1161 = vsel %vm61, %v1158, 0
  %v1164 = vsel %vm61, %v1159, 0
  %1166 = vmatprep.subr.mxu0 0.0
  %1167 = vmatpush1.msra.mxu0 %v321
  %1168 = vmatprep.subr.mxu0 0.0
  %1169 = vmatpush1.msra.mxu0 %v322
  %1170 = vmatprep.subr.mxu0 0.0
  %1171 = vmatpush1.msra.mxu0 %v323
  %1172 = vmatprep.subr.mxu0 0.0
  %1173 = vmatpush1.msra.mxu0 %v324
  %1174 = vmatprep.subr.mxu0 0.0
  %1175 = vmatpush1.msra.mxu0 %v325
  %1176 = vmatprep.subr.mxu0 0.0
  %1177 = vmatpush1.msra.mxu0 %v326
  %1178 = vmatprep.subr.mxu0 0.0
  %1179 = vmatpush1.msra.mxu0 %v327
  %1180 = vmatprep.subr.mxu0 0.0
  %1181 = vmatpush1.msra.mxu0 %v328
  %1182 = vmatprep.subr.mxu0 0.0
  %1183 = vmatpush1.msra.mxu0 0.0
  %1184 = vmatprep.subr.mxu0 0.0
  %1185 = vmatpush1.msra.mxu0 0.0
  %1186 = vmatprep.subr.mxu0 0.0
  %1187 = vmatpush1.msra.mxu0 0.0
  %1188 = vmatprep.subr.mxu0 0.0
  %1189 = vmatpush1.msra.mxu0 0.0
  %1190 = vmatprep.subr.mxu0 0.0
  %1191 = vmatpush1.msra.mxu0 0.0
  %1192 = vmatprep.subr.mxu0 0.0
  %1193 = vmatpush1.msra.mxu0 0.0
  %1194 = vmatprep.subr.mxu0 0.0
  %1195 = vmatpush1.msra.mxu0 0.0
  %1196 = vmatprep.subr.mxu0 0.0
  %1197 = vmatpush1.msra.mxu0 0.0
  %1198 = vmatprep.subr.mxu0 0.0
  %1199 = vmatpush1.msra.mxu0 0.0
  %1200 = vmatprep.subr.mxu0 0.0
  %1201 = vmatpush1.msra.mxu0 0.0
  %1202 = vmatprep.subr.mxu0 0.0
  %1203 = vmatpush1.msra.mxu0 0.0
  %1204 = vmatprep.subr.mxu0 0.0
  %1205 = vmatpush1.msra.mxu0 0.0
  %1206 = vmatprep.subr.mxu0 0.0
  %1207 = vmatpush1.msra.mxu0 0.0
  %1208 = vmatprep.subr.mxu0 0.0
  %1209 = vmatpush1.msra.mxu0 0.0
  %1210 = vmatprep.subr.mxu0 0.0
  %1211 = vmatpush1.msra.mxu0 0.0
  %1212 = vmatprep.subr.mxu0 0.0
  %1213 = vmatpush1.msra.mxu0 0.0
  %1214 = vmatprep.subr.mxu0 0.0
  %1215 = vmatpush1.msra.mxu0 0.0
  %1216 = vmatprep.subr.mxu0 0.0
  %1217 = vmatpush1.msra.mxu0 0.0
  %1218 = vmatprep.subr.mxu0 0.0
  %1219 = vmatpush1.msra.mxu0 0.0
  %1220 = vmatprep.subr.mxu0 0.0
  %1221 = vmatpush1.msra.mxu0 0.0
  %1222 = vmatprep.subr.mxu0 0.0
  %1223 = vmatpush1.msra.mxu0 0.0
  %1224 = vmatprep.subr.mxu0 0.0
  %1225 = vmatpush1.msra.mxu0 0.0
  %1226 = vmatprep.subr.mxu0 0.0
  %1227 = vmatpush1.msra.mxu0 0.0
  %1228 = vmatprep.subr.mxu0 0.0
  %1229 = vmatpush1.msra.mxu0 0.0
  %1230 = vmatprep.mubr.f32.mxu0 0.0
  %1231 = vmatmul.mubr.f32.gmra.mrb[0].mxu0 %v1161
  %v1232 = vpop.f32.mrb[0].mxu0
  %v1233 = vadd.f32 0.0, %v1232
  %v1234 = vpop.f32.mrb[0].mxu0
  %1235 = vmatprep.mubr.f32.mxu0 0.0
  %1236 = vmatmul.mubr.f32.gmra.mrb[0].mxu0 %v1164
  %v1237 = vpop.f32.mrb[0].mxu0
  %v1238 = vadd.f32 0.0, %v1237
  %v1239 = vpop.f32.mrb[0].mxu0
  %1240 = vdwg.mxu0
  %v1241 = vadd.f32 %v1156, %v1233
  %v1242 = vadd.f32 %v1157, %v1238
  %v1243 = vld [vmem:[%s906 + $0x4] sm:$0xff]
  %v1244 = vld [vmem:[%s906 + $0xc] sm:$0x3]
  %v1246 = vsel %vm61, %v1243, 0
  %v1249 = vsel %vm61, %v1244, 0
  %1251 = vmatprep.subr.mxu0 0.0
  %1252 = vmatpush1.msra.mxu0 %v415
  %1253 = vmatprep.subr.mxu0 0.0
  %1254 = vmatpush1.msra.mxu0 %v416
  %1255 = vmatprep.subr.mxu0 0.0
  %1256 = vmatpush1.msra.mxu0 %v417
  %1257 = vmatprep.subr.mxu0 0.0
  %1258 = vmatpush1.msra.mxu0 %v418
  %1259 = vmatprep.subr.mxu0 0.0
  %1260 = vmatpush1.msra.mxu0 %v419
  %1261 = vmatprep.subr.mxu0 0.0
  %1262 = vmatpush1.msra.mxu0 %v420
  %1263 = vmatprep.subr.mxu0 0.0
  %1264 = vmatpush1.msra.mxu0 %v421
  %1265 = vmatprep.subr.mxu0 0.0
  %1266 = vmatpush1.msra.mxu0 %v422
  %1267 = vmatprep.subr.mxu0 0.0
  %1268 = vmatpush1.msra.mxu0 0.0
  %1269 = vmatprep.subr.mxu0 0.0
  %1270 = vmatpush1.msra.mxu0 0.0
  %1271 = vmatprep.subr.mxu0 0.0
  %1272 = vmatpush1.msra.mxu0 0.0
  %1273 = vmatprep.subr.mxu0 0.0
  %1274 = vmatpush1.msra.mxu0 0.0
  %1275 = vmatprep.subr.mxu0 0.0
  %1276 = vmatpush1.msra.mxu0 0.0
  %1277 = vmatprep.subr.mxu0 0.0
  %1278 = vmatpush1.msra.mxu0 0.0
  %1279 = vmatprep.subr.mxu0 0.0
  %1280 = vmatpush1.msra.mxu0 0.0
  %1281 = vmatprep.subr.mxu0 0.0
  %1282 = vmatpush1.msra.mxu0 0.0
  %1283 = vmatprep.subr.mxu0 0.0
  %1284 = vmatpush1.msra.mxu0 0.0
  %1285 = vmatprep.subr.mxu0 0.0
  %1286 = vmatpush1.msra.mxu0 0.0
  %1287 = vmatprep.subr.mxu0 0.0
  %1288 = vmatpush1.msra.mxu0 0.0
  %1289 = vmatprep.subr.mxu0 0.0
  %1290 = vmatpush1.msra.mxu0 0.0
  %1291 = vmatprep.subr.mxu0 0.0
  %1292 = vmatpush1.msra.mxu0 0.0
  %1293 = vmatprep.subr.mxu0 0.0
  %1294 = vmatpush1.msra.mxu0 0.0
  %1295 = vmatprep.subr.mxu0 0.0
  %1296 = vmatpush1.msra.mxu0 0.0
  %1297 = vmatprep.subr.mxu0 0.0
  %1298 = vmatpush1.msra.mxu0 0.0
  %1299 = vmatprep.subr.mxu0 0.0
  %1300 = vmatpush1.msra.mxu0 0.0
  %1301 = vmatprep.subr.mxu0 0.0
  %1302 = vmatpush1.msra.mxu0 0.0
  %1303 = vmatprep.subr.mxu0 0.0
  %1304 = vmatpush1.msra.mxu0 0.0
  %1305 = vmatprep.subr.mxu0 0.0
  %1306 = vmatpush1.msra.mxu0 0.0
  %1307 = vmatprep.subr.mxu0 0.0
  %1308 = vmatpush1.msra.mxu0 0.0
  %1309 = vmatprep.subr.mxu0 0.0
  %1310 = vmatpush1.msra.mxu0 0.0
  %1311 = vmatprep.subr.mxu0 0.0
  %1312 = vmatpush1.msra.mxu0 0.0
  %1313 = vmatprep.subr.mxu0 0.0
  %1314 = vmatpush1.msra.mxu0 0.0
  %1315 = vmatprep.mubr.f32.mxu0 0.0
  %1316 = vmatmul.mubr.f32.gmra.mrb[0].mxu0 %v1246
  %v1317 = vpop.f32.mrb[0].mxu0
  %v1318 = vadd.f32 0.0, %v1317
  %v1319 = vpop.f32.mrb[0].mxu0
  %1320 = vmatprep.mubr.f32.mxu0 0.0
  %1321 = vmatmul.mubr.f32.gmra.mrb[0].mxu0 %v1249
  %v1322 = vpop.f32.mrb[0].mxu0
  %v1323 = vadd.f32 0.0, %v1322
  %v1324 = vpop.f32.mrb[0].mxu0
  %1325 = vdwg.mxu0
  %v1326 = vadd.f32 %v1241, %v1318
  %v1327 = vadd.f32 %v1242, %v1323
  %v1328 = vld [vmem:[%s906 + $0x5] sm:$0xff]
  %v1329 = vld [vmem:[%s906 + $0xd] sm:$0x3]
  %v1331 = vsel %vm61, %v1328, 0
  %v1334 = vsel %vm61, %v1329, 0
  %1336 = vmatprep.subr.mxu0 0.0
  %1337 = vmatpush1.msra.mxu0 %v509
  %1338 = vmatprep.subr.mxu0 0.0
  %1339 = vmatpush1.msra.mxu0 %v510
  %1340 = vmatprep.subr.mxu0 0.0
  %1341 = vmatpush1.msra.mxu0 %v511
  %1342 = vmatprep.subr.mxu0 0.0
  %1343 = vmatpush1.msra.mxu0 %v512
  %1344 = vmatprep.subr.mxu0 0.0
  %1345 = vmatpush1.msra.mxu0 %v513
  %1346 = vmatprep.subr.mxu0 0.0
  %1347 = vmatpush1.msra.mxu0 %v514
  %1348 = vmatprep.subr.mxu0 0.0
  %1349 = vmatpush1.msra.mxu0 %v515
  %1350 = vmatprep.subr.mxu0 0.0
  %1351 = vmatpush1.msra.mxu0 %v516
  %1352 = vmatprep.subr.mxu0 0.0
  %1353 = vmatpush1.msra.mxu0 0.0
  %1354 = vmatprep.subr.mxu0 0.0
  %1355 = vmatpush1.msra.mxu0 0.0
  %1356 = vmatprep.subr.mxu0 0.0
  %1357 = vmatpush1.msra.mxu0 0.0
  %1358 = vmatprep.subr.mxu0 0.0
  %1359 = vmatpush1.msra.mxu0 0.0
  %1360 = vmatprep.subr.mxu0 0.0
  %1361 = vmatpush1.msra.mxu0 0.0
  %1362 = vmatprep.subr.mxu0 0.0
  %1363 = vmatpush1.msra.mxu0 0.0
  %1364 = vmatprep.subr.mxu0 0.0
  %1365 = vmatpush1.msra.mxu0 0.0
  %1366 = vmatprep.subr.mxu0 0.0
  %1367 = vmatpush1.msra.mxu0 0.0
  %1368 = vmatprep.subr.mxu0 0.0
  %1369 = vmatpush1.msra.mxu0 0.0
  %1370 = vmatprep.subr.mxu0 0.0
  %1371 = vmatpush1.msra.mxu0 0.0
  %1372 = vmatprep.subr.mxu0 0.0
  %1373 = vmatpush1.msra.mxu0 0.0
  %1374 = vmatprep.subr.mxu0 0.0
  %1375 = vmatpush1.msra.mxu0 0.0
  %1376 = vmatprep.subr.mxu0 0.0
  %1377 = vmatpush1.msra.mxu0 0.0
  %1378 = vmatprep.subr.mxu0 0.0
  %1379 = vmatpush1.msra.mxu0 0.0
  %1380 = vmatprep.subr.mxu0 0.0
  %1381 = vmatpush1.msra.mxu0 0.0
  %1382 = vmatprep.subr.mxu0 0.0
  %1383 = vmatpush1.msra.mxu0 0.0
  %1384 = vmatprep.subr.mxu0 0.0
  %1385 = vmatpush1.msra.mxu0 0.0
  %1386 = vmatprep.subr.mxu0 0.0
  %1387 = vmatpush1.msra.mxu0 0.0
  %1388 = vmatprep.subr.mxu0 0.0
  %1389 = vmatpush1.msra.mxu0 0.0
  %1390 = vmatprep.subr.mxu0 0.0
  %1391 = vmatpush1.msra.mxu0 0.0
  %1392 = vmatprep.subr.mxu0 0.0
  %1393 = vmatpush1.msra.mxu0 0.0
  %1394 = vmatprep.subr.mxu0 0.0
  %1395 = vmatpush1.msra.mxu0 0.0
  %1396 = vmatprep.subr.mxu0 0.0
  %1397 = vmatpush1.msra.mxu0 0.0
  %1398 = vmatprep.subr.mxu0 0.0
  %1399 = vmatpush1.msra.mxu0 0.0
  %1400 = vmatprep.mubr.f32.mxu0 0.0
  %1401 = vmatmul.mubr.f32.gmra.mrb[0].mxu0 %v1331
  %v1402 = vpop.f32.mrb[0].mxu0
  %v1403 = vadd.f32 0.0, %v1402
  %v1404 = vpop.f32.mrb[0].mxu0
  %1405 = vmatprep.mubr.f32.mxu0 0.0
  %1406 = vmatmul.mubr.f32.gmra.mrb[0].mxu0 %v1334
  %v1407 = vpop.f32.mrb[0].mxu0
  %v1408 = vadd.f32 0.0, %v1407
  %v1409 = vpop.f32.mrb[0].mxu0
  %1410 = vdwg.mxu0
  %v1411 = vadd.f32 %v1326, %v1403
  %v1412 = vadd.f32 %v1327, %v1408
  %v1413 = vld [vmem:[%s906 + $0x6] sm:$0xff]
  %v1414 = vld [vmem:[%s906 + $0xe] sm:$0x3]
  %v1416 = vsel %vm61, %v1413, 0
  %v1419 = vsel %vm61, %v1414, 0
  %1421 = vmatprep.subr.mxu0 0.0
  %1422 = vmatpush1.msra.mxu0 %v603
  %1423 = vmatprep.subr.mxu0 0.0
  %1424 = vmatpush1.msra.mxu0 %v604
  %1425 = vmatprep.subr.mxu0 0.0
  %1426 = vmatpush1.msra.mxu0 %v605
  %1427 = vmatprep.subr.mxu0 0.0
  %1428 = vmatpush1.msra.mxu0 %v606
  %1429 = vmatprep.subr.mxu0 0.0
  %1430 = vmatpush1.msra.mxu0 %v607
  %1431 = vmatprep.subr.mxu0 0.0
  %1432 = vmatpush1.msra.mxu0 %v608
  %1433 = vmatprep.subr.mxu0 0.0
  %1434 = vmatpush1.msra.mxu0 %v609
  %1435 = vmatprep.subr.mxu0 0.0
  %1436 = vmatpush1.msra.mxu0 %v610
  %1437 = vmatprep.subr.mxu0 0.0
  %1438 = vmatpush1.msra.mxu0 0.0
  %1439 = vmatprep.subr.mxu0 0.0
  %1440 = vmatpush1.msra.mxu0 0.0
  %1441 = vmatprep.subr.mxu0 0.0
  %1442 = vmatpush1.msra.mxu0 0.0
  %1443 = vmatprep.subr.mxu0 0.0
  %1444 = vmatpush1.msra.mxu0 0.0
  %1445 = vmatprep.subr.mxu0 0.0
  %1446 = vmatpush1.msra.mxu0 0.0
  %1447 = vmatprep.subr.mxu0 0.0
  %1448 = vmatpush1.msra.mxu0 0.0
  %1449 = vmatprep.subr.mxu0 0.0
  %1450 = vmatpush1.msra.mxu0 0.0
  %1451 = vmatprep.subr.mxu0 0.0
  %1452 = vmatpush1.msra.mxu0 0.0
  %1453 = vmatprep.subr.mxu0 0.0
  %1454 = vmatpush1.msra.mxu0 0.0
  %1455 = vmatprep.subr.mxu0 0.0
  %1456 = vmatpush1.msra.mxu0 0.0
  %1457 = vmatprep.subr.mxu0 0.0
  %1458 = vmatpush1.msra.mxu0 0.0
  %1459 = vmatprep.subr.mxu0 0.0
  %1460 = vmatpush1.msra.mxu0 0.0
  %1461 = vmatprep.subr.mxu0 0.0
  %1462 = vmatpush1.msra.mxu0 0.0
  %1463 = vmatprep.subr.mxu0 0.0
  %1464 = vmatpush1.msra.mxu0 0.0
  %1465 = vmatprep.subr.mxu0 0.0
  %1466 = vmatpush1.msra.mxu0 0.0
  %1467 = vmatprep.subr.mxu0 0.0
  %1468 = vmatpush1.msra.mxu0 0.0
  %1469 = vmatprep.subr.mxu0 0.0
  %1470 = vmatpush1.msra.mxu0 0.0
  %1471 = vmatprep.subr.mxu0 0.0
  %1472 = vmatpush1.msra.mxu0 0.0
  %1473 = vmatprep.subr.mxu0 0.0
  %1474 = vmatpush1.msra.mxu0 0.0
  %1475 = vmatprep.subr.mxu0 0.0
  %1476 = vmatpush1.msra.mxu0 0.0
  %1477 = vmatprep.subr.mxu0 0.0
  %1478 = vmatpush1.msra.mxu0 0.0
  %1479 = vmatprep.subr.mxu0 0.0
  %1480 = vmatpush1.msra.mxu0 0.0
  %1481 = vmatprep.subr.mxu0 0.0
  %1482 = vmatpush1.msra.mxu0 0.0
  %1483 = vmatprep.subr.mxu0 0.0
  %1484 = vmatpush1.msra.mxu0 0.0
  %1485 = vmatprep.mubr.f32.mxu0 0.0
  %1486 = vmatmul.mubr.f32.gmra.mrb[0].mxu0 %v1416
  %v1487 = vpop.f32.mrb[0].mxu0
  %v1488 = vadd.f32 0.0, %v1487
  %v1489 = vpop.f32.mrb[0].mxu0
  %1490 = vmatprep.mubr.f32.mxu0 0.0
  %1491 = vmatmul.mubr.f32.gmra.mrb[0].mxu0 %v1419
  %v1492 = vpop.f32.mrb[0].mxu0
  %v1493 = vadd.f32 0.0, %v1492
  %v1494 = vpop.f32.mrb[0].mxu0
  %1495 = vdwg.mxu0
  %v1496 = vadd.f32 %v1411, %v1488
  %v1497 = vadd.f32 %v1412, %v1493
  %v1498 = vld [vmem:[%s906 + $0x7] sm:$0xff]
  %v1499 = vld [vmem:[%s906 + $0xf] sm:$0x3]
  %v1501 = vsel %vm61, %v1498, 0
  %v1504 = vsel %vm61, %v1499, 0
  %1506 = vmatprep.subr.mxu0 0.0
  %1507 = vmatpush1.msra.mxu0 %v697
  %1508 = vmatprep.subr.mxu0 0.0
  %1509 = vmatpush1.msra.mxu0 %v698
  %1510 = vmatprep.subr.mxu0 0.0
  %1511 = vmatpush1.msra.mxu0 %v699
  %1512 = vmatprep.subr.mxu0 0.0
  %1513 = vmatpush1.msra.mxu0 %v700
  %1514 = vmatprep.subr.mxu0 0.0
  %1515 = vmatpush1.msra.mxu0 %v701
  %1516 = vmatprep.subr.mxu0 0.0
  %1517 = vmatpush1.msra.mxu0 %v702
  %1518 = vmatprep.subr.mxu0 0.0
  %1519 = vmatpush1.msra.mxu0 %v703
  %1520 = vmatprep.subr.mxu0 0.0
  %1521 = vmatpush1.msra.mxu0 %v704
  %1522 = vmatprep.subr.mxu0 0.0
  %1523 = vmatpush1.msra.mxu0 0.0
  %1524 = vmatprep.subr.mxu0 0.0
  %1525 = vmatpush1.msra.mxu0 0.0
  %1526 = vmatprep.subr.mxu0 0.0
  %1527 = vmatpush1.msra.mxu0 0.0
  %1528 = vmatprep.subr.mxu0 0.0
  %1529 = vmatpush1.msra.mxu0 0.0
  %1530 = vmatprep.subr.mxu0 0.0
  %1531 = vmatpush1.msra.mxu0 0.0
  %1532 = vmatprep.subr.mxu0 0.0
  %1533 = vmatpush1.msra.mxu0 0.0
  %1534 = vmatprep.subr.mxu0 0.0
  %1535 = vmatpush1.msra.mxu0 0.0
  %1536 = vmatprep.subr.mxu0 0.0
  %1537 = vmatpush1.msra.mxu0 0.0
  %1538 = vmatprep.subr.mxu0 0.0
  %1539 = vmatpush1.msra.mxu0 0.0
  %1540 = vmatprep.subr.mxu0 0.0
  %1541 = vmatpush1.msra.mxu0 0.0
  %1542 = vmatprep.subr.mxu0 0.0
  %1543 = vmatpush1.msra.mxu0 0.0
  %1544 = vmatprep.subr.mxu0 0.0
  %1545 = vmatpush1.msra.mxu0 0.0
  %1546 = vmatprep.subr.mxu0 0.0
  %1547 = vmatpush1.msra.mxu0 0.0
  %1548 = vmatprep.subr.mxu0 0.0
  %1549 = vmatpush1.msra.mxu0 0.0
  %1550 = vmatprep.subr.mxu0 0.0
  %1551 = vmatpush1.msra.mxu0 0.0
  %1552 = vmatprep.subr.mxu0 0.0
  %1553 = vmatpush1.msra.mxu0 0.0
  %1554 = vmatprep.subr.mxu0 0.0
  %1555 = vmatpush1.msra.mxu0 0.0
  %1556 = vmatprep.subr.mxu0 0.0
  %1557 = vmatpush1.msra.mxu0 0.0
  %1558 = vmatprep.subr.mxu0 0.0
  %1559 = vmatpush1.msra.mxu0 0.0
  %1560 = vmatprep.subr.mxu0 0.0
  %1561 = vmatpush1.msra.mxu0 0.0
  %1562 = vmatprep.subr.mxu0 0.0
  %1563 = vmatpush1.msra.mxu0 0.0
  %1564 = vmatprep.subr.mxu0 0.0
  %1565 = vmatpush1.msra.mxu0 0.0
  %1566 = vmatprep.subr.mxu0 0.0
  %1567 = vmatpush1.msra.mxu0 0.0
  %1568 = vmatprep.subr.mxu0 0.0
  %1569 = vmatpush1.msra.mxu0 0.0
  %1570 = vmatprep.mubr.f32.mxu0 0.0
  %1571 = vmatmul.mubr.f32.gmra.mrb[0].mxu0 %v1501
  %v1572 = vpop.f32.mrb[0].mxu0
  %v1573 = vadd.f32 0.0, %v1572
  %v1574 = vpop.f32.mrb[0].mxu0
  %1575 = vmatprep.mubr.f32.mxu0 0.0
  %1576 = vmatmul.mubr.f32.gmra.mrb[0].mxu0 %v1504
  %v1577 = vpop.f32.mrb[0].mxu0
  %v1578 = vadd.f32 0.0, %v1577
  %v1579 = vpop.f32.mrb[0].mxu0
  %1580 = vdwg.mxu0
  %v1581 = vadd.f32 %v1496, %v1573
  %v1582 = vadd.f32 %v1497, %v1578
  %v1583 = vld [vmem:[%s906 + $0x8] sm:$0xff]
  %v1584 = vld [vmem:[%s906 + $0x10] sm:$0x3]
  %v1586 = vsel %vm61, %v1583, 0
  %v1589 = vsel %vm61, %v1584, 0
  %1591 = vmatprep.subr.mxu0 0.0
  %1592 = vmatpush1.msra.mxu0 %v791
  %1593 = vmatprep.subr.mxu0 0.0
  %1594 = vmatpush1.msra.mxu0 %v792
  %1595 = vmatprep.subr.mxu0 0.0
  %1596 = vmatpush1.msra.mxu0 %v793
  %1597 = vmatprep.subr.mxu0 0.0
  %1598 = vmatpush1.msra.mxu0 %v794
  %1599 = vmatprep.subr.mxu0 0.0
  %1600 = vmatpush1.msra.mxu0 %v795
  %1601 = vmatprep.subr.mxu0 0.0
  %1602 = vmatpush1.msra.mxu0 %v796
  %1603 = vmatprep.subr.mxu0 0.0
  %1604 = vmatpush1.msra.mxu0 %v797
  %1605 = vmatprep.subr.mxu0 0.0
  %1606 = vmatpush1.msra.mxu0 %v798
  %1607 = vmatprep.subr.mxu0 0.0
  %1608 = vmatpush1.msra.mxu0 0.0
  %1609 = vmatprep.subr.mxu0 0.0
  %1610 = vmatpush1.msra.mxu0 0.0
  %1611 = vmatprep.subr.mxu0 0.0
  %1612 = vmatpush1.msra.mxu0 0.0
  %1613 = vmatprep.subr.mxu0 0.0
  %1614 = vmatpush1.msra.mxu0 0.0
  %1615 = vmatprep.subr.mxu0 0.0
  %1616 = vmatpush1.msra.mxu0 0.0
  %1617 = vmatprep.subr.mxu0 0.0
  %1618 = vmatpush1.msra.mxu0 0.0
  %1619 = vmatprep.subr.mxu0 0.0
  %1620 = vmatpush1.msra.mxu0 0.0
  %1621 = vmatprep.subr.mxu0 0.0
  %1622 = vmatpush1.msra.mxu0 0.0
  %1623 = vmatprep.subr.mxu0 0.0
  %1624 = vmatpush1.msra.mxu0 0.0
  %1625 = vmatprep.subr.mxu0 0.0
  %1626 = vmatpush1.msra.mxu0 0.0
  %1627 = vmatprep.subr.mxu0 0.0
  %1628 = vmatpush1.msra.mxu0 0.0
  %1629 = vmatprep.subr.mxu0 0.0
  %1630 = vmatpush1.msra.mxu0 0.0
  %1631 = vmatprep.subr.mxu0 0.0
  %1632 = vmatpush1.msra.mxu0 0.0
  %1633 = vmatprep.subr.mxu0 0.0
  %1634 = vmatpush1.msra.mxu0 0.0
  %1635 = vmatprep.subr.mxu0 0.0
  %1636 = vmatpush1.msra.mxu0 0.0
  %1637 = vmatprep.subr.mxu0 0.0
  %1638 = vmatpush1.msra.mxu0 0.0
  %1639 = vmatprep.subr.mxu0 0.0
  %1640 = vmatpush1.msra.mxu0 0.0
  %1641 = vmatprep.subr.mxu0 0.0
  %1642 = vmatpush1.msra.mxu0 0.0
  %1643 = vmatprep.subr.mxu0 0.0
  %1644 = vmatpush1.msra.mxu0 0.0
  %1645 = vmatprep.subr.mxu0 0.0
  %1646 = vmatpush1.msra.mxu0 0.0
  %1647 = vmatprep.subr.mxu0 0.0
  %1648 = vmatpush1.msra.mxu0 0.0
  %1649 = vmatprep.subr.mxu0 0.0
  %1650 = vmatpush1.msra.mxu0 0.0
  %1651 = vmatprep.subr.mxu0 0.0
  %1652 = vmatpush1.msra.mxu0 0.0
  %1653 = vmatprep.subr.mxu0 0.0
  %1654 = vmatpush1.msra.mxu0 0.0
  %1655 = vmatprep.mubr.f32.mxu0 0.0
  %1656 = vmatmul.mubr.f32.gmra.mrb[0].mxu0 %v1586
  %v1657 = vpop.f32.mrb[0].mxu0
  %v1658 = vadd.f32 0.0, %v1657
  %v1659 = vpop.f32.mrb[0].mxu0
  %1660 = vmatprep.mubr.f32.mxu0 0.0
  %1661 = vmatmul.mubr.f32.gmra.mrb[0].mxu0 %v1589
  %v1662 = vpop.f32.mrb[0].mxu0
  %v1663 = vadd.f32 0.0, %v1662
  %v1664 = vpop.f32.mrb[0].mxu0
  %1665 = vdwg.mxu0
  %v1666 = vadd.f32 %v1581, %v1658
  %v1667 = vadd.f32 %v1582, %v1663
  %v1668 = vsel %vm882, %v1666, 0.0
  %v1669 = vsel %vm884, %v1667, 0.0
  %v1670 = vadd.f32 %v1668, %v1669
  %v1671 = vrot.slane %v1670, 4
  %v1672 = vadd.f32 %v1670, %v1671
  %v1673 = vrot.slane %v1672, 2
  %v1674 = vadd.f32 %v1672, %v1673
  %v1675 = vrot.slane %v1674, 1
  %v1676 = vadd.f32 %v1674, %v1675
  %v1677 = vadd.f32 %v893, %v1676
  %v1678 = vmul.f32 %v1666, %v1666
  %v1679 = vmul.f32 %v1667, %v1667
  %v1680 = vsel %vm882, %v1678, 0.0
  %v1681 = vsel %vm884, %v1679, 0.0
  %v1682 = vadd.f32 %v1680, %v1681
  %v1683 = vrot.slane %v1682, 4
  %v1684 = vadd.f32 %v1682, %v1683
  %v1685 = vrot.slane %v1684, 2
  %v1686 = vadd.f32 %v1684, %v1685
  %v1687 = vrot.slane %v1686, 1
  %v1688 = vadd.f32 %v1686, %v1687
  %v1689 = vadd.f32 %v905, %v1688
  %v1690 = vld [vmem:[%s4] sm:$0xff]
  %v1691 = vld [vmem:[%s4 + $0x8] sm:$0xff]
  %v1692 = vld [vmem:[%s4 + $0x10] sm:$0xff]
  %v1693 = vld [vmem:[%s4 + $0x18] sm:$0xff]
  %v1694 = vld [vmem:[%s4 + $0x20] sm:$0xff]
  %v1695 = vld [vmem:[%s4 + $0x28] sm:$0xff]
  %v1696 = vld [vmem:[%s4 + $0x30] sm:$0xff]
  %v1697 = vld [vmem:[%s4 + $0x38] sm:$0xff]
  %v1698 = vld [vmem:[%s4 + $0x40] sm:$0xff]
  %v1699 = vld [vmem:[%s4 + $0x48] sm:$0xff]
  %v1701 = vsel %vm882, %v1677, 0
  %1703 = vmatprep.subr.mxu0 0.0
  %1704 = vmatpush1.msra.mxu0 %v1690
  %1705 = vmatprep.subr.mxu0 0.0
  %1706 = vmatpush1.msra.mxu0 %v1691
  %1707 = vmatprep.subr.mxu0 0.0
  %1708 = vmatpush1.msra.mxu0 %v1692
  %1709 = vmatprep.subr.mxu0 0.0
  %1710 = vmatpush1.msra.mxu0 %v1693
  %1711 = vmatprep.subr.mxu0 0.0
  %1712 = vmatpush1.msra.mxu0 %v1694
  %1713 = vmatprep.subr.mxu0 0.0
  %1714 = vmatpush1.msra.mxu0 %v1695
  %1715 = vmatprep.subr.mxu0 0.0
  %1716 = vmatpush1.msra.mxu0 %v1696
  %1717 = vmatprep.subr.mxu0 0.0
  %1718 = vmatpush1.msra.mxu0 %v1697
  %1719 = vmatprep.subr.mxu0 0.0
  %1720 = vmatpush1.msra.mxu0 %v1698
  %1721 = vmatprep.subr.mxu0 0.0
  %1722 = vmatpush1.msra.mxu0 %v1699
  %1723 = vmatprep.subr.mxu0 0.0
  %1724 = vmatpush1.msra.mxu0 0.0
  %1725 = vmatprep.subr.mxu0 0.0
  %1726 = vmatpush1.msra.mxu0 0.0
  %1727 = vmatprep.subr.mxu0 0.0
  %1728 = vmatpush1.msra.mxu0 0.0
  %1729 = vmatprep.subr.mxu0 0.0
  %1730 = vmatpush1.msra.mxu0 0.0
  %1731 = vmatprep.subr.mxu0 0.0
  %1732 = vmatpush1.msra.mxu0 0.0
  %1733 = vmatprep.subr.mxu0 0.0
  %1734 = vmatpush1.msra.mxu0 0.0
  %1735 = vmatprep.subr.mxu0 0.0
  %1736 = vmatpush1.msra.mxu0 0.0
  %1737 = vmatprep.subr.mxu0 0.0
  %1738 = vmatpush1.msra.mxu0 0.0
  %1739 = vmatprep.subr.mxu0 0.0
  %1740 = vmatpush1.msra.mxu0 0.0
  %1741 = vmatprep.subr.mxu0 0.0
  %1742 = vmatpush1.msra.mxu0 0.0
  %1743 = vmatprep.subr.mxu0 0.0
  %1744 = vmatpush1.msra.mxu0 0.0
  %1745 = vmatprep.subr.mxu0 0.0
  %1746 = vmatpush1.msra.mxu0 0.0
  %1747 = vmatprep.subr.mxu0 0.0
  %1748 = vmatpush1.msra.mxu0 0.0
  %1749 = vmatprep.subr.mxu0 0.0
  %1750 = vmatpush1.msra.mxu0 0.0
  %1751 = vmatprep.subr.mxu0 0.0
  %1752 = vmatpush1.msra.mxu0 0.0
  %1753 = vmatprep.subr.mxu0 0.0
  %1754 = vmatpush1.msra.mxu0 0.0
  %1755 = vmatprep.subr.mxu0 0.0
  %1756 = vmatpush1.msra.mxu0 0.0
  %1757 = vmatprep.subr.mxu0 0.0
  %1758 = vmatpush1.msra.mxu0 0.0
  %1759 = vmatprep.subr.mxu0 0.0
  %1760 = vmatpush1.msra.mxu0 0.0
  %1761 = vmatprep.subr.mxu0 0.0
  %1762 = vmatpush1.msra.mxu0 0.0
  %1763 = vmatprep.subr.mxu0 0.0
  %1764 = vmatpush1.msra.mxu0 0.0
  %1765 = vmatprep.subr.mxu0 0.0
  %1766 = vmatpush1.msra.mxu0 0.0
  %1767 = vmatprep.mubr.f32.mxu0 0.0
  %1768 = vmatmul.mubr.f32.gmra.mrb[0].mxu0 %v1701
  %v1769 = vpop.f32.mrb[0].mxu0
  %v1770 = vadd.f32 0.0, %v1769
  %v1771 = vpop.f32.mrb[0].mxu0
  %1772 = vdwg.mxu0
  %v1774 = vsel %vm882, %v1689, 0
  %1776 = vmatprep.subr.mxu0 0.0
  %1777 = vmatpush1.msra.mxu0 %v1690
  %1778 = vmatprep.subr.mxu0 0.0
  %1779 = vmatpush1.msra.mxu0 %v1691
  %1780 = vmatprep.subr.mxu0 0.0
  %1781 = vmatpush1.msra.mxu0 %v1692
  %1782 = vmatprep.subr.mxu0 0.0
  %1783 = vmatpush1.msra.mxu0 %v1693
  %1784 = vmatprep.subr.mxu0 0.0
  %1785 = vmatpush1.msra.mxu0 %v1694
  %1786 = vmatprep.subr.mxu0 0.0
  %1787 = vmatpush1.msra.mxu0 %v1695
  %1788 = vmatprep.subr.mxu0 0.0
  %1789 = vmatpush1.msra.mxu0 %v1696
  %1790 = vmatprep.subr.mxu0 0.0
  %1791 = vmatpush1.msra.mxu0 %v1697
  %1792 = vmatprep.subr.mxu0 0.0
  %1793 = vmatpush1.msra.mxu0 %v1698
  %1794 = vmatprep.subr.mxu0 0.0
  %1795 = vmatpush1.msra.mxu0 %v1699
  %1796 = vmatprep.subr.mxu0 0.0
  %1797 = vmatpush1.msra.mxu0 0.0
  %1798 = vmatprep.subr.mxu0 0.0
  %1799 = vmatpush1.msra.mxu0 0.0
  %1800 = vmatprep.subr.mxu0 0.0
  %1801 = vmatpush1.msra.mxu0 0.0
  %1802 = vmatprep.subr.mxu0 0.0
  %1803 = vmatpush1.msra.mxu0 0.0
  %1804 = vmatprep.subr.mxu0 0.0
  %1805 = vmatpush1.msra.mxu0 0.0
  %1806 = vmatprep.subr.mxu0 0.0
  %1807 = vmatpush1.msra.mxu0 0.0
  %1808 = vmatprep.subr.mxu0 0.0
  %1809 = vmatpush1.msra.mxu0 0.0
  %1810 = vmatprep.subr.mxu0 0.0
  %1811 = vmatpush1.msra.mxu0 0.0
  %1812 = vmatprep.subr.mxu0 0.0
  %1813 = vmatpush1.msra.mxu0 0.0
  %1814 = vmatprep.subr.mxu0 0.0
  %1815 = vmatpush1.msra.mxu0 0.0
  %1816 = vmatprep.subr.mxu0 0.0
  %1817 = vmatpush1.msra.mxu0 0.0
  %1818 = vmatprep.subr.mxu0 0.0
  %1819 = vmatpush1.msra.mxu0 0.0
  %1820 = vmatprep.subr.mxu0 0.0
  %1821 = vmatpush1.msra.mxu0 0.0
  %1822 = vmatprep.subr.mxu0 0.0
  %1823 = vmatpush1.msra.mxu0 0.0
  %1824 = vmatprep.subr.mxu0 0.0
  %1825 = vmatpush1.msra.mxu0 0.0
  %1826 = vmatprep.subr.mxu0 0.0
  %1827 = vmatpush1.msra.mxu0 0.0
  %1828 = vmatprep.subr.mxu0 0.0
  %1829 = vmatpush1.msra.mxu0 0.0
  %1830 = vmatprep.subr.mxu0 0.0
  %1831 = vmatpush1.msra.mxu0 0.0
  %1832 = vmatprep.subr.mxu0 0.0
  %1833 = vmatpush1.msra.mxu0 0.0
  %1834 = vmatprep.subr.mxu0 0.0
  %1835 = vmatpush1.msra.mxu0 0.0
  %1836 = vmatprep.subr.mxu0 0.0
  %1837 = vmatpush1.msra.mxu0 0.0
  %1838 = vmatprep.subr.mxu0 0.0
  %1839 = vmatpush1.msra.mxu0 0.0
  %1840 = vmatprep.mubr.f32.mxu0 0.0
  %1841 = vmatmul.mubr.f32.gmra.mrb[0].mxu0 %v1774
  %v1842 = vpop.f32.mrb[0].mxu0
  %v1843 = vadd.f32 0.0, %v1842
  %v1844 = vpop.f32.mrb[0].mxu0
  %1845 = vdwg.mxu0
  %v1846 = vmul.f32 %v1770, 0.005
  %v1847 = vmul.f32 %v1843, 0.005
  %v1848 = vmul.f32 %v1846, %v1846
  %v1849 = vsub.f32 %v1847, %v1848
  %v1850 = vmax.f32 %v1849, 0.0
  %v1851 = vadd.f32 %v1850, 1e-05
  %v1852 = vrsqrt.pop %v1851
  %v1853 = vmul.f32 %v1852, %v38
  %v1854 = vmul.f32 %v1846, %v1853
  %v1855 = vsub.f32 %v39, %v1854
  %v1856 = vld [vmem:[%s5] sm:$0xff]
  %vm1857 = vcmask 64512
  %v1859 = vsel %vm1857, %v1853, 0
  %1861 = vmatprep.subr.mxu0 0.0
  %1862 = vmatpush1.msra.mxu0 %v1856
  %1863 = vmatprep.subr.mxu0 0.0
  %1864 = vmatpush1.msra.mxu0 0.0
  %1865 = vmatprep.subr.mxu0 0.0
  %1866 = vmatpush1.msra.mxu0 0.0
  %1867 = vmatprep.subr.mxu0 0.0
  %1868 = vmatpush1.msra.mxu0 0.0
  %1869 = vmatprep.subr.mxu0 0.0
  %1870 = vmatpush1.msra.mxu0 0.0
  %1871 = vmatprep.subr.mxu0 0.0
  %1872 = vmatpush1.msra.mxu0 0.0
  %1873 = vmatprep.subr.mxu0 0.0
  %1874 = vmatpush1.msra.mxu0 0.0
  %1875 = vmatprep.subr.mxu0 0.0
  %1876 = vmatpush1.msra.mxu0 0.0
  %1877 = vmatprep.subr.mxu0 0.0
  %1878 = vmatpush1.msra.mxu0 0.0
  %1879 = vmatprep.subr.mxu0 0.0
  %1880 = vmatpush1.msra.mxu0 0.0
  %1881 = vmatprep.subr.mxu0 0.0
  %1882 = vmatpush1.msra.mxu0 0.0
  %1883 = vmatprep.subr.mxu0 0.0
  %1884 = vmatpush1.msra.mxu0 0.0
  %1885 = vmatprep.subr.mxu0 0.0
  %1886 = vmatpush1.msra.mxu0 0.0
  %1887 = vmatprep.subr.mxu0 0.0
  %1888 = vmatpush1.msra.mxu0 0.0
  %1889 = vmatprep.subr.mxu0 0.0
  %1890 = vmatpush1.msra.mxu0 0.0
  %1891 = vmatprep.subr.mxu0 0.0
  %1892 = vmatpush1.msra.mxu0 0.0
  %1893 = vmatprep.subr.mxu0 0.0
  %1894 = vmatpush1.msra.mxu0 0.0
  %1895 = vmatprep.subr.mxu0 0.0
  %1896 = vmatpush1.msra.mxu0 0.0
  %1897 = vmatprep.subr.mxu0 0.0
  %1898 = vmatpush1.msra.mxu0 0.0
  %1899 = vmatprep.subr.mxu0 0.0
  %1900 = vmatpush1.msra.mxu0 0.0
  %1901 = vmatprep.subr.mxu0 0.0
  %1902 = vmatpush1.msra.mxu0 0.0
  %1903 = vmatprep.subr.mxu0 0.0
  %1904 = vmatpush1.msra.mxu0 0.0
  %1905 = vmatprep.subr.mxu0 0.0
  %1906 = vmatpush1.msra.mxu0 0.0
  %1907 = vmatprep.subr.mxu0 0.0
  %1908 = vmatpush1.msra.mxu0 0.0
  %1909 = vmatprep.subr.mxu0 0.0
  %1910 = vmatpush1.msra.mxu0 0.0
  %1911 = vmatprep.subr.mxu0 0.0
  %1912 = vmatpush1.msra.mxu0 0.0
  %1913 = vmatprep.subr.mxu0 0.0
  %1914 = vmatpush1.msra.mxu0 0.0
  %1915 = vmatprep.subr.mxu0 0.0
  %1916 = vmatpush1.msra.mxu0 0.0
  %1917 = vmatprep.subr.mxu0 0.0
  %1918 = vmatpush1.msra.mxu0 0.0
  %1919 = vmatprep.subr.mxu0 0.0
  %1920 = vmatpush1.msra.mxu0 0.0
  %1921 = vmatprep.subr.mxu0 0.0
  %1922 = vmatpush1.msra.mxu0 0.0
  %1923 = vmatprep.subr.mxu0 0.0
  %1924 = vmatpush1.msra.mxu0 0.0
  %1925 = vmatprep.mubr.f32.mxu0 0.0
  %1926 = vmatmul.mubr.f32.gmra.mrb[0].mxu0 %v1859
  %v1927 = vpop.f32.mrb[0].mxu0
  %v1928 = vadd.f32 0.0, %v1927
  %v1929 = vpop.f32.mrb[0].mxu0
  %1930 = vdwg.mxu0
  %v1932 = vsel %vm1857, %v1855, 0
  %1934 = vmatprep.subr.mxu0 0.0
  %1935 = vmatpush1.msra.mxu0 %v1856
  %1936 = vmatprep.subr.mxu0 0.0
  %1937 = vmatpush1.msra.mxu0 0.0
  %1938 = vmatprep.subr.mxu0 0.0
  %1939 = vmatpush1.msra.mxu0 0.0
  %1940 = vmatprep.subr.mxu0 0.0
  %1941 = vmatpush1.msra.mxu0 0.0
  %1942 = vmatprep.subr.mxu0 0.0
  %1943 = vmatpush1.msra.mxu0 0.0
  %1944 = vmatprep.subr.mxu0 0.0
  %1945 = vmatpush1.msra.mxu0 0.0
  %1946 = vmatprep.subr.mxu0 0.0
  %1947 = vmatpush1.msra.mxu0 0.0
  %1948 = vmatprep.subr.mxu0 0.0
  %1949 = vmatpush1.msra.mxu0 0.0
  %1950 = vmatprep.subr.mxu0 0.0
  %1951 = vmatpush1.msra.mxu0 0.0
  %1952 = vmatprep.subr.mxu0 0.0
  %1953 = vmatpush1.msra.mxu0 0.0
  %1954 = vmatprep.subr.mxu0 0.0
  %1955 = vmatpush1.msra.mxu0 0.0
  %1956 = vmatprep.subr.mxu0 0.0
  %1957 = vmatpush1.msra.mxu0 0.0
  %1958 = vmatprep.subr.mxu0 0.0
  %1959 = vmatpush1.msra.mxu0 0.0
  %1960 = vmatprep.subr.mxu0 0.0
  %1961 = vmatpush1.msra.mxu0 0.0
  %1962 = vmatprep.subr.mxu0 0.0
  %1963 = vmatpush1.msra.mxu0 0.0
  %1964 = vmatprep.subr.mxu0 0.0
  %1965 = vmatpush1.msra.mxu0 0.0
  %1966 = vmatprep.subr.mxu0 0.0
  %1967 = vmatpush1.msra.mxu0 0.0
  %1968 = vmatprep.subr.mxu0 0.0
  %1969 = vmatpush1.msra.mxu0 0.0
  %1970 = vmatprep.subr.mxu0 0.0
  %1971 = vmatpush1.msra.mxu0 0.0
  %1972 = vmatprep.subr.mxu0 0.0
  %1973 = vmatpush1.msra.mxu0 0.0
  %1974 = vmatprep.subr.mxu0 0.0
  %1975 = vmatpush1.msra.mxu0 0.0
  %1976 = vmatprep.subr.mxu0 0.0
  %1977 = vmatpush1.msra.mxu0 0.0
  %1978 = vmatprep.subr.mxu0 0.0
  %1979 = vmatpush1.msra.mxu0 0.0
  %1980 = vmatprep.subr.mxu0 0.0
  %1981 = vmatpush1.msra.mxu0 0.0
  %1982 = vmatprep.subr.mxu0 0.0
  %1983 = vmatpush1.msra.mxu0 0.0
  %1984 = vmatprep.subr.mxu0 0.0
  %1985 = vmatpush1.msra.mxu0 0.0
  %1986 = vmatprep.subr.mxu0 0.0
  %1987 = vmatpush1.msra.mxu0 0.0
  %1988 = vmatprep.subr.mxu0 0.0
  %1989 = vmatpush1.msra.mxu0 0.0
  %1990 = vmatprep.subr.mxu0 0.0
  %1991 = vmatpush1.msra.mxu0 0.0
  %1992 = vmatprep.subr.mxu0 0.0
  %1993 = vmatpush1.msra.mxu0 0.0
  %1994 = vmatprep.subr.mxu0 0.0
  %1995 = vmatpush1.msra.mxu0 0.0
  %1996 = vmatprep.subr.mxu0 0.0
  %1997 = vmatpush1.msra.mxu0 0.0
  %1998 = vmatprep.mubr.f32.mxu0 0.0
  %1999 = vmatmul.mubr.f32.gmra.mrb[0].mxu0 %v1932
  %v2000 = vpop.f32.mrb[0].mxu0
  %v2001 = vadd.f32 0.0, %v2000
  %v2002 = vpop.f32.mrb[0].mxu0
  %2003 = vdwg.mxu0
  %v2004 = vlaneseq
  %v2005 = vshrl.u32 %v2004, 7
  %v2006 = vsub.s32 0, %v2005
  %v2007 = vrot.slane %v1928, %v2006
  %v2008 = vmul.f32 %v880, %v2007
  %v2009 = vmul.f32 %v881, %v2007
  %v2010 = vlaneseq
  %v2011 = vshrl.u32 %v2010, 7
  %v2012 = vsub.s32 0, %v2011
  %v2013 = vrot.slane %v2001, %v2012
  %v2014 = vadd.f32 %v2008, %v2013
  %v2015 = vadd.f32 %v2009, %v2013
  %v2016 = vmax.f32 %v2014, 0.0
  %v2017 = vmax.f32 %v2015, 0.0
  %v2018 = vmul.f32 %v1666, %v2007
  %v2019 = vmul.f32 %v1667, %v2007
  %v2020 = vadd.f32 %v2018, %v2013
  %v2021 = vadd.f32 %v2019, %v2013
  %v2022 = vmax.f32 %v2020, 0.0
  %v2023 = vmax.f32 %v2021, 0.0
  %vm2026 = vcmask 1040384
  %v2027 = vrot.slane %v2016, 7
  %v2028 = vrot.slane %v2017, 7
  %v2029 = vsel %vm2026, %v2027, %v2028
  %v2032 = vsel %vm2026, 0.0, %v2027
  %vm2033 = vcmask 1042432
  %v2034 = vsel %vm2033, %v2029, 0.0
  %v2037 = vrot.slane %v2022, 7
  %v2038 = vrot.slane %v2023, 7
  %v2039 = vsel %vm2026, %v2037, %v2038
  %v2042 = vsel %vm2026, 0.0, %v2037
  %v2043 = vsel %vm2033, %v2039, 0.0
  %v2044 = vld [vmem:[%s7] sm:$0x1]
  %v2045 = vld [vmem:[%s8] sm:$0x1]
  %v2046 = vld [vmem:[%s6] sm:$0xff]
  %v2047 = vld [vmem:[%s6 + $0x8] sm:$0xff]
  %v2048 = vld [vmem:[%s6 + $0x10] sm:$0xff]
  %v2049 = vld [vmem:[%s6 + $0x18] sm:$0xff]
  %v2050 = vld [vmem:[%s6 + $0x20] sm:$0xff]
  %v2051 = vld [vmem:[%s6 + $0x28] sm:$0xff]
  %v2052 = vld [vmem:[%s6 + $0x30] sm:$0xff]
  %v2053 = vld [vmem:[%s6 + $0x38] sm:$0xff]
  %v2054 = vld [vmem:[%s6 + $0x40] sm:$0xff]
  %v2055 = vld [vmem:[%s6 + $0x48] sm:$0xff]
  %s2056 = scalar_lea.vmem %s6, 80
  %v2057 = vld [vmem:[%s2056] sm:$0xff]
  %v2058 = vld [vmem:[%s2056 + $0x8] sm:$0xff]
  %v2059 = vld [vmem:[%s2056 + $0x10] sm:$0xff]
  %v2060 = vld [vmem:[%s2056 + $0x18] sm:$0xff]
  %v2061 = vld [vmem:[%s2056 + $0x20] sm:$0xff]
  %v2062 = vld [vmem:[%s2056 + $0x28] sm:$0xff]
  %v2063 = vld [vmem:[%s2056 + $0x30] sm:$0xff]
  %v2064 = vld [vmem:[%s2056 + $0x38] sm:$0xff]
  %v2065 = vld [vmem:[%s2056 + $0x40] sm:$0xff]
  %v2066 = vld [vmem:[%s2056 + $0x48] sm:$0xff]
  %v2068 = vrot.slane %v2032, 1
  %v2069 = vsel %vm882, %v2068, 0
  %2071 = vmatprep.subr.mxu0 0.0
  %2072 = vmatpush1.msra.mxu0 %v2057
  %2073 = vmatprep.subr.mxu0 0.0
  %2074 = vmatpush1.msra.mxu0 %v2058
  %2075 = vmatprep.subr.mxu0 0.0
  %2076 = vmatpush1.msra.mxu0 %v2059
  %2077 = vmatprep.subr.mxu0 0.0
  %2078 = vmatpush1.msra.mxu0 %v2060
  %2079 = vmatprep.subr.mxu0 0.0
  %2080 = vmatpush1.msra.mxu0 %v2061
  %2081 = vmatprep.subr.mxu0 0.0
  %2082 = vmatpush1.msra.mxu0 %v2062
  %2083 = vmatprep.subr.mxu0 0.0
  %2084 = vmatpush1.msra.mxu0 %v2063
  %2085 = vmatprep.subr.mxu0 0.0
  %2086 = vmatpush1.msra.mxu0 %v2064
  %2087 = vmatprep.subr.mxu0 0.0
  %2088 = vmatpush1.msra.mxu0 %v2065
  %2089 = vmatprep.subr.mxu0 0.0
  %2090 = vmatpush1.msra.mxu0 %v2066
  %2091 = vmatprep.subr.mxu0 0.0
  %2092 = vmatpush1.msra.mxu0 0.0
  %2093 = vmatprep.subr.mxu0 0.0
  %2094 = vmatpush1.msra.mxu0 0.0
  %2095 = vmatprep.subr.mxu0 0.0
  %2096 = vmatpush1.msra.mxu0 0.0
  %2097 = vmatprep.subr.mxu0 0.0
  %2098 = vmatpush1.msra.mxu0 0.0
  %2099 = vmatprep.subr.mxu0 0.0
  %2100 = vmatpush1.msra.mxu0 0.0
  %2101 = vmatprep.subr.mxu0 0.0
  %2102 = vmatpush1.msra.mxu0 0.0
  %2103 = vmatprep.subr.mxu0 0.0
  %2104 = vmatpush1.msra.mxu0 0.0
  %2105 = vmatprep.subr.mxu0 0.0
  %2106 = vmatpush1.msra.mxu0 0.0
  %2107 = vmatprep.subr.mxu0 0.0
  %2108 = vmatpush1.msra.mxu0 0.0
  %2109 = vmatprep.subr.mxu0 0.0
  %2110 = vmatpush1.msra.mxu0 0.0
  %2111 = vmatprep.subr.mxu0 0.0
  %2112 = vmatpush1.msra.mxu0 0.0
  %2113 = vmatprep.subr.mxu0 0.0
  %2114 = vmatpush1.msra.mxu0 0.0
  %2115 = vmatprep.subr.mxu0 0.0
  %2116 = vmatpush1.msra.mxu0 0.0
  %2117 = vmatprep.subr.mxu0 0.0
  %2118 = vmatpush1.msra.mxu0 0.0
  %2119 = vmatprep.subr.mxu0 0.0
  %2120 = vmatpush1.msra.mxu0 0.0
  %2121 = vmatprep.subr.mxu0 0.0
  %2122 = vmatpush1.msra.mxu0 0.0
  %2123 = vmatprep.subr.mxu0 0.0
  %2124 = vmatpush1.msra.mxu0 0.0
  %2125 = vmatprep.subr.mxu0 0.0
  %2126 = vmatpush1.msra.mxu0 0.0
  %2127 = vmatprep.subr.mxu0 0.0
  %2128 = vmatpush1.msra.mxu0 0.0
  %2129 = vmatprep.subr.mxu0 0.0
  %2130 = vmatpush1.msra.mxu0 0.0
  %2131 = vmatprep.subr.mxu0 0.0
  %2132 = vmatpush1.msra.mxu0 0.0
  %2133 = vmatprep.subr.mxu0 0.0
  %2134 = vmatpush1.msra.mxu0 0.0
  %2135 = vmatprep.mubr.f32.mxu0 0.0
  %2136 = vmatmul.mubr.f32.gmra.mrb[0].mxu0 %v2069
  %v2137 = vpop.f32.mrb[0].mxu0
  %v2138 = vadd.f32 0.0, %v2137
  %v2139 = vpop.f32.mrb[0].mxu0
  %2140 = vdwg.mxu0
  %v2141 = vsel %vm882, %v2032, 0
  %2143 = vmatprep.subr.mxu0 0.0
  %2144 = vmatpush1.msra.mxu0 %v2046
  %2145 = vmatprep.subr.mxu0 0.0
  %2146 = vmatpush1.msra.mxu0 %v2047
  %2147 = vmatprep.subr.mxu0 0.0
  %2148 = vmatpush1.msra.mxu0 %v2048
  %2149 = vmatprep.subr.mxu0 0.0
  %2150 = vmatpush1.msra.mxu0 %v2049
  %2151 = vmatprep.subr.mxu0 0.0
  %2152 = vmatpush1.msra.mxu0 %v2050
  %2153 = vmatprep.subr.mxu0 0.0
  %2154 = vmatpush1.msra.mxu0 %v2051
  %2155 = vmatprep.subr.mxu0 0.0
  %2156 = vmatpush1.msra.mxu0 %v2052
  %2157 = vmatprep.subr.mxu0 0.0
  %2158 = vmatpush1.msra.mxu0 %v2053
  %2159 = vmatprep.subr.mxu0 0.0
  %2160 = vmatpush1.msra.mxu0 %v2054
  %2161 = vmatprep.subr.mxu0 0.0
  %2162 = vmatpush1.msra.mxu0 %v2055
  %2163 = vmatprep.subr.mxu0 0.0
  %2164 = vmatpush1.msra.mxu0 0.0
  %2165 = vmatprep.subr.mxu0 0.0
  %2166 = vmatpush1.msra.mxu0 0.0
  %2167 = vmatprep.subr.mxu0 0.0
  %2168 = vmatpush1.msra.mxu0 0.0
  %2169 = vmatprep.subr.mxu0 0.0
  %2170 = vmatpush1.msra.mxu0 0.0
  %2171 = vmatprep.subr.mxu0 0.0
  %2172 = vmatpush1.msra.mxu0 0.0
  %2173 = vmatprep.subr.mxu0 0.0
  %2174 = vmatpush1.msra.mxu0 0.0
  %2175 = vmatprep.subr.mxu0 0.0
  %2176 = vmatpush1.msra.mxu0 0.0
  %2177 = vmatprep.subr.mxu0 0.0
  %2178 = vmatpush1.msra.mxu0 0.0
  %2179 = vmatprep.subr.mxu0 0.0
  %2180 = vmatpush1.msra.mxu0 0.0
  %2181 = vmatprep.subr.mxu0 0.0
  %2182 = vmatpush1.msra.mxu0 0.0
  %2183 = vmatprep.subr.mxu0 0.0
  %2184 = vmatpush1.msra.mxu0 0.0
  %2185 = vmatprep.subr.mxu0 0.0
  %2186 = vmatpush1.msra.mxu0 0.0
  %2187 = vmatprep.subr.mxu0 0.0
  %2188 = vmatpush1.msra.mxu0 0.0
  %2189 = vmatprep.subr.mxu0 0.0
  %2190 = vmatpush1.msra.mxu0 0.0
  %2191 = vmatprep.subr.mxu0 0.0
  %2192 = vmatpush1.msra.mxu0 0.0
  %2193 = vmatprep.subr.mxu0 0.0
  %2194 = vmatpush1.msra.mxu0 0.0
  %2195 = vmatprep.subr.mxu0 0.0
  %2196 = vmatpush1.msra.mxu0 0.0
  %2197 = vmatprep.subr.mxu0 0.0
  %2198 = vmatpush1.msra.mxu0 0.0
  %2199 = vmatprep.subr.mxu0 0.0
  %2200 = vmatpush1.msra.mxu0 0.0
  %2201 = vmatprep.subr.mxu0 0.0
  %2202 = vmatpush1.msra.mxu0 0.0
  %2203 = vmatprep.subr.mxu0 0.0
  %2204 = vmatpush1.msra.mxu0 0.0
  %2205 = vmatprep.subr.mxu0 0.0
  %2206 = vmatpush1.msra.mxu0 0.0
  %2207 = vmatprep.mubr.f32.mxu0 0.0
  %2208 = vmatmul.mubr.f32.gmra.mrb[0].mxu0 %v2141
  %v2209 = vpop.f32.mrb[0].mxu0
  %v2210 = vadd.f32 %v2138, %v2209
  %v2211 = vpop.f32.mrb[0].mxu0
  %2212 = vdwg.mxu0
  %s2213 = scalar_lea.vmem %s6, 160
  %v2214 = vld [vmem:[%s2213] sm:$0xff]
  %v2215 = vld [vmem:[%s2213 + $0x8] sm:$0xff]
  %v2216 = vld [vmem:[%s2213 + $0x10] sm:$0xff]
  %v2217 = vld [vmem:[%s2213 + $0x18] sm:$0xff]
  %v2218 = vld [vmem:[%s2213 + $0x20] sm:$0xff]
  %v2219 = vld [vmem:[%s2213 + $0x28] sm:$0xff]
  %v2220 = vld [vmem:[%s2213 + $0x30] sm:$0xff]
  %v2221 = vld [vmem:[%s2213 + $0x38] sm:$0xff]
  %v2222 = vld [vmem:[%s2213 + $0x40] sm:$0xff]
  %v2223 = vld [vmem:[%s2213 + $0x48] sm:$0xff]
  %v2224 = vrot.slane %v2032, 2
  %v2225 = vsel %vm882, %v2224, 0
  %2227 = vmatprep.subr.mxu0 0.0
  %2228 = vmatpush1.msra.mxu0 %v2214
  %2229 = vmatprep.subr.mxu0 0.0
  %2230 = vmatpush1.msra.mxu0 %v2215
  %2231 = vmatprep.subr.mxu0 0.0
  %2232 = vmatpush1.msra.mxu0 %v2216
  %2233 = vmatprep.subr.mxu0 0.0
  %2234 = vmatpush1.msra.mxu0 %v2217
  %2235 = vmatprep.subr.mxu0 0.0
  %2236 = vmatpush1.msra.mxu0 %v2218
  %2237 = vmatprep.subr.mxu0 0.0
  %2238 = vmatpush1.msra.mxu0 %v2219
  %2239 = vmatprep.subr.mxu0 0.0
  %2240 = vmatpush1.msra.mxu0 %v2220
  %2241 = vmatprep.subr.mxu0 0.0
  %2242 = vmatpush1.msra.mxu0 %v2221
  %2243 = vmatprep.subr.mxu0 0.0
  %2244 = vmatpush1.msra.mxu0 %v2222
  %2245 = vmatprep.subr.mxu0 0.0
  %2246 = vmatpush1.msra.mxu0 %v2223
  %2247 = vmatprep.subr.mxu0 0.0
  %2248 = vmatpush1.msra.mxu0 0.0
  %2249 = vmatprep.subr.mxu0 0.0
  %2250 = vmatpush1.msra.mxu0 0.0
  %2251 = vmatprep.subr.mxu0 0.0
  %2252 = vmatpush1.msra.mxu0 0.0
  %2253 = vmatprep.subr.mxu0 0.0
  %2254 = vmatpush1.msra.mxu0 0.0
  %2255 = vmatprep.subr.mxu0 0.0
  %2256 = vmatpush1.msra.mxu0 0.0
  %2257 = vmatprep.subr.mxu0 0.0
  %2258 = vmatpush1.msra.mxu0 0.0
  %2259 = vmatprep.subr.mxu0 0.0
  %2260 = vmatpush1.msra.mxu0 0.0
  %2261 = vmatprep.subr.mxu0 0.0
  %2262 = vmatpush1.msra.mxu0 0.0
  %2263 = vmatprep.subr.mxu0 0.0
  %2264 = vmatpush1.msra.mxu0 0.0
  %2265 = vmatprep.subr.mxu0 0.0
  %2266 = vmatpush1.msra.mxu0 0.0
  %2267 = vmatprep.subr.mxu0 0.0
  %2268 = vmatpush1.msra.mxu0 0.0
  %2269 = vmatprep.subr.mxu0 0.0
  %2270 = vmatpush1.msra.mxu0 0.0
  %2271 = vmatprep.subr.mxu0 0.0
  %2272 = vmatpush1.msra.mxu0 0.0
  %2273 = vmatprep.subr.mxu0 0.0
  %2274 = vmatpush1.msra.mxu0 0.0
  %2275 = vmatprep.subr.mxu0 0.0
  %2276 = vmatpush1.msra.mxu0 0.0
  %2277 = vmatprep.subr.mxu0 0.0
  %2278 = vmatpush1.msra.mxu0 0.0
  %2279 = vmatprep.subr.mxu0 0.0
  %2280 = vmatpush1.msra.mxu0 0.0
  %2281 = vmatprep.subr.mxu0 0.0
  %2282 = vmatpush1.msra.mxu0 0.0
  %2283 = vmatprep.subr.mxu0 0.0
  %2284 = vmatpush1.msra.mxu0 0.0
  %2285 = vmatprep.subr.mxu0 0.0
  %2286 = vmatpush1.msra.mxu0 0.0
  %2287 = vmatprep.subr.mxu0 0.0
  %2288 = vmatpush1.msra.mxu0 0.0
  %2289 = vmatprep.subr.mxu0 0.0
  %2290 = vmatpush1.msra.mxu0 0.0
  %2291 = vmatprep.mubr.f32.mxu0 0.0
  %2292 = vmatmul.mubr.f32.gmra.mrb[0].mxu0 %v2225
  %v2293 = vpop.f32.mrb[0].mxu0
  %v2294 = vadd.f32 0.0, %v2293
  %v2295 = vpop.f32.mrb[0].mxu0
  %2296 = vdwg.mxu0
  %v2297 = vadd.f32 %v2210, %v2294
  %s2298 = scalar_lea.vmem %s6, 240
  %v2299 = vld [vmem:[%s2298] sm:$0xff]
  %v2300 = vld [vmem:[%s2298 + $0x8] sm:$0xff]
  %v2301 = vld [vmem:[%s2298 + $0x10] sm:$0xff]
  %v2302 = vld [vmem:[%s2298 + $0x18] sm:$0xff]
  %v2303 = vld [vmem:[%s2298 + $0x20] sm:$0xff]
  %v2304 = vld [vmem:[%s2298 + $0x28] sm:$0xff]
  %v2305 = vld [vmem:[%s2298 + $0x30] sm:$0xff]
  %v2306 = vld [vmem:[%s2298 + $0x38] sm:$0xff]
  %v2307 = vld [vmem:[%s2298 + $0x40] sm:$0xff]
  %v2308 = vld [vmem:[%s2298 + $0x48] sm:$0xff]
  %v2309 = vrot.slane %v2032, 3
  %v2310 = vsel %vm882, %v2309, 0
  %2312 = vmatprep.subr.mxu0 0.0
  %2313 = vmatpush1.msra.mxu0 %v2299
  %2314 = vmatprep.subr.mxu0 0.0
  %2315 = vmatpush1.msra.mxu0 %v2300
  %2316 = vmatprep.subr.mxu0 0.0
  %2317 = vmatpush1.msra.mxu0 %v2301
  %2318 = vmatprep.subr.mxu0 0.0
  %2319 = vmatpush1.msra.mxu0 %v2302
  %2320 = vmatprep.subr.mxu0 0.0
  %2321 = vmatpush1.msra.mxu0 %v2303
  %2322 = vmatprep.subr.mxu0 0.0
  %2323 = vmatpush1.msra.mxu0 %v2304
  %2324 = vmatprep.subr.mxu0 0.0
  %2325 = vmatpush1.msra.mxu0 %v2305
  %2326 = vmatprep.subr.mxu0 0.0
  %2327 = vmatpush1.msra.mxu0 %v2306
  %2328 = vmatprep.subr.mxu0 0.0
  %2329 = vmatpush1.msra.mxu0 %v2307
  %2330 = vmatprep.subr.mxu0 0.0
  %2331 = vmatpush1.msra.mxu0 %v2308
  %2332 = vmatprep.subr.mxu0 0.0
  %2333 = vmatpush1.msra.mxu0 0.0
  %2334 = vmatprep.subr.mxu0 0.0
  %2335 = vmatpush1.msra.mxu0 0.0
  %2336 = vmatprep.subr.mxu0 0.0
  %2337 = vmatpush1.msra.mxu0 0.0
  %2338 = vmatprep.subr.mxu0 0.0
  %2339 = vmatpush1.msra.mxu0 0.0
  %2340 = vmatprep.subr.mxu0 0.0
  %2341 = vmatpush1.msra.mxu0 0.0
  %2342 = vmatprep.subr.mxu0 0.0
  %2343 = vmatpush1.msra.mxu0 0.0
  %2344 = vmatprep.subr.mxu0 0.0
  %2345 = vmatpush1.msra.mxu0 0.0
  %2346 = vmatprep.subr.mxu0 0.0
  %2347 = vmatpush1.msra.mxu0 0.0
  %2348 = vmatprep.subr.mxu0 0.0
  %2349 = vmatpush1.msra.mxu0 0.0
  %2350 = vmatprep.subr.mxu0 0.0
  %2351 = vmatpush1.msra.mxu0 0.0
  %2352 = vmatprep.subr.mxu0 0.0
  %2353 = vmatpush1.msra.mxu0 0.0
  %2354 = vmatprep.subr.mxu0 0.0
  %2355 = vmatpush1.msra.mxu0 0.0
  %2356 = vmatprep.subr.mxu0 0.0
  %2357 = vmatpush1.msra.mxu0 0.0
  %2358 = vmatprep.subr.mxu0 0.0
  %2359 = vmatpush1.msra.mxu0 0.0
  %2360 = vmatprep.subr.mxu0 0.0
  %2361 = vmatpush1.msra.mxu0 0.0
  %2362 = vmatprep.subr.mxu0 0.0
  %2363 = vmatpush1.msra.mxu0 0.0
  %2364 = vmatprep.subr.mxu0 0.0
  %2365 = vmatpush1.msra.mxu0 0.0
  %2366 = vmatprep.subr.mxu0 0.0
  %2367 = vmatpush1.msra.mxu0 0.0
  %2368 = vmatprep.subr.mxu0 0.0
  %2369 = vmatpush1.msra.mxu0 0.0
  %2370 = vmatprep.subr.mxu0 0.0
  %2371 = vmatpush1.msra.mxu0 0.0
  %2372 = vmatprep.subr.mxu0 0.0
  %2373 = vmatpush1.msra.mxu0 0.0
  %2374 = vmatprep.subr.mxu0 0.0
  %2375 = vmatpush1.msra.mxu0 0.0
  %2376 = vmatprep.mubr.f32.mxu0 0.0
  %2377 = vmatmul.mubr.f32.gmra.mrb[0].mxu0 %v2310
  %v2378 = vpop.f32.mrb[0].mxu0
  %v2379 = vadd.f32 0.0, %v2378
  %v2380 = vpop.f32.mrb[0].mxu0
  %2381 = vdwg.mxu0
  %v2382 = vadd.f32 %v2297, %v2379
  %s2383 = scalar_lea.vmem %s6, 320
  %v2384 = vld [vmem:[%s2383] sm:$0xff]
  %v2385 = vld [vmem:[%s2383 + $0x8] sm:$0xff]
  %v2386 = vld [vmem:[%s2383 + $0x10] sm:$0xff]
  %v2387 = vld [vmem:[%s2383 + $0x18] sm:$0xff]
  %v2388 = vld [vmem:[%s2383 + $0x20] sm:$0xff]
  %v2389 = vld [vmem:[%s2383 + $0x28] sm:$0xff]
  %v2390 = vld [vmem:[%s2383 + $0x30] sm:$0xff]
  %v2391 = vld [vmem:[%s2383 + $0x38] sm:$0xff]
  %v2392 = vld [vmem:[%s2383 + $0x40] sm:$0xff]
  %v2393 = vld [vmem:[%s2383 + $0x48] sm:$0xff]
  %v2394 = vrot.slane %v2032, 4
  %v2395 = vsel %vm882, %v2394, 0
  %2397 = vmatprep.subr.mxu0 0.0
  %2398 = vmatpush1.msra.mxu0 %v2384
  %2399 = vmatprep.subr.mxu0 0.0
  %2400 = vmatpush1.msra.mxu0 %v2385
  %2401 = vmatprep.subr.mxu0 0.0
  %2402 = vmatpush1.msra.mxu0 %v2386
  %2403 = vmatprep.subr.mxu0 0.0
  %2404 = vmatpush1.msra.mxu0 %v2387
  %2405 = vmatprep.subr.mxu0 0.0
  %2406 = vmatpush1.msra.mxu0 %v2388
  %2407 = vmatprep.subr.mxu0 0.0
  %2408 = vmatpush1.msra.mxu0 %v2389
  %2409 = vmatprep.subr.mxu0 0.0
  %2410 = vmatpush1.msra.mxu0 %v2390
  %2411 = vmatprep.subr.mxu0 0.0
  %2412 = vmatpush1.msra.mxu0 %v2391
  %2413 = vmatprep.subr.mxu0 0.0
  %2414 = vmatpush1.msra.mxu0 %v2392
  %2415 = vmatprep.subr.mxu0 0.0
  %2416 = vmatpush1.msra.mxu0 %v2393
  %2417 = vmatprep.subr.mxu0 0.0
  %2418 = vmatpush1.msra.mxu0 0.0
  %2419 = vmatprep.subr.mxu0 0.0
  %2420 = vmatpush1.msra.mxu0 0.0
  %2421 = vmatprep.subr.mxu0 0.0
  %2422 = vmatpush1.msra.mxu0 0.0
  %2423 = vmatprep.subr.mxu0 0.0
  %2424 = vmatpush1.msra.mxu0 0.0
  %2425 = vmatprep.subr.mxu0 0.0
  %2426 = vmatpush1.msra.mxu0 0.0
  %2427 = vmatprep.subr.mxu0 0.0
  %2428 = vmatpush1.msra.mxu0 0.0
  %2429 = vmatprep.subr.mxu0 0.0
  %2430 = vmatpush1.msra.mxu0 0.0
  %2431 = vmatprep.subr.mxu0 0.0
  %2432 = vmatpush1.msra.mxu0 0.0
  %2433 = vmatprep.subr.mxu0 0.0
  %2434 = vmatpush1.msra.mxu0 0.0
  %2435 = vmatprep.subr.mxu0 0.0
  %2436 = vmatpush1.msra.mxu0 0.0
  %2437 = vmatprep.subr.mxu0 0.0
  %2438 = vmatpush1.msra.mxu0 0.0
  %2439 = vmatprep.subr.mxu0 0.0
  %2440 = vmatpush1.msra.mxu0 0.0
  %2441 = vmatprep.subr.mxu0 0.0
  %2442 = vmatpush1.msra.mxu0 0.0
  %2443 = vmatprep.subr.mxu0 0.0
  %2444 = vmatpush1.msra.mxu0 0.0
  %2445 = vmatprep.subr.mxu0 0.0
  %2446 = vmatpush1.msra.mxu0 0.0
  %2447 = vmatprep.subr.mxu0 0.0
  %2448 = vmatpush1.msra.mxu0 0.0
  %2449 = vmatprep.subr.mxu0 0.0
  %2450 = vmatpush1.msra.mxu0 0.0
  %2451 = vmatprep.subr.mxu0 0.0
  %2452 = vmatpush1.msra.mxu0 0.0
  %2453 = vmatprep.subr.mxu0 0.0
  %2454 = vmatpush1.msra.mxu0 0.0
  %2455 = vmatprep.subr.mxu0 0.0
  %2456 = vmatpush1.msra.mxu0 0.0
  %2457 = vmatprep.subr.mxu0 0.0
  %2458 = vmatpush1.msra.mxu0 0.0
  %2459 = vmatprep.subr.mxu0 0.0
  %2460 = vmatpush1.msra.mxu0 0.0
  %2461 = vmatprep.mubr.f32.mxu0 0.0
  %2462 = vmatmul.mubr.f32.gmra.mrb[0].mxu0 %v2395
  %v2463 = vpop.f32.mrb[0].mxu0
  %v2464 = vadd.f32 0.0, %v2463
  %v2465 = vpop.f32.mrb[0].mxu0
  %2466 = vdwg.mxu0
  %v2467 = vadd.f32 %v2382, %v2464
  %s2468 = scalar_lea.vmem %s6, 400
  %v2469 = vld [vmem:[%s2468] sm:$0xff]
  %v2470 = vld [vmem:[%s2468 + $0x8] sm:$0xff]
  %v2471 = vld [vmem:[%s2468 + $0x10] sm:$0xff]
  %v2472 = vld [vmem:[%s2468 + $0x18] sm:$0xff]
  %v2473 = vld [vmem:[%s2468 + $0x20] sm:$0xff]
  %v2474 = vld [vmem:[%s2468 + $0x28] sm:$0xff]
  %v2475 = vld [vmem:[%s2468 + $0x30] sm:$0xff]
  %v2476 = vld [vmem:[%s2468 + $0x38] sm:$0xff]
  %v2477 = vld [vmem:[%s2468 + $0x40] sm:$0xff]
  %v2478 = vld [vmem:[%s2468 + $0x48] sm:$0xff]
  %v2480 = vrot.slane %v2032, 5
  %v2481 = vrot.slane %v2034, 5
  %v2482 = vsel %vm2033, %v2480, %v2481
  %v2483 = vsel %vm882, %v2482, 0
  %2485 = vmatprep.subr.mxu0 0.0
  %2486 = vmatpush1.msra.mxu0 %v2469
  %2487 = vmatprep.subr.mxu0 0.0
  %2488 = vmatpush1.msra.mxu0 %v2470
  %2489 = vmatprep.subr.mxu0 0.0
  %2490 = vmatpush1.msra.mxu0 %v2471
  %2491 = vmatprep.subr.mxu0 0.0
  %2492 = vmatpush1.msra.mxu0 %v2472
  %2493 = vmatprep.subr.mxu0 0.0
  %2494 = vmatpush1.msra.mxu0 %v2473
  %2495 = vmatprep.subr.mxu0 0.0
  %2496 = vmatpush1.msra.mxu0 %v2474
  %2497 = vmatprep.subr.mxu0 0.0
  %2498 = vmatpush1.msra.mxu0 %v2475
  %2499 = vmatprep.subr.mxu0 0.0
  %2500 = vmatpush1.msra.mxu0 %v2476
  %2501 = vmatprep.subr.mxu0 0.0
  %2502 = vmatpush1.msra.mxu0 %v2477
  %2503 = vmatprep.subr.mxu0 0.0
  %2504 = vmatpush1.msra.mxu0 %v2478
  %2505 = vmatprep.subr.mxu0 0.0
  %2506 = vmatpush1.msra.mxu0 0.0
  %2507 = vmatprep.subr.mxu0 0.0
  %2508 = vmatpush1.msra.mxu0 0.0
  %2509 = vmatprep.subr.mxu0 0.0
  %2510 = vmatpush1.msra.mxu0 0.0
  %2511 = vmatprep.subr.mxu0 0.0
  %2512 = vmatpush1.msra.mxu0 0.0
  %2513 = vmatprep.subr.mxu0 0.0
  %2514 = vmatpush1.msra.mxu0 0.0
  %2515 = vmatprep.subr.mxu0 0.0
  %2516 = vmatpush1.msra.mxu0 0.0
  %2517 = vmatprep.subr.mxu0 0.0
  %2518 = vmatpush1.msra.mxu0 0.0
  %2519 = vmatprep.subr.mxu0 0.0
  %2520 = vmatpush1.msra.mxu0 0.0
  %2521 = vmatprep.subr.mxu0 0.0
  %2522 = vmatpush1.msra.mxu0 0.0
  %2523 = vmatprep.subr.mxu0 0.0
  %2524 = vmatpush1.msra.mxu0 0.0
  %2525 = vmatprep.subr.mxu0 0.0
  %2526 = vmatpush1.msra.mxu0 0.0
  %2527 = vmatprep.subr.mxu0 0.0
  %2528 = vmatpush1.msra.mxu0 0.0
  %2529 = vmatprep.subr.mxu0 0.0
  %2530 = vmatpush1.msra.mxu0 0.0
  %2531 = vmatprep.subr.mxu0 0.0
  %2532 = vmatpush1.msra.mxu0 0.0
  %2533 = vmatprep.subr.mxu0 0.0
  %2534 = vmatpush1.msra.mxu0 0.0
  %2535 = vmatprep.subr.mxu0 0.0
  %2536 = vmatpush1.msra.mxu0 0.0
  %2537 = vmatprep.subr.mxu0 0.0
  %2538 = vmatpush1.msra.mxu0 0.0
  %2539 = vmatprep.subr.mxu0 0.0
  %2540 = vmatpush1.msra.mxu0 0.0
  %2541 = vmatprep.subr.mxu0 0.0
  %2542 = vmatpush1.msra.mxu0 0.0
  %2543 = vmatprep.subr.mxu0 0.0
  %2544 = vmatpush1.msra.mxu0 0.0
  %2545 = vmatprep.subr.mxu0 0.0
  %2546 = vmatpush1.msra.mxu0 0.0
  %2547 = vmatprep.subr.mxu0 0.0
  %2548 = vmatpush1.msra.mxu0 0.0
  %2549 = vmatprep.mubr.f32.mxu0 0.0
  %2550 = vmatmul.mubr.f32.gmra.mrb[0].mxu0 %v2483
  %v2551 = vpop.f32.mrb[0].mxu0
  %v2552 = vadd.f32 0.0, %v2551
  %v2553 = vpop.f32.mrb[0].mxu0
  %2554 = vdwg.mxu0
  %v2555 = vadd.f32 %v2467, %v2552
  %s2556 = scalar_lea.vmem %s6, 480
  %v2557 = vld [vmem:[%s2556] sm:$0xff]
  %v2558 = vld [vmem:[%s2556 + $0x8] sm:$0xff]
  %v2559 = vld [vmem:[%s2556 + $0x10] sm:$0xff]
  %v2560 = vld [vmem:[%s2556 + $0x18] sm:$0xff]
  %v2561 = vld [vmem:[%s2556 + $0x20] sm:$0xff]
  %v2562 = vld [vmem:[%s2556 + $0x28] sm:$0xff]
  %v2563 = vld [vmem:[%s2556 + $0x30] sm:$0xff]
  %v2564 = vld [vmem:[%s2556 + $0x38] sm:$0xff]
  %v2565 = vld [vmem:[%s2556 + $0x40] sm:$0xff]
  %v2566 = vld [vmem:[%s2556 + $0x48] sm:$0xff]
  %vm2567 = vcmask 1041408
  %v2568 = vrot.slane %v2032, 6
  %v2569 = vrot.slane %v2034, 6
  %v2570 = vsel %vm2567, %v2568, %v2569
  %v2571 = vsel %vm882, %v2570, 0
  %2573 = vmatprep.subr.mxu0 0.0
  %2574 = vmatpush1.msra.mxu0 %v2557
  %2575 = vmatprep.subr.mxu0 0.0
  %2576 = vmatpush1.msra.mxu0 %v2558
  %2577 = vmatprep.subr.mxu0 0.0
  %2578 = vmatpush1.msra.mxu0 %v2559
  %2579 = vmatprep.subr.mxu0 0.0
  %2580 = vmatpush1.msra.mxu0 %v2560
  %2581 = vmatprep.subr.mxu0 0.0
  %2582 = vmatpush1.msra.mxu0 %v2561
  %2583 = vmatprep.subr.mxu0 0.0
  %2584 = vmatpush1.msra.mxu0 %v2562
  %2585 = vmatprep.subr.mxu0 0.0
  %2586 = vmatpush1.msra.mxu0 %v2563
  %2587 = vmatprep.subr.mxu0 0.0
  %2588 = vmatpush1.msra.mxu0 %v2564
  %2589 = vmatprep.subr.mxu0 0.0
  %2590 = vmatpush1.msra.mxu0 %v2565
  %2591 = vmatprep.subr.mxu0 0.0
  %2592 = vmatpush1.msra.mxu0 %v2566
  %2593 = vmatprep.subr.mxu0 0.0
  %2594 = vmatpush1.msra.mxu0 0.0
  %2595 = vmatprep.subr.mxu0 0.0
  %2596 = vmatpush1.msra.mxu0 0.0
  %2597 = vmatprep.subr.mxu0 0.0
  %2598 = vmatpush1.msra.mxu0 0.0
  %2599 = vmatprep.subr.mxu0 0.0
  %2600 = vmatpush1.msra.mxu0 0.0
  %2601 = vmatprep.subr.mxu0 0.0
  %2602 = vmatpush1.msra.mxu0 0.0
  %2603 = vmatprep.subr.mxu0 0.0
  %2604 = vmatpush1.msra.mxu0 0.0
  %2605 = vmatprep.subr.mxu0 0.0
  %2606 = vmatpush1.msra.mxu0 0.0
  %2607 = vmatprep.subr.mxu0 0.0
  %2608 = vmatpush1.msra.mxu0 0.0
  %2609 = vmatprep.subr.mxu0 0.0
  %2610 = vmatpush1.msra.mxu0 0.0
  %2611 = vmatprep.subr.mxu0 0.0
  %2612 = vmatpush1.msra.mxu0 0.0
  %2613 = vmatprep.subr.mxu0 0.0
  %2614 = vmatpush1.msra.mxu0 0.0
  %2615 = vmatprep.subr.mxu0 0.0
  %2616 = vmatpush1.msra.mxu0 0.0
  %2617 = vmatprep.subr.mxu0 0.0
  %2618 = vmatpush1.msra.mxu0 0.0
  %2619 = vmatprep.subr.mxu0 0.0
  %2620 = vmatpush1.msra.mxu0 0.0
  %2621 = vmatprep.subr.mxu0 0.0
  %2622 = vmatpush1.msra.mxu0 0.0
  %2623 = vmatprep.subr.mxu0 0.0
  %2624 = vmatpush1.msra.mxu0 0.0
  %2625 = vmatprep.subr.mxu0 0.0
  %2626 = vmatpush1.msra.mxu0 0.0
  %2627 = vmatprep.subr.mxu0 0.0
  %2628 = vmatpush1.msra.mxu0 0.0
  %2629 = vmatprep.subr.mxu0 0.0
  %2630 = vmatpush1.msra.mxu0 0.0
  %2631 = vmatprep.subr.mxu0 0.0
  %2632 = vmatpush1.msra.mxu0 0.0
  %2633 = vmatprep.subr.mxu0 0.0
  %2634 = vmatpush1.msra.mxu0 0.0
  %2635 = vmatprep.subr.mxu0 0.0
  %2636 = vmatpush1.msra.mxu0 0.0
  %2637 = vmatprep.mubr.f32.mxu0 0.0
  %2638 = vmatmul.mubr.f32.gmra.mrb[0].mxu0 %v2571
  %v2639 = vpop.f32.mrb[0].mxu0
  %v2640 = vadd.f32 0.0, %v2639
  %v2641 = vpop.f32.mrb[0].mxu0
  %2642 = vdwg.mxu0
  %v2643 = vadd.f32 %v2555, %v2640
  %s2644 = scalar_lea.vmem %s6, 560
  %v2645 = vld [vmem:[%s2644] sm:$0xff]
  %v2646 = vld [vmem:[%s2644 + $0x8] sm:$0xff]
  %v2647 = vld [vmem:[%s2644 + $0x10] sm:$0xff]
  %v2648 = vld [vmem:[%s2644 + $0x18] sm:$0xff]
  %v2649 = vld [vmem:[%s2644 + $0x20] sm:$0xff]
  %v2650 = vld [vmem:[%s2644 + $0x28] sm:$0xff]
  %v2651 = vld [vmem:[%s2644 + $0x30] sm:$0xff]
  %v2652 = vld [vmem:[%s2644 + $0x38] sm:$0xff]
  %v2653 = vld [vmem:[%s2644 + $0x40] sm:$0xff]
  %v2654 = vld [vmem:[%s2644 + $0x48] sm:$0xff]
  %v2655 = vrot.slane %v2032, 7
  %v2656 = vrot.slane %v2034, 7
  %v2657 = vsel %vm2026, %v2655, %v2656
  %v2658 = vsel %vm882, %v2657, 0
  %2660 = vmatprep.subr.mxu0 0.0
  %2661 = vmatpush1.msra.mxu0 %v2645
  %2662 = vmatprep.subr.mxu0 0.0
  %2663 = vmatpush1.msra.mxu0 %v2646
  %2664 = vmatprep.subr.mxu0 0.0
  %2665 = vmatpush1.msra.mxu0 %v2647
  %2666 = vmatprep.subr.mxu0 0.0
  %2667 = vmatpush1.msra.mxu0 %v2648
  %2668 = vmatprep.subr.mxu0 0.0
  %2669 = vmatpush1.msra.mxu0 %v2649
  %2670 = vmatprep.subr.mxu0 0.0
  %2671 = vmatpush1.msra.mxu0 %v2650
  %2672 = vmatprep.subr.mxu0 0.0
  %2673 = vmatpush1.msra.mxu0 %v2651
  %2674 = vmatprep.subr.mxu0 0.0
  %2675 = vmatpush1.msra.mxu0 %v2652
  %2676 = vmatprep.subr.mxu0 0.0
  %2677 = vmatpush1.msra.mxu0 %v2653
  %2678 = vmatprep.subr.mxu0 0.0
  %2679 = vmatpush1.msra.mxu0 %v2654
  %2680 = vmatprep.subr.mxu0 0.0
  %2681 = vmatpush1.msra.mxu0 0.0
  %2682 = vmatprep.subr.mxu0 0.0
  %2683 = vmatpush1.msra.mxu0 0.0
  %2684 = vmatprep.subr.mxu0 0.0
  %2685 = vmatpush1.msra.mxu0 0.0
  %2686 = vmatprep.subr.mxu0 0.0
  %2687 = vmatpush1.msra.mxu0 0.0
  %2688 = vmatprep.subr.mxu0 0.0
  %2689 = vmatpush1.msra.mxu0 0.0
  %2690 = vmatprep.subr.mxu0 0.0
  %2691 = vmatpush1.msra.mxu0 0.0
  %2692 = vmatprep.subr.mxu0 0.0
  %2693 = vmatpush1.msra.mxu0 0.0
  %2694 = vmatprep.subr.mxu0 0.0
  %2695 = vmatpush1.msra.mxu0 0.0
  %2696 = vmatprep.subr.mxu0 0.0
  %2697 = vmatpush1.msra.mxu0 0.0
  %2698 = vmatprep.subr.mxu0 0.0
  %2699 = vmatpush1.msra.mxu0 0.0
  %2700 = vmatprep.subr.mxu0 0.0
  %2701 = vmatpush1.msra.mxu0 0.0
  %2702 = vmatprep.subr.mxu0 0.0
  %2703 = vmatpush1.msra.mxu0 0.0
  %2704 = vmatprep.subr.mxu0 0.0
  %2705 = vmatpush1.msra.mxu0 0.0
  %2706 = vmatprep.subr.mxu0 0.0
  %2707 = vmatpush1.msra.mxu0 0.0
  %2708 = vmatprep.subr.mxu0 0.0
  %2709 = vmatpush1.msra.mxu0 0.0
  %2710 = vmatprep.subr.mxu0 0.0
  %2711 = vmatpush1.msra.mxu0 0.0
  %2712 = vmatprep.subr.mxu0 0.0
  %2713 = vmatpush1.msra.mxu0 0.0
  %2714 = vmatprep.subr.mxu0 0.0
  %2715 = vmatpush1.msra.mxu0 0.0
  %2716 = vmatprep.subr.mxu0 0.0
  %2717 = vmatpush1.msra.mxu0 0.0
  %2718 = vmatprep.subr.mxu0 0.0
  %2719 = vmatpush1.msra.mxu0 0.0
  %2720 = vmatprep.subr.mxu0 0.0
  %2721 = vmatpush1.msra.mxu0 0.0
  %2722 = vmatprep.subr.mxu0 0.0
  %2723 = vmatpush1.msra.mxu0 0.0
  %2724 = vmatprep.mubr.f32.mxu0 0.0
  %2725 = vmatmul.mubr.f32.gmra.mrb[0].mxu0 %v2658
  %v2726 = vpop.f32.mrb[0].mxu0
  %v2727 = vadd.f32 0.0, %v2726
  %v2728 = vpop.f32.mrb[0].mxu0
  %2729 = vdwg.mxu0
  %v2730 = vadd.f32 %v2643, %v2727
  %s2731 = scalar_lea.vmem %s6, 640
  %v2732 = vld [vmem:[%s2731] sm:$0xff]
  %v2733 = vld [vmem:[%s2731 + $0x8] sm:$0xff]
  %v2734 = vld [vmem:[%s2731 + $0x10] sm:$0xff]
  %v2735 = vld [vmem:[%s2731 + $0x18] sm:$0xff]
  %v2736 = vld [vmem:[%s2731 + $0x20] sm:$0xff]
  %v2737 = vld [vmem:[%s2731 + $0x28] sm:$0xff]
  %v2738 = vld [vmem:[%s2731 + $0x30] sm:$0xff]
  %v2739 = vld [vmem:[%s2731 + $0x38] sm:$0xff]
  %v2740 = vld [vmem:[%s2731 + $0x40] sm:$0xff]
  %v2741 = vld [vmem:[%s2731 + $0x48] sm:$0xff]
  %v2742 = vsel %vm882, %v2034, 0
  %2744 = vmatprep.subr.mxu0 0.0
  %2745 = vmatpush1.msra.mxu0 %v2732
  %2746 = vmatprep.subr.mxu0 0.0
  %2747 = vmatpush1.msra.mxu0 %v2733
  %2748 = vmatprep.subr.mxu0 0.0
  %2749 = vmatpush1.msra.mxu0 %v2734
  %2750 = vmatprep.subr.mxu0 0.0
  %2751 = vmatpush1.msra.mxu0 %v2735
  %2752 = vmatprep.subr.mxu0 0.0
  %2753 = vmatpush1.msra.mxu0 %v2736
  %2754 = vmatprep.subr.mxu0 0.0
  %2755 = vmatpush1.msra.mxu0 %v2737
  %2756 = vmatprep.subr.mxu0 0.0
  %2757 = vmatpush1.msra.mxu0 %v2738
  %2758 = vmatprep.subr.mxu0 0.0
  %2759 = vmatpush1.msra.mxu0 %v2739
  %2760 = vmatprep.subr.mxu0 0.0
  %2761 = vmatpush1.msra.mxu0 %v2740
  %2762 = vmatprep.subr.mxu0 0.0
  %2763 = vmatpush1.msra.mxu0 %v2741
  %2764 = vmatprep.subr.mxu0 0.0
  %2765 = vmatpush1.msra.mxu0 0.0
  %2766 = vmatprep.subr.mxu0 0.0
  %2767 = vmatpush1.msra.mxu0 0.0
  %2768 = vmatprep.subr.mxu0 0.0
  %2769 = vmatpush1.msra.mxu0 0.0
  %2770 = vmatprep.subr.mxu0 0.0
  %2771 = vmatpush1.msra.mxu0 0.0
  %2772 = vmatprep.subr.mxu0 0.0
  %2773 = vmatpush1.msra.mxu0 0.0
  %2774 = vmatprep.subr.mxu0 0.0
  %2775 = vmatpush1.msra.mxu0 0.0
  %2776 = vmatprep.subr.mxu0 0.0
  %2777 = vmatpush1.msra.mxu0 0.0
  %2778 = vmatprep.subr.mxu0 0.0
  %2779 = vmatpush1.msra.mxu0 0.0
  %2780 = vmatprep.subr.mxu0 0.0
  %2781 = vmatpush1.msra.mxu0 0.0
  %2782 = vmatprep.subr.mxu0 0.0
  %2783 = vmatpush1.msra.mxu0 0.0
  %2784 = vmatprep.subr.mxu0 0.0
  %2785 = vmatpush1.msra.mxu0 0.0
  %2786 = vmatprep.subr.mxu0 0.0
  %2787 = vmatpush1.msra.mxu0 0.0
  %2788 = vmatprep.subr.mxu0 0.0
  %2789 = vmatpush1.msra.mxu0 0.0
  %2790 = vmatprep.subr.mxu0 0.0
  %2791 = vmatpush1.msra.mxu0 0.0
  %2792 = vmatprep.subr.mxu0 0.0
  %2793 = vmatpush1.msra.mxu0 0.0
  %2794 = vmatprep.subr.mxu0 0.0
  %2795 = vmatpush1.msra.mxu0 0.0
  %2796 = vmatprep.subr.mxu0 0.0
  %2797 = vmatpush1.msra.mxu0 0.0
  %2798 = vmatprep.subr.mxu0 0.0
  %2799 = vmatpush1.msra.mxu0 0.0
  %2800 = vmatprep.subr.mxu0 0.0
  %2801 = vmatpush1.msra.mxu0 0.0
  %2802 = vmatprep.subr.mxu0 0.0
  %2803 = vmatpush1.msra.mxu0 0.0
  %2804 = vmatprep.subr.mxu0 0.0
  %2805 = vmatpush1.msra.mxu0 0.0
  %2806 = vmatprep.subr.mxu0 0.0
  %2807 = vmatpush1.msra.mxu0 0.0
  %2808 = vmatprep.mubr.f32.mxu0 0.0
  %2809 = vmatmul.mubr.f32.gmra.mrb[0].mxu0 %v2742
  %v2810 = vpop.f32.mrb[0].mxu0
  %v2811 = vadd.f32 0.0, %v2810
  %v2812 = vpop.f32.mrb[0].mxu0
  %2813 = vdwg.mxu0
  %v2814 = vadd.f32 %v2730, %v2811
  %vm2815 = vcmask 257024
  %v2816 = vsel %vm2815, %v2814, 0.0
  %v2817 = vrot.slane %v2816, 4
  %v2818 = vadd.f32 %v2816, %v2817
  %v2819 = vrot.slane %v2818, 2
  %v2820 = vadd.f32 %v2818, %v2819
  %v2821 = vrot.slane %v2820, 1
  %v2822 = vadd.f32 %v2820, %v2821
  %v2823 = vadd.f32 %v2822, 0.0
  %v2824 = vmul.f32 %v2814, %v2814
  %v2825 = vsel %vm2815, %v2824, 0.0
  %v2826 = vrot.slane %v2825, 4
  %v2827 = vadd.f32 %v2825, %v2826
  %v2828 = vrot.slane %v2827, 2
  %v2829 = vadd.f32 %v2827, %v2828
  %v2830 = vrot.slane %v2829, 1
  %v2831 = vadd.f32 %v2829, %v2830
  %v2832 = vadd.f32 %v2831, 0.0
  %v2834 = vrot.slane %v2042, 1
  %v2835 = vsel %vm882, %v2834, 0
  %2837 = vmatprep.subr.mxu0 0.0
  %2838 = vmatpush1.msra.mxu0 %v2057
  %2839 = vmatprep.subr.mxu0 0.0
  %2840 = vmatpush1.msra.mxu0 %v2058
  %2841 = vmatprep.subr.mxu0 0.0
  %2842 = vmatpush1.msra.mxu0 %v2059
  %2843 = vmatprep.subr.mxu0 0.0
  %2844 = vmatpush1.msra.mxu0 %v2060
  %2845 = vmatprep.subr.mxu0 0.0
  %2846 = vmatpush1.msra.mxu0 %v2061
  %2847 = vmatprep.subr.mxu0 0.0
  %2848 = vmatpush1.msra.mxu0 %v2062
  %2849 = vmatprep.subr.mxu0 0.0
  %2850 = vmatpush1.msra.mxu0 %v2063
  %2851 = vmatprep.subr.mxu0 0.0
  %2852 = vmatpush1.msra.mxu0 %v2064
  %2853 = vmatprep.subr.mxu0 0.0
  %2854 = vmatpush1.msra.mxu0 %v2065
  %2855 = vmatprep.subr.mxu0 0.0
  %2856 = vmatpush1.msra.mxu0 %v2066
  %2857 = vmatprep.subr.mxu0 0.0
  %2858 = vmatpush1.msra.mxu0 0.0
  %2859 = vmatprep.subr.mxu0 0.0
  %2860 = vmatpush1.msra.mxu0 0.0
  %2861 = vmatprep.subr.mxu0 0.0
  %2862 = vmatpush1.msra.mxu0 0.0
  %2863 = vmatprep.subr.mxu0 0.0
  %2864 = vmatpush1.msra.mxu0 0.0
  %2865 = vmatprep.subr.mxu0 0.0
  %2866 = vmatpush1.msra.mxu0 0.0
  %2867 = vmatprep.subr.mxu0 0.0
  %2868 = vmatpush1.msra.mxu0 0.0
  %2869 = vmatprep.subr.mxu0 0.0
  %2870 = vmatpush1.msra.mxu0 0.0
  %2871 = vmatprep.subr.mxu0 0.0
  %2872 = vmatpush1.msra.mxu0 0.0
  %2873 = vmatprep.subr.mxu0 0.0
  %2874 = vmatpush1.msra.mxu0 0.0
  %2875 = vmatprep.subr.mxu0 0.0
  %2876 = vmatpush1.msra.mxu0 0.0
  %2877 = vmatprep.subr.mxu0 0.0
  %2878 = vmatpush1.msra.mxu0 0.0
  %2879 = vmatprep.subr.mxu0 0.0
  %2880 = vmatpush1.msra.mxu0 0.0
  %2881 = vmatprep.subr.mxu0 0.0
  %2882 = vmatpush1.msra.mxu0 0.0
  %2883 = vmatprep.subr.mxu0 0.0
  %2884 = vmatpush1.msra.mxu0 0.0
  %2885 = vmatprep.subr.mxu0 0.0
  %2886 = vmatpush1.msra.mxu0 0.0
  %2887 = vmatprep.subr.mxu0 0.0
  %2888 = vmatpush1.msra.mxu0 0.0
  %2889 = vmatprep.subr.mxu0 0.0
  %2890 = vmatpush1.msra.mxu0 0.0
  %2891 = vmatprep.subr.mxu0 0.0
  %2892 = vmatpush1.msra.mxu0 0.0
  %2893 = vmatprep.subr.mxu0 0.0
  %2894 = vmatpush1.msra.mxu0 0.0
  %2895 = vmatprep.subr.mxu0 0.0
  %2896 = vmatpush1.msra.mxu0 0.0
  %2897 = vmatprep.subr.mxu0 0.0
  %2898 = vmatpush1.msra.mxu0 0.0
  %2899 = vmatprep.subr.mxu0 0.0
  %2900 = vmatpush1.msra.mxu0 0.0
  %2901 = vmatprep.mubr.f32.mxu0 0.0
  %2902 = vmatmul.mubr.f32.gmra.mrb[0].mxu0 %v2835
  %v2903 = vpop.f32.mrb[0].mxu0
  %v2904 = vadd.f32 0.0, %v2903
  %v2905 = vpop.f32.mrb[0].mxu0
  %2906 = vdwg.mxu0
  %v2907 = vsel %vm882, %v2042, 0
  %2909 = vmatprep.subr.mxu0 0.0
  %2910 = vmatpush1.msra.mxu0 %v2046
  %2911 = vmatprep.subr.mxu0 0.0
  %2912 = vmatpush1.msra.mxu0 %v2047
  %2913 = vmatprep.subr.mxu0 0.0
  %2914 = vmatpush1.msra.mxu0 %v2048
  %2915 = vmatprep.subr.mxu0 0.0
  %2916 = vmatpush1.msra.mxu0 %v2049
  %2917 = vmatprep.subr.mxu0 0.0
  %2918 = vmatpush1.msra.mxu0 %v2050
  %2919 = vmatprep.subr.mxu0 0.0
  %2920 = vmatpush1.msra.mxu0 %v2051
  %2921 = vmatprep.subr.mxu0 0.0
  %2922 = vmatpush1.msra.mxu0 %v2052
  %2923 = vmatprep.subr.mxu0 0.0
  %2924 = vmatpush1.msra.mxu0 %v2053
  %2925 = vmatprep.subr.mxu0 0.0
  %2926 = vmatpush1.msra.mxu0 %v2054
  %2927 = vmatprep.subr.mxu0 0.0
  %2928 = vmatpush1.msra.mxu0 %v2055
  %2929 = vmatprep.subr.mxu0 0.0
  %2930 = vmatpush1.msra.mxu0 0.0
  %2931 = vmatprep.subr.mxu0 0.0
  %2932 = vmatpush1.msra.mxu0 0.0
  %2933 = vmatprep.subr.mxu0 0.0
  %2934 = vmatpush1.msra.mxu0 0.0
  %2935 = vmatprep.subr.mxu0 0.0
  %2936 = vmatpush1.msra.mxu0 0.0
  %2937 = vmatprep.subr.mxu0 0.0
  %2938 = vmatpush1.msra.mxu0 0.0
  %2939 = vmatprep.subr.mxu0 0.0
  %2940 = vmatpush1.msra.mxu0 0.0
  %2941 = vmatprep.subr.mxu0 0.0
  %2942 = vmatpush1.msra.mxu0 0.0
  %2943 = vmatprep.subr.mxu0 0.0
  %2944 = vmatpush1.msra.mxu0 0.0
  %2945 = vmatprep.subr.mxu0 0.0
  %2946 = vmatpush1.msra.mxu0 0.0
  %2947 = vmatprep.subr.mxu0 0.0
  %2948 = vmatpush1.msra.mxu0 0.0
  %2949 = vmatprep.subr.mxu0 0.0
  %2950 = vmatpush1.msra.mxu0 0.0
  %2951 = vmatprep.subr.mxu0 0.0
  %2952 = vmatpush1.msra.mxu0 0.0
  %2953 = vmatprep.subr.mxu0 0.0
  %2954 = vmatpush1.msra.mxu0 0.0
  %2955 = vmatprep.subr.mxu0 0.0
  %2956 = vmatpush1.msra.mxu0 0.0
  %2957 = vmatprep.subr.mxu0 0.0
  %2958 = vmatpush1.msra.mxu0 0.0
  %2959 = vmatprep.subr.mxu0 0.0
  %2960 = vmatpush1.msra.mxu0 0.0
  %2961 = vmatprep.subr.mxu0 0.0
  %2962 = vmatpush1.msra.mxu0 0.0
  %2963 = vmatprep.subr.mxu0 0.0
  %2964 = vmatpush1.msra.mxu0 0.0
  %2965 = vmatprep.subr.mxu0 0.0
  %2966 = vmatpush1.msra.mxu0 0.0
  %2967 = vmatprep.subr.mxu0 0.0
  %2968 = vmatpush1.msra.mxu0 0.0
  %2969 = vmatprep.subr.mxu0 0.0
  %2970 = vmatpush1.msra.mxu0 0.0
  %2971 = vmatprep.subr.mxu0 0.0
  %2972 = vmatpush1.msra.mxu0 0.0
  %2973 = vmatprep.mubr.f32.mxu0 0.0
  %2974 = vmatmul.mubr.f32.gmra.mrb[0].mxu0 %v2907
  %v2975 = vpop.f32.mrb[0].mxu0
  %v2976 = vadd.f32 %v2904, %v2975
  %v2977 = vpop.f32.mrb[0].mxu0
  %2978 = vdwg.mxu0
  %v2979 = vrot.slane %v2042, 2
  %v2980 = vsel %vm882, %v2979, 0
  %2982 = vmatprep.subr.mxu0 0.0
  %2983 = vmatpush1.msra.mxu0 %v2214
  %2984 = vmatprep.subr.mxu0 0.0
  %2985 = vmatpush1.msra.mxu0 %v2215
  %2986 = vmatprep.subr.mxu0 0.0
  %2987 = vmatpush1.msra.mxu0 %v2216
  %2988 = vmatprep.subr.mxu0 0.0
  %2989 = vmatpush1.msra.mxu0 %v2217
  %2990 = vmatprep.subr.mxu0 0.0
  %2991 = vmatpush1.msra.mxu0 %v2218
  %2992 = vmatprep.subr.mxu0 0.0
  %2993 = vmatpush1.msra.mxu0 %v2219
  %2994 = vmatprep.subr.mxu0 0.0
  %2995 = vmatpush1.msra.mxu0 %v2220
  %2996 = vmatprep.subr.mxu0 0.0
  %2997 = vmatpush1.msra.mxu0 %v2221
  %2998 = vmatprep.subr.mxu0 0.0
  %2999 = vmatpush1.msra.mxu0 %v2222
  %3000 = vmatprep.subr.mxu0 0.0
  %3001 = vmatpush1.msra.mxu0 %v2223
  %3002 = vmatprep.subr.mxu0 0.0
  %3003 = vmatpush1.msra.mxu0 0.0
  %3004 = vmatprep.subr.mxu0 0.0
  %3005 = vmatpush1.msra.mxu0 0.0
  %3006 = vmatprep.subr.mxu0 0.0
  %3007 = vmatpush1.msra.mxu0 0.0
  %3008 = vmatprep.subr.mxu0 0.0
  %3009 = vmatpush1.msra.mxu0 0.0
  %3010 = vmatprep.subr.mxu0 0.0
  %3011 = vmatpush1.msra.mxu0 0.0
  %3012 = vmatprep.subr.mxu0 0.0
  %3013 = vmatpush1.msra.mxu0 0.0
  %3014 = vmatprep.subr.mxu0 0.0
  %3015 = vmatpush1.msra.mxu0 0.0
  %3016 = vmatprep.subr.mxu0 0.0
  %3017 = vmatpush1.msra.mxu0 0.0
  %3018 = vmatprep.subr.mxu0 0.0
  %3019 = vmatpush1.msra.mxu0 0.0
  %3020 = vmatprep.subr.mxu0 0.0
  %3021 = vmatpush1.msra.mxu0 0.0
  %3022 = vmatprep.subr.mxu0 0.0
  %3023 = vmatpush1.msra.mxu0 0.0
  %3024 = vmatprep.subr.mxu0 0.0
  %3025 = vmatpush1.msra.mxu0 0.0
  %3026 = vmatprep.subr.mxu0 0.0
  %3027 = vmatpush1.msra.mxu0 0.0
  %3028 = vmatprep.subr.mxu0 0.0
  %3029 = vmatpush1.msra.mxu0 0.0
  %3030 = vmatprep.subr.mxu0 0.0
  %3031 = vmatpush1.msra.mxu0 0.0
  %3032 = vmatprep.subr.mxu0 0.0
  %3033 = vmatpush1.msra.mxu0 0.0
  %3034 = vmatprep.subr.mxu0 0.0
  %3035 = vmatpush1.msra.mxu0 0.0
  %3036 = vmatprep.subr.mxu0 0.0
  %3037 = vmatpush1.msra.mxu0 0.0
  %3038 = vmatprep.subr.mxu0 0.0
  %3039 = vmatpush1.msra.mxu0 0.0
  %3040 = vmatprep.subr.mxu0 0.0
  %3041 = vmatpush1.msra.mxu0 0.0
  %3042 = vmatprep.subr.mxu0 0.0
  %3043 = vmatpush1.msra.mxu0 0.0
  %3044 = vmatprep.subr.mxu0 0.0
  %3045 = vmatpush1.msra.mxu0 0.0
  %3046 = vmatprep.mubr.f32.mxu0 0.0
  %3047 = vmatmul.mubr.f32.gmra.mrb[0].mxu0 %v2980
  %v3048 = vpop.f32.mrb[0].mxu0
  %v3049 = vadd.f32 0.0, %v3048
  %v3050 = vpop.f32.mrb[0].mxu0
  %3051 = vdwg.mxu0
  %v3052 = vadd.f32 %v2976, %v3049
  %v3053 = vrot.slane %v2042, 3
  %v3054 = vsel %vm882, %v3053, 0
  %3056 = vmatprep.subr.mxu0 0.0
  %3057 = vmatpush1.msra.mxu0 %v2299
  %3058 = vmatprep.subr.mxu0 0.0
  %3059 = vmatpush1.msra.mxu0 %v2300
  %3060 = vmatprep.subr.mxu0 0.0
  %3061 = vmatpush1.msra.mxu0 %v2301
  %3062 = vmatprep.subr.mxu0 0.0
  %3063 = vmatpush1.msra.mxu0 %v2302
  %3064 = vmatprep.subr.mxu0 0.0
  %3065 = vmatpush1.msra.mxu0 %v2303
  %3066 = vmatprep.subr.mxu0 0.0
  %3067 = vmatpush1.msra.mxu0 %v2304
  %3068 = vmatprep.subr.mxu0 0.0
  %3069 = vmatpush1.msra.mxu0 %v2305
  %3070 = vmatprep.subr.mxu0 0.0
  %3071 = vmatpush1.msra.mxu0 %v2306
  %3072 = vmatprep.subr.mxu0 0.0
  %3073 = vmatpush1.msra.mxu0 %v2307
  %3074 = vmatprep.subr.mxu0 0.0
  %3075 = vmatpush1.msra.mxu0 %v2308
  %3076 = vmatprep.subr.mxu0 0.0
  %3077 = vmatpush1.msra.mxu0 0.0
  %3078 = vmatprep.subr.mxu0 0.0
  %3079 = vmatpush1.msra.mxu0 0.0
  %3080 = vmatprep.subr.mxu0 0.0
  %3081 = vmatpush1.msra.mxu0 0.0
  %3082 = vmatprep.subr.mxu0 0.0
  %3083 = vmatpush1.msra.mxu0 0.0
  %3084 = vmatprep.subr.mxu0 0.0
  %3085 = vmatpush1.msra.mxu0 0.0
  %3086 = vmatprep.subr.mxu0 0.0
  %3087 = vmatpush1.msra.mxu0 0.0
  %3088 = vmatprep.subr.mxu0 0.0
  %3089 = vmatpush1.msra.mxu0 0.0
  %3090 = vmatprep.subr.mxu0 0.0
  %3091 = vmatpush1.msra.mxu0 0.0
  %3092 = vmatprep.subr.mxu0 0.0
  %3093 = vmatpush1.msra.mxu0 0.0
  %3094 = vmatprep.subr.mxu0 0.0
  %3095 = vmatpush1.msra.mxu0 0.0
  %3096 = vmatprep.subr.mxu0 0.0
  %3097 = vmatpush1.msra.mxu0 0.0
  %3098 = vmatprep.subr.mxu0 0.0
  %3099 = vmatpush1.msra.mxu0 0.0
  %3100 = vmatprep.subr.mxu0 0.0
  %3101 = vmatpush1.msra.mxu0 0.0
  %3102 = vmatprep.subr.mxu0 0.0
  %3103 = vmatpush1.msra.mxu0 0.0
  %3104 = vmatprep.subr.mxu0 0.0
  %3105 = vmatpush1.msra.mxu0 0.0
  %3106 = vmatprep.subr.mxu0 0.0
  %3107 = vmatpush1.msra.mxu0 0.0
  %3108 = vmatprep.subr.mxu0 0.0
  %3109 = vmatpush1.msra.mxu0 0.0
  %3110 = vmatprep.subr.mxu0 0.0
  %3111 = vmatpush1.msra.mxu0 0.0
  %3112 = vmatprep.subr.mxu0 0.0
  %3113 = vmatpush1.msra.mxu0 0.0
  %3114 = vmatprep.subr.mxu0 0.0
  %3115 = vmatpush1.msra.mxu0 0.0
  %3116 = vmatprep.subr.mxu0 0.0
  %3117 = vmatpush1.msra.mxu0 0.0
  %3118 = vmatprep.subr.mxu0 0.0
  %3119 = vmatpush1.msra.mxu0 0.0
  %3120 = vmatprep.mubr.f32.mxu0 0.0
  %3121 = vmatmul.mubr.f32.gmra.mrb[0].mxu0 %v3054
  %v3122 = vpop.f32.mrb[0].mxu0
  %v3123 = vadd.f32 0.0, %v3122
  %v3124 = vpop.f32.mrb[0].mxu0
  %3125 = vdwg.mxu0
  %v3126 = vadd.f32 %v3052, %v3123
  %v3127 = vrot.slane %v2042, 4
  %v3128 = vsel %vm882, %v3127, 0
  %3130 = vmatprep.subr.mxu0 0.0
  %3131 = vmatpush1.msra.mxu0 %v2384
  %3132 = vmatprep.subr.mxu0 0.0
  %3133 = vmatpush1.msra.mxu0 %v2385
  %3134 = vmatprep.subr.mxu0 0.0
  %3135 = vmatpush1.msra.mxu0 %v2386
  %3136 = vmatprep.subr.mxu0 0.0
  %3137 = vmatpush1.msra.mxu0 %v2387
  %3138 = vmatprep.subr.mxu0 0.0
  %3139 = vmatpush1.msra.mxu0 %v2388
  %3140 = vmatprep.subr.mxu0 0.0
  %3141 = vmatpush1.msra.mxu0 %v2389
  %3142 = vmatprep.subr.mxu0 0.0
  %3143 = vmatpush1.msra.mxu0 %v2390
  %3144 = vmatprep.subr.mxu0 0.0
  %3145 = vmatpush1.msra.mxu0 %v2391
  %3146 = vmatprep.subr.mxu0 0.0
  %3147 = vmatpush1.msra.mxu0 %v2392
  %3148 = vmatprep.subr.mxu0 0.0
  %3149 = vmatpush1.msra.mxu0 %v2393
  %3150 = vmatprep.subr.mxu0 0.0
  %3151 = vmatpush1.msra.mxu0 0.0
  %3152 = vmatprep.subr.mxu0 0.0
  %3153 = vmatpush1.msra.mxu0 0.0
  %3154 = vmatprep.subr.mxu0 0.0
  %3155 = vmatpush1.msra.mxu0 0.0
  %3156 = vmatprep.subr.mxu0 0.0
  %3157 = vmatpush1.msra.mxu0 0.0
  %3158 = vmatprep.subr.mxu0 0.0
  %3159 = vmatpush1.msra.mxu0 0.0
  %3160 = vmatprep.subr.mxu0 0.0
  %3161 = vmatpush1.msra.mxu0 0.0
  %3162 = vmatprep.subr.mxu0 0.0
  %3163 = vmatpush1.msra.mxu0 0.0
  %3164 = vmatprep.subr.mxu0 0.0
  %3165 = vmatpush1.msra.mxu0 0.0
  %3166 = vmatprep.subr.mxu0 0.0
  %3167 = vmatpush1.msra.mxu0 0.0
  %3168 = vmatprep.subr.mxu0 0.0
  %3169 = vmatpush1.msra.mxu0 0.0
  %3170 = vmatprep.subr.mxu0 0.0
  %3171 = vmatpush1.msra.mxu0 0.0
  %3172 = vmatprep.subr.mxu0 0.0
  %3173 = vmatpush1.msra.mxu0 0.0
  %3174 = vmatprep.subr.mxu0 0.0
  %3175 = vmatpush1.msra.mxu0 0.0
  %3176 = vmatprep.subr.mxu0 0.0
  %3177 = vmatpush1.msra.mxu0 0.0
  %3178 = vmatprep.subr.mxu0 0.0
  %3179 = vmatpush1.msra.mxu0 0.0
  %3180 = vmatprep.subr.mxu0 0.0
  %3181 = vmatpush1.msra.mxu0 0.0
  %3182 = vmatprep.subr.mxu0 0.0
  %3183 = vmatpush1.msra.mxu0 0.0
  %3184 = vmatprep.subr.mxu0 0.0
  %3185 = vmatpush1.msra.mxu0 0.0
  %3186 = vmatprep.subr.mxu0 0.0
  %3187 = vmatpush1.msra.mxu0 0.0
  %3188 = vmatprep.subr.mxu0 0.0
  %3189 = vmatpush1.msra.mxu0 0.0
  %3190 = vmatprep.subr.mxu0 0.0
  %3191 = vmatpush1.msra.mxu0 0.0
  %3192 = vmatprep.subr.mxu0 0.0
  %3193 = vmatpush1.msra.mxu0 0.0
  %3194 = vmatprep.mubr.f32.mxu0 0.0
  %3195 = vmatmul.mubr.f32.gmra.mrb[0].mxu0 %v3128
  %v3196 = vpop.f32.mrb[0].mxu0
  %v3197 = vadd.f32 0.0, %v3196
  %v3198 = vpop.f32.mrb[0].mxu0
  %3199 = vdwg.mxu0
  %v3200 = vadd.f32 %v3126, %v3197
  %v3202 = vrot.slane %v2042, 5
  %v3203 = vrot.slane %v2043, 5
  %v3204 = vsel %vm2033, %v3202, %v3203
  %v3205 = vsel %vm882, %v3204, 0
  %3207 = vmatprep.subr.mxu0 0.0
  %3208 = vmatpush1.msra.mxu0 %v2469
  %3209 = vmatprep.subr.mxu0 0.0
  %3210 = vmatpush1.msra.mxu0 %v2470
  %3211 = vmatprep.subr.mxu0 0.0
  %3212 = vmatpush1.msra.mxu0 %v2471
  %3213 = vmatprep.subr.mxu0 0.0
  %3214 = vmatpush1.msra.mxu0 %v2472
  %3215 = vmatprep.subr.mxu0 0.0
  %3216 = vmatpush1.msra.mxu0 %v2473
  %3217 = vmatprep.subr.mxu0 0.0
  %3218 = vmatpush1.msra.mxu0 %v2474
  %3219 = vmatprep.subr.mxu0 0.0
  %3220 = vmatpush1.msra.mxu0 %v2475
  %3221 = vmatprep.subr.mxu0 0.0
  %3222 = vmatpush1.msra.mxu0 %v2476
  %3223 = vmatprep.subr.mxu0 0.0
  %3224 = vmatpush1.msra.mxu0 %v2477
  %3225 = vmatprep.subr.mxu0 0.0
  %3226 = vmatpush1.msra.mxu0 %v2478
  %3227 = vmatprep.subr.mxu0 0.0
  %3228 = vmatpush1.msra.mxu0 0.0
  %3229 = vmatprep.subr.mxu0 0.0
  %3230 = vmatpush1.msra.mxu0 0.0
  %3231 = vmatprep.subr.mxu0 0.0
  %3232 = vmatpush1.msra.mxu0 0.0
  %3233 = vmatprep.subr.mxu0 0.0
  %3234 = vmatpush1.msra.mxu0 0.0
  %3235 = vmatprep.subr.mxu0 0.0
  %3236 = vmatpush1.msra.mxu0 0.0
  %3237 = vmatprep.subr.mxu0 0.0
  %3238 = vmatpush1.msra.mxu0 0.0
  %3239 = vmatprep.subr.mxu0 0.0
  %3240 = vmatpush1.msra.mxu0 0.0
  %3241 = vmatprep.subr.mxu0 0.0
  %3242 = vmatpush1.msra.mxu0 0.0
  %3243 = vmatprep.subr.mxu0 0.0
  %3244 = vmatpush1.msra.mxu0 0.0
  %3245 = vmatprep.subr.mxu0 0.0
  %3246 = vmatpush1.msra.mxu0 0.0
  %3247 = vmatprep.subr.mxu0 0.0
  %3248 = vmatpush1.msra.mxu0 0.0
  %3249 = vmatprep.subr.mxu0 0.0
  %3250 = vmatpush1.msra.mxu0 0.0
  %3251 = vmatprep.subr.mxu0 0.0
  %3252 = vmatpush1.msra.mxu0 0.0
  %3253 = vmatprep.subr.mxu0 0.0
  %3254 = vmatpush1.msra.mxu0 0.0
  %3255 = vmatprep.subr.mxu0 0.0
  %3256 = vmatpush1.msra.mxu0 0.0
  %3257 = vmatprep.subr.mxu0 0.0
  %3258 = vmatpush1.msra.mxu0 0.0
  %3259 = vmatprep.subr.mxu0 0.0
  %3260 = vmatpush1.msra.mxu0 0.0
  %3261 = vmatprep.subr.mxu0 0.0
  %3262 = vmatpush1.msra.mxu0 0.0
  %3263 = vmatprep.subr.mxu0 0.0
  %3264 = vmatpush1.msra.mxu0 0.0
  %3265 = vmatprep.subr.mxu0 0.0
  %3266 = vmatpush1.msra.mxu0 0.0
  %3267 = vmatprep.subr.mxu0 0.0
  %3268 = vmatpush1.msra.mxu0 0.0
  %3269 = vmatprep.subr.mxu0 0.0
  %3270 = vmatpush1.msra.mxu0 0.0
  %3271 = vmatprep.mubr.f32.mxu0 0.0
  %3272 = vmatmul.mubr.f32.gmra.mrb[0].mxu0 %v3205
  %v3273 = vpop.f32.mrb[0].mxu0
  %v3274 = vadd.f32 0.0, %v3273
  %v3275 = vpop.f32.mrb[0].mxu0
  %3276 = vdwg.mxu0
  %v3277 = vadd.f32 %v3200, %v3274
  %v3278 = vrot.slane %v2042, 6
  %v3279 = vrot.slane %v2043, 6
  %v3280 = vsel %vm2567, %v3278, %v3279
  %v3281 = vsel %vm882, %v3280, 0
  %3283 = vmatprep.subr.mxu0 0.0
  %3284 = vmatpush1.msra.mxu0 %v2557
  %3285 = vmatprep.subr.mxu0 0.0
  %3286 = vmatpush1.msra.mxu0 %v2558
  %3287 = vmatprep.subr.mxu0 0.0
  %3288 = vmatpush1.msra.mxu0 %v2559
  %3289 = vmatprep.subr.mxu0 0.0
  %3290 = vmatpush1.msra.mxu0 %v2560
  %3291 = vmatprep.subr.mxu0 0.0
  %3292 = vmatpush1.msra.mxu0 %v2561
  %3293 = vmatprep.subr.mxu0 0.0
  %3294 = vmatpush1.msra.mxu0 %v2562
  %3295 = vmatprep.subr.mxu0 0.0
  %3296 = vmatpush1.msra.mxu0 %v2563
  %3297 = vmatprep.subr.mxu0 0.0
  %3298 = vmatpush1.msra.mxu0 %v2564
  %3299 = vmatprep.subr.mxu0 0.0
  %3300 = vmatpush1.msra.mxu0 %v2565
  %3301 = vmatprep.subr.mxu0 0.0
  %3302 = vmatpush1.msra.mxu0 %v2566
  %3303 = vmatprep.subr.mxu0 0.0
  %3304 = vmatpush1.msra.mxu0 0.0
  %3305 = vmatprep.subr.mxu0 0.0
  %3306 = vmatpush1.msra.mxu0 0.0
  %3307 = vmatprep.subr.mxu0 0.0
  %3308 = vmatpush1.msra.mxu0 0.0
  %3309 = vmatprep.subr.mxu0 0.0
  %3310 = vmatpush1.msra.mxu0 0.0
  %3311 = vmatprep.subr.mxu0 0.0
  %3312 = vmatpush1.msra.mxu0 0.0
  %3313 = vmatprep.subr.mxu0 0.0
  %3314 = vmatpush1.msra.mxu0 0.0
  %3315 = vmatprep.subr.mxu0 0.0
  %3316 = vmatpush1.msra.mxu0 0.0
  %3317 = vmatprep.subr.mxu0 0.0
  %3318 = vmatpush1.msra.mxu0 0.0
  %3319 = vmatprep.subr.mxu0 0.0
  %3320 = vmatpush1.msra.mxu0 0.0
  %3321 = vmatprep.subr.mxu0 0.0
  %3322 = vmatpush1.msra.mxu0 0.0
  %3323 = vmatprep.subr.mxu0 0.0
  %3324 = vmatpush1.msra.mxu0 0.0
  %3325 = vmatprep.subr.mxu0 0.0
  %3326 = vmatpush1.msra.mxu0 0.0
  %3327 = vmatprep.subr.mxu0 0.0
  %3328 = vmatpush1.msra.mxu0 0.0
  %3329 = vmatprep.subr.mxu0 0.0
  %3330 = vmatpush1.msra.mxu0 0.0
  %3331 = vmatprep.subr.mxu0 0.0
  %3332 = vmatpush1.msra.mxu0 0.0
  %3333 = vmatprep.subr.mxu0 0.0
  %3334 = vmatpush1.msra.mxu0 0.0
  %3335 = vmatprep.subr.mxu0 0.0
  %3336 = vmatpush1.msra.mxu0 0.0
  %3337 = vmatprep.subr.mxu0 0.0
  %3338 = vmatpush1.msra.mxu0 0.0
  %3339 = vmatprep.subr.mxu0 0.0
  %3340 = vmatpush1.msra.mxu0 0.0
  %3341 = vmatprep.subr.mxu0 0.0
  %3342 = vmatpush1.msra.mxu0 0.0
  %3343 = vmatprep.subr.mxu0 0.0
  %3344 = vmatpush1.msra.mxu0 0.0
  %3345 = vmatprep.subr.mxu0 0.0
  %3346 = vmatpush1.msra.mxu0 0.0
  %3347 = vmatprep.mubr.f32.mxu0 0.0
  %3348 = vmatmul.mubr.f32.gmra.mrb[0].mxu0 %v3281
  %v3349 = vpop.f32.mrb[0].mxu0
  %v3350 = vadd.f32 0.0, %v3349
  %v3351 = vpop.f32.mrb[0].mxu0
  %3352 = vdwg.mxu0
  %v3353 = vadd.f32 %v3277, %v3350
  %v3354 = vrot.slane %v2042, 7
  %v3355 = vrot.slane %v2043, 7
  %v3356 = vsel %vm2026, %v3354, %v3355
  %v3357 = vsel %vm882, %v3356, 0
  %3359 = vmatprep.subr.mxu0 0.0
  %3360 = vmatpush1.msra.mxu0 %v2645
  %3361 = vmatprep.subr.mxu0 0.0
  %3362 = vmatpush1.msra.mxu0 %v2646
  %3363 = vmatprep.subr.mxu0 0.0
  %3364 = vmatpush1.msra.mxu0 %v2647
  %3365 = vmatprep.subr.mxu0 0.0
  %3366 = vmatpush1.msra.mxu0 %v2648
  %3367 = vmatprep.subr.mxu0 0.0
  %3368 = vmatpush1.msra.mxu0 %v2649
  %3369 = vmatprep.subr.mxu0 0.0
  %3370 = vmatpush1.msra.mxu0 %v2650
  %3371 = vmatprep.subr.mxu0 0.0
  %3372 = vmatpush1.msra.mxu0 %v2651
  %3373 = vmatprep.subr.mxu0 0.0
  %3374 = vmatpush1.msra.mxu0 %v2652
  %3375 = vmatprep.subr.mxu0 0.0
  %3376 = vmatpush1.msra.mxu0 %v2653
  %3377 = vmatprep.subr.mxu0 0.0
  %3378 = vmatpush1.msra.mxu0 %v2654
  %3379 = vmatprep.subr.mxu0 0.0
  %3380 = vmatpush1.msra.mxu0 0.0
  %3381 = vmatprep.subr.mxu0 0.0
  %3382 = vmatpush1.msra.mxu0 0.0
  %3383 = vmatprep.subr.mxu0 0.0
  %3384 = vmatpush1.msra.mxu0 0.0
  %3385 = vmatprep.subr.mxu0 0.0
  %3386 = vmatpush1.msra.mxu0 0.0
  %3387 = vmatprep.subr.mxu0 0.0
  %3388 = vmatpush1.msra.mxu0 0.0
  %3389 = vmatprep.subr.mxu0 0.0
  %3390 = vmatpush1.msra.mxu0 0.0
  %3391 = vmatprep.subr.mxu0 0.0
  %3392 = vmatpush1.msra.mxu0 0.0
  %3393 = vmatprep.subr.mxu0 0.0
  %3394 = vmatpush1.msra.mxu0 0.0
  %3395 = vmatprep.subr.mxu0 0.0
  %3396 = vmatpush1.msra.mxu0 0.0
  %3397 = vmatprep.subr.mxu0 0.0
  %3398 = vmatpush1.msra.mxu0 0.0
  %3399 = vmatprep.subr.mxu0 0.0
  %3400 = vmatpush1.msra.mxu0 0.0
  %3401 = vmatprep.subr.mxu0 0.0
  %3402 = vmatpush1.msra.mxu0 0.0
  %3403 = vmatprep.subr.mxu0 0.0
  %3404 = vmatpush1.msra.mxu0 0.0
  %3405 = vmatprep.subr.mxu0 0.0
  %3406 = vmatpush1.msra.mxu0 0.0
  %3407 = vmatprep.subr.mxu0 0.0
  %3408 = vmatpush1.msra.mxu0 0.0
  %3409 = vmatprep.subr.mxu0 0.0
  %3410 = vmatpush1.msra.mxu0 0.0
  %3411 = vmatprep.subr.mxu0 0.0
  %3412 = vmatpush1.msra.mxu0 0.0
  %3413 = vmatprep.subr.mxu0 0.0
  %3414 = vmatpush1.msra.mxu0 0.0
  %3415 = vmatprep.subr.mxu0 0.0
  %3416 = vmatpush1.msra.mxu0 0.0
  %3417 = vmatprep.subr.mxu0 0.0
  %3418 = vmatpush1.msra.mxu0 0.0
  %3419 = vmatprep.subr.mxu0 0.0
  %3420 = vmatpush1.msra.mxu0 0.0
  %3421 = vmatprep.subr.mxu0 0.0
  %3422 = vmatpush1.msra.mxu0 0.0
  %3423 = vmatprep.mubr.f32.mxu0 0.0
  %3424 = vmatmul.mubr.f32.gmra.mrb[0].mxu0 %v3357
  %v3425 = vpop.f32.mrb[0].mxu0
  %v3426 = vadd.f32 0.0, %v3425
  %v3427 = vpop.f32.mrb[0].mxu0
  %3428 = vdwg.mxu0
  %v3429 = vadd.f32 %v3353, %v3426
  %v3430 = vsel %vm882, %v2043, 0
  %3432 = vmatprep.subr.mxu0 0.0
  %3433 = vmatpush1.msra.mxu0 %v2732
  %3434 = vmatprep.subr.mxu0 0.0
  %3435 = vmatpush1.msra.mxu0 %v2733
  %3436 = vmatprep.subr.mxu0 0.0
  %3437 = vmatpush1.msra.mxu0 %v2734
  %3438 = vmatprep.subr.mxu0 0.0
  %3439 = vmatpush1.msra.mxu0 %v2735
  %3440 = vmatprep.subr.mxu0 0.0
  %3441 = vmatpush1.msra.mxu0 %v2736
  %3442 = vmatprep.subr.mxu0 0.0
  %3443 = vmatpush1.msra.mxu0 %v2737
  %3444 = vmatprep.subr.mxu0 0.0
  %3445 = vmatpush1.msra.mxu0 %v2738
  %3446 = vmatprep.subr.mxu0 0.0
  %3447 = vmatpush1.msra.mxu0 %v2739
  %3448 = vmatprep.subr.mxu0 0.0
  %3449 = vmatpush1.msra.mxu0 %v2740
  %3450 = vmatprep.subr.mxu0 0.0
  %3451 = vmatpush1.msra.mxu0 %v2741
  %3452 = vmatprep.subr.mxu0 0.0
  %3453 = vmatpush1.msra.mxu0 0.0
  %3454 = vmatprep.subr.mxu0 0.0
  %3455 = vmatpush1.msra.mxu0 0.0
  %3456 = vmatprep.subr.mxu0 0.0
  %3457 = vmatpush1.msra.mxu0 0.0
  %3458 = vmatprep.subr.mxu0 0.0
  %3459 = vmatpush1.msra.mxu0 0.0
  %3460 = vmatprep.subr.mxu0 0.0
  %3461 = vmatpush1.msra.mxu0 0.0
  %3462 = vmatprep.subr.mxu0 0.0
  %3463 = vmatpush1.msra.mxu0 0.0
  %3464 = vmatprep.subr.mxu0 0.0
  %3465 = vmatpush1.msra.mxu0 0.0
  %3466 = vmatprep.subr.mxu0 0.0
  %3467 = vmatpush1.msra.mxu0 0.0
  %3468 = vmatprep.subr.mxu0 0.0
  %3469 = vmatpush1.msra.mxu0 0.0
  %3470 = vmatprep.subr.mxu0 0.0
  %3471 = vmatpush1.msra.mxu0 0.0
  %3472 = vmatprep.subr.mxu0 0.0
  %3473 = vmatpush1.msra.mxu0 0.0
  %3474 = vmatprep.subr.mxu0 0.0
  %3475 = vmatpush1.msra.mxu0 0.0
  %3476 = vmatprep.subr.mxu0 0.0
  %3477 = vmatpush1.msra.mxu0 0.0
  %3478 = vmatprep.subr.mxu0 0.0
  %3479 = vmatpush1.msra.mxu0 0.0
  %3480 = vmatprep.subr.mxu0 0.0
  %3481 = vmatpush1.msra.mxu0 0.0
  %3482 = vmatprep.subr.mxu0 0.0
  %3483 = vmatpush1.msra.mxu0 0.0
  %3484 = vmatprep.subr.mxu0 0.0
  %3485 = vmatpush1.msra.mxu0 0.0
  %3486 = vmatprep.subr.mxu0 0.0
  %3487 = vmatpush1.msra.mxu0 0.0
  %3488 = vmatprep.subr.mxu0 0.0
  %3489 = vmatpush1.msra.mxu0 0.0
  %3490 = vmatprep.subr.mxu0 0.0
  %3491 = vmatpush1.msra.mxu0 0.0
  %3492 = vmatprep.subr.mxu0 0.0
  %3493 = vmatpush1.msra.mxu0 0.0
  %3494 = vmatprep.subr.mxu0 0.0
  %3495 = vmatpush1.msra.mxu0 0.0
  %3496 = vmatprep.mubr.f32.mxu0 0.0
  %3497 = vmatmul.mubr.f32.gmra.mrb[0].mxu0 %v3430
  %v3498 = vpop.f32.mrb[0].mxu0
  %v3499 = vadd.f32 0.0, %v3498
  %v3500 = vpop.f32.mrb[0].mxu0
  %3501 = vdwg.mxu0
  %v3502 = vadd.f32 %v3429, %v3499
  %v3503 = vsel %vm2815, %v3502, 0.0
  %v3504 = vrot.slane %v3503, 4
  %v3505 = vadd.f32 %v3503, %v3504
  %v3506 = vrot.slane %v3505, 2
  %v3507 = vadd.f32 %v3505, %v3506
  %v3508 = vrot.slane %v3507, 1
  %v3509 = vadd.f32 %v3507, %v3508
  %v3510 = vadd.f32 %v2823, %v3509
  %v3511 = vmul.f32 %v3502, %v3502
  %v3512 = vsel %vm2815, %v3511, 0.0
  %v3513 = vrot.slane %v3512, 4
  %v3514 = vadd.f32 %v3512, %v3513
  %v3515 = vrot.slane %v3514, 2
  %v3516 = vadd.f32 %v3514, %v3515
  %v3517 = vrot.slane %v3516, 1
  %v3518 = vadd.f32 %v3516, %v3517
  %v3519 = vadd.f32 %v2832, %v3518
  %v3520 = vld [vmem:[%s9] sm:$0xff]
  %v3521 = vld [vmem:[%s9 + $0x8] sm:$0xff]
  %v3522 = vld [vmem:[%s9 + $0x10] sm:$0xff]
  %v3523 = vld [vmem:[%s9 + $0x18] sm:$0xff]
  %vm3524 = vcmask 261120
  %v3526 = vsel %vm3524, %v3510, 0
  %3528 = vmatprep.subr.mxu0 0.0
  %3529 = vmatpush1.msra.mxu0 %v3520
  %3530 = vmatprep.subr.mxu0 0.0
  %3531 = vmatpush1.msra.mxu0 %v3521
  %3532 = vmatprep.subr.mxu0 0.0
  %3533 = vmatpush1.msra.mxu0 %v3522
  %3534 = vmatprep.subr.mxu0 0.0
  %3535 = vmatpush1.msra.mxu0 %v3523
  %3536 = vmatprep.subr.mxu0 0.0
  %3537 = vmatpush1.msra.mxu0 0.0
  %3538 = vmatprep.subr.mxu0 0.0
  %3539 = vmatpush1.msra.mxu0 0.0
  %3540 = vmatprep.subr.mxu0 0.0
  %3541 = vmatpush1.msra.mxu0 0.0
  %3542 = vmatprep.subr.mxu0 0.0
  %3543 = vmatpush1.msra.mxu0 0.0
  %3544 = vmatprep.subr.mxu0 0.0
  %3545 = vmatpush1.msra.mxu0 0.0
  %3546 = vmatprep.subr.mxu0 0.0
  %3547 = vmatpush1.msra.mxu0 0.0
  %3548 = vmatprep.subr.mxu0 0.0
  %3549 = vmatpush1.msra.mxu0 0.0
  %3550 = vmatprep.subr.mxu0 0.0
  %3551 = vmatpush1.msra.mxu0 0.0
  %3552 = vmatprep.subr.mxu0 0.0
  %3553 = vmatpush1.msra.mxu0 0.0
  %3554 = vmatprep.subr.mxu0 0.0
  %3555 = vmatpush1.msra.mxu0 0.0
  %3556 = vmatprep.subr.mxu0 0.0
  %3557 = vmatpush1.msra.mxu0 0.0
  %3558 = vmatprep.subr.mxu0 0.0
  %3559 = vmatpush1.msra.mxu0 0.0
  %3560 = vmatprep.subr.mxu0 0.0
  %3561 = vmatpush1.msra.mxu0 0.0
  %3562 = vmatprep.subr.mxu0 0.0
  %3563 = vmatpush1.msra.mxu0 0.0
  %3564 = vmatprep.subr.mxu0 0.0
  %3565 = vmatpush1.msra.mxu0 0.0
  %3566 = vmatprep.subr.mxu0 0.0
  %3567 = vmatpush1.msra.mxu0 0.0
  %3568 = vmatprep.subr.mxu0 0.0
  %3569 = vmatpush1.msra.mxu0 0.0
  %3570 = vmatprep.subr.mxu0 0.0
  %3571 = vmatpush1.msra.mxu0 0.0
  %3572 = vmatprep.subr.mxu0 0.0
  %3573 = vmatpush1.msra.mxu0 0.0
  %3574 = vmatprep.subr.mxu0 0.0
  %3575 = vmatpush1.msra.mxu0 0.0
  %3576 = vmatprep.subr.mxu0 0.0
  %3577 = vmatpush1.msra.mxu0 0.0
  %3578 = vmatprep.subr.mxu0 0.0
  %3579 = vmatpush1.msra.mxu0 0.0
  %3580 = vmatprep.subr.mxu0 0.0
  %3581 = vmatpush1.msra.mxu0 0.0
  %3582 = vmatprep.subr.mxu0 0.0
  %3583 = vmatpush1.msra.mxu0 0.0
  %3584 = vmatprep.subr.mxu0 0.0
  %3585 = vmatpush1.msra.mxu0 0.0
  %3586 = vmatprep.subr.mxu0 0.0
  %3587 = vmatpush1.msra.mxu0 0.0
  %3588 = vmatprep.subr.mxu0 0.0
  %3589 = vmatpush1.msra.mxu0 0.0
  %3590 = vmatprep.subr.mxu0 0.0
  %3591 = vmatpush1.msra.mxu0 0.0
  %3592 = vmatprep.mubr.f32.mxu0 0.0
  %3593 = vmatmul.mubr.f32.gmra.mrb[0].mxu0 %v3526
  %v3594 = vpop.f32.mrb[0].mxu0
  %v3595 = vadd.f32 0.0, %v3594
  %v3596 = vpop.f32.mrb[0].mxu0
  %3597 = vdwg.mxu0
  %v3599 = vsel %vm3524, %v3519, 0
  %3601 = vmatprep.subr.mxu0 0.0
  %3602 = vmatpush1.msra.mxu0 %v3520
  %3603 = vmatprep.subr.mxu0 0.0
  %3604 = vmatpush1.msra.mxu0 %v3521
  %3605 = vmatprep.subr.mxu0 0.0
  %3606 = vmatpush1.msra.mxu0 %v3522
  %3607 = vmatprep.subr.mxu0 0.0
  %3608 = vmatpush1.msra.mxu0 %v3523
  %3609 = vmatprep.subr.mxu0 0.0
  %3610 = vmatpush1.msra.mxu0 0.0
  %3611 = vmatprep.subr.mxu0 0.0
  %3612 = vmatpush1.msra.mxu0 0.0
  %3613 = vmatprep.subr.mxu0 0.0
  %3614 = vmatpush1.msra.mxu0 0.0
  %3615 = vmatprep.subr.mxu0 0.0
  %3616 = vmatpush1.msra.mxu0 0.0
  %3617 = vmatprep.subr.mxu0 0.0
  %3618 = vmatpush1.msra.mxu0 0.0
  %3619 = vmatprep.subr.mxu0 0.0
  %3620 = vmatpush1.msra.mxu0 0.0
  %3621 = vmatprep.subr.mxu0 0.0
  %3622 = vmatpush1.msra.mxu0 0.0
  %3623 = vmatprep.subr.mxu0 0.0
  %3624 = vmatpush1.msra.mxu0 0.0
  %3625 = vmatprep.subr.mxu0 0.0
  %3626 = vmatpush1.msra.mxu0 0.0
  %3627 = vmatprep.subr.mxu0 0.0
  %3628 = vmatpush1.msra.mxu0 0.0
  %3629 = vmatprep.subr.mxu0 0.0
  %3630 = vmatpush1.msra.mxu0 0.0
  %3631 = vmatprep.subr.mxu0 0.0
  %3632 = vmatpush1.msra.mxu0 0.0
  %3633 = vmatprep.subr.mxu0 0.0
  %3634 = vmatpush1.msra.mxu0 0.0
  %3635 = vmatprep.subr.mxu0 0.0
  %3636 = vmatpush1.msra.mxu0 0.0
  %3637 = vmatprep.subr.mxu0 0.0
  %3638 = vmatpush1.msra.mxu0 0.0
  %3639 = vmatprep.subr.mxu0 0.0
  %3640 = vmatpush1.msra.mxu0 0.0
  %3641 = vmatprep.subr.mxu0 0.0
  %3642 = vmatpush1.msra.mxu0 0.0
  %3643 = vmatprep.subr.mxu0 0.0
  %3644 = vmatpush1.msra.mxu0 0.0
  %3645 = vmatprep.subr.mxu0 0.0
  %3646 = vmatpush1.msra.mxu0 0.0
  %3647 = vmatprep.subr.mxu0 0.0
  %3648 = vmatpush1.msra.mxu0 0.0
  %3649 = vmatprep.subr.mxu0 0.0
  %3650 = vmatpush1.msra.mxu0 0.0
  %3651 = vmatprep.subr.mxu0 0.0
  %3652 = vmatpush1.msra.mxu0 0.0
  %3653 = vmatprep.subr.mxu0 0.0
  %3654 = vmatpush1.msra.mxu0 0.0
  %3655 = vmatprep.subr.mxu0 0.0
  %3656 = vmatpush1.msra.mxu0 0.0
  %3657 = vmatprep.subr.mxu0 0.0
  %3658 = vmatpush1.msra.mxu0 0.0
  %3659 = vmatprep.subr.mxu0 0.0
  %3660 = vmatpush1.msra.mxu0 0.0
  %3661 = vmatprep.subr.mxu0 0.0
  %3662 = vmatpush1.msra.mxu0 0.0
  %3663 = vmatprep.subr.mxu0 0.0
  %3664 = vmatpush1.msra.mxu0 0.0
  %3665 = vmatprep.mubr.f32.mxu0 0.0
  %3666 = vmatmul.mubr.f32.gmra.mrb[0].mxu0 %v3599
  %v3667 = vpop.f32.mrb[0].mxu0
  %v3668 = vadd.f32 0.0, %v3667
  %v3669 = vpop.f32.mrb[0].mxu0
  %3670 = vdwg.mxu0
  %v3671 = vmul.f32 %v3595, 0.03125
  %v3672 = vmul.f32 %v3668, 0.03125
  %v3673 = vmul.f32 %v3671, %v3671
  %v3674 = vsub.f32 %v3672, %v3673
  %v3675 = vmax.f32 %v3674, 0.0
  %v3676 = vadd.f32 %v3675, 1e-05
  %v3677 = vrsqrt.pop %v3676
  %v3678 = vmul.f32 %v3677, %v2044
  %v3679 = vmul.f32 %v3671, %v3678
  %v3680 = vsub.f32 %v2045, %v3679
  %v3681 = vld [vmem:[%s10] sm:$0xff]
  %v3683 = vsel %vm1857, %v3678, 0
  %3685 = vmatprep.subr.mxu0 0.0
  %3686 = vmatpush1.msra.mxu0 %v3681
  %3687 = vmatprep.subr.mxu0 0.0
  %3688 = vmatpush1.msra.mxu0 0.0
  %3689 = vmatprep.subr.mxu0 0.0
  %3690 = vmatpush1.msra.mxu0 0.0
  %3691 = vmatprep.subr.mxu0 0.0
  %3692 = vmatpush1.msra.mxu0 0.0
  %3693 = vmatprep.subr.mxu0 0.0
  %3694 = vmatpush1.msra.mxu0 0.0
  %3695 = vmatprep.subr.mxu0 0.0
  %3696 = vmatpush1.msra.mxu0 0.0
  %3697 = vmatprep.subr.mxu0 0.0
  %3698 = vmatpush1.msra.mxu0 0.0
  %3699 = vmatprep.subr.mxu0 0.0
  %3700 = vmatpush1.msra.mxu0 0.0
  %3701 = vmatprep.subr.mxu0 0.0
  %3702 = vmatpush1.msra.mxu0 0.0
  %3703 = vmatprep.subr.mxu0 0.0
  %3704 = vmatpush1.msra.mxu0 0.0
  %3705 = vmatprep.subr.mxu0 0.0
  %3706 = vmatpush1.msra.mxu0 0.0
  %3707 = vmatprep.subr.mxu0 0.0
  %3708 = vmatpush1.msra.mxu0 0.0
  %3709 = vmatprep.subr.mxu0 0.0
  %3710 = vmatpush1.msra.mxu0 0.0
  %3711 = vmatprep.subr.mxu0 0.0
  %3712 = vmatpush1.msra.mxu0 0.0
  %3713 = vmatprep.subr.mxu0 0.0
  %3714 = vmatpush1.msra.mxu0 0.0
  %3715 = vmatprep.subr.mxu0 0.0
  %3716 = vmatpush1.msra.mxu0 0.0
  %3717 = vmatprep.subr.mxu0 0.0
  %3718 = vmatpush1.msra.mxu0 0.0
  %3719 = vmatprep.subr.mxu0 0.0
  %3720 = vmatpush1.msra.mxu0 0.0
  %3721 = vmatprep.subr.mxu0 0.0
  %3722 = vmatpush1.msra.mxu0 0.0
  %3723 = vmatprep.subr.mxu0 0.0
  %3724 = vmatpush1.msra.mxu0 0.0
  %3725 = vmatprep.subr.mxu0 0.0
  %3726 = vmatpush1.msra.mxu0 0.0
  %3727 = vmatprep.subr.mxu0 0.0
  %3728 = vmatpush1.msra.mxu0 0.0
  %3729 = vmatprep.subr.mxu0 0.0
  %3730 = vmatpush1.msra.mxu0 0.0
  %3731 = vmatprep.subr.mxu0 0.0
  %3732 = vmatpush1.msra.mxu0 0.0
  %3733 = vmatprep.subr.mxu0 0.0
  %3734 = vmatpush1.msra.mxu0 0.0
  %3735 = vmatprep.subr.mxu0 0.0
  %3736 = vmatpush1.msra.mxu0 0.0
  %3737 = vmatprep.subr.mxu0 0.0
  %3738 = vmatpush1.msra.mxu0 0.0
  %3739 = vmatprep.subr.mxu0 0.0
  %3740 = vmatpush1.msra.mxu0 0.0
  %3741 = vmatprep.subr.mxu0 0.0
  %3742 = vmatpush1.msra.mxu0 0.0
  %3743 = vmatprep.subr.mxu0 0.0
  %3744 = vmatpush1.msra.mxu0 0.0
  %3745 = vmatprep.subr.mxu0 0.0
  %3746 = vmatpush1.msra.mxu0 0.0
  %3747 = vmatprep.subr.mxu0 0.0
  %3748 = vmatpush1.msra.mxu0 0.0
  %3749 = vmatprep.mubr.f32.mxu0 0.0
  %3750 = vmatmul.mubr.f32.gmra.mrb[0].mxu0 %v3683
  %v3751 = vpop.f32.mrb[0].mxu0
  %v3752 = vadd.f32 0.0, %v3751
  %v3753 = vpop.f32.mrb[0].mxu0
  %3754 = vdwg.mxu0
  %v3756 = vsel %vm1857, %v3680, 0
  %3758 = vmatprep.subr.mxu0 0.0
  %3759 = vmatpush1.msra.mxu0 %v3681
  %3760 = vmatprep.subr.mxu0 0.0
  %3761 = vmatpush1.msra.mxu0 0.0
  %3762 = vmatprep.subr.mxu0 0.0
  %3763 = vmatpush1.msra.mxu0 0.0
  %3764 = vmatprep.subr.mxu0 0.0
  %3765 = vmatpush1.msra.mxu0 0.0
  %3766 = vmatprep.subr.mxu0 0.0
  %3767 = vmatpush1.msra.mxu0 0.0
  %3768 = vmatprep.subr.mxu0 0.0
  %3769 = vmatpush1.msra.mxu0 0.0
  %3770 = vmatprep.subr.mxu0 0.0
  %3771 = vmatpush1.msra.mxu0 0.0
  %3772 = vmatprep.subr.mxu0 0.0
  %3773 = vmatpush1.msra.mxu0 0.0
  %3774 = vmatprep.subr.mxu0 0.0
  %3775 = vmatpush1.msra.mxu0 0.0
  %3776 = vmatprep.subr.mxu0 0.0
  %3777 = vmatpush1.msra.mxu0 0.0
  %3778 = vmatprep.subr.mxu0 0.0
  %3779 = vmatpush1.msra.mxu0 0.0
  %3780 = vmatprep.subr.mxu0 0.0
  %3781 = vmatpush1.msra.mxu0 0.0
  %3782 = vmatprep.subr.mxu0 0.0
  %3783 = vmatpush1.msra.mxu0 0.0
  %3784 = vmatprep.subr.mxu0 0.0
  %3785 = vmatpush1.msra.mxu0 0.0
  %3786 = vmatprep.subr.mxu0 0.0
  %3787 = vmatpush1.msra.mxu0 0.0
  %3788 = vmatprep.subr.mxu0 0.0
  %3789 = vmatpush1.msra.mxu0 0.0
  %3790 = vmatprep.subr.mxu0 0.0
  %3791 = vmatpush1.msra.mxu0 0.0
  %3792 = vmatprep.subr.mxu0 0.0
  %3793 = vmatpush1.msra.mxu0 0.0
  %3794 = vmatprep.subr.mxu0 0.0
  %3795 = vmatpush1.msra.mxu0 0.0
  %3796 = vmatprep.subr.mxu0 0.0
  %3797 = vmatpush1.msra.mxu0 0.0
  %3798 = vmatprep.subr.mxu0 0.0
  %3799 = vmatpush1.msra.mxu0 0.0
  %3800 = vmatprep.subr.mxu0 0.0
  %3801 = vmatpush1.msra.mxu0 0.0
  %3802 = vmatprep.subr.mxu0 0.0
  %3803 = vmatpush1.msra.mxu0 0.0
  %3804 = vmatprep.subr.mxu0 0.0
  %3805 = vmatpush1.msra.mxu0 0.0
  %3806 = vmatprep.subr.mxu0 0.0
  %3807 = vmatpush1.msra.mxu0 0.0
  %3808 = vmatprep.subr.mxu0 0.0
  %3809 = vmatpush1.msra.mxu0 0.0
  %3810 = vmatprep.subr.mxu0 0.0
  %3811 = vmatpush1.msra.mxu0 0.0
  %3812 = vmatprep.subr.mxu0 0.0
  %3813 = vmatpush1.msra.mxu0 0.0
  %3814 = vmatprep.subr.mxu0 0.0
  %3815 = vmatpush1.msra.mxu0 0.0
  %3816 = vmatprep.subr.mxu0 0.0
  %3817 = vmatpush1.msra.mxu0 0.0
  %3818 = vmatprep.subr.mxu0 0.0
  %3819 = vmatpush1.msra.mxu0 0.0
  %3820 = vmatprep.subr.mxu0 0.0
  %3821 = vmatpush1.msra.mxu0 0.0
  %3822 = vmatprep.mubr.f32.mxu0 0.0
  %3823 = vmatmul.mubr.f32.gmra.mrb[0].mxu0 %v3756
  %v3824 = vpop.f32.mrb[0].mxu0
  %v3825 = vadd.f32 0.0, %v3824
  %v3826 = vpop.f32.mrb[0].mxu0
  %3827 = vdwg.mxu0
  %v3828 = vlaneseq
  %v3829 = vshrl.u32 %v3828, 7
  %v3830 = vsub.s32 0, %v3829
  %v3831 = vrot.slane %v3752, %v3830
  %v3832 = vmul.f32 %v2814, %v3831
  %v3833 = vlaneseq
  %v3834 = vshrl.u32 %v3833, 7
  %v3835 = vsub.s32 0, %v3834
  %v3836 = vrot.slane %v3825, %v3835
  %v3837 = vadd.f32 %v3832, %v3836
  %v3838 = vmax.f32 %v3837, 0.0
  %v3839 = vmul.f32 %v3502, %v3831
  %v3840 = vadd.f32 %v3839, %v3836
  %v3841 = vmax.f32 %v3840, 0.0
  %3842 = vst.msk [vmem:[%s11] sm:$0xf] %vm2815, %v3838
  %s3843 = scalar_lea.vmem %s11, 4
  %3844 = vst.msk [vmem:[%s3843] sm:$0xf] %vm2815, %v3841
  // Predicated region
  $region46: #{double_conv_pallas.1} parent=0 // pred_check
    _
  $region47: #{double_conv_pallas.1} parent=0 // pred_check_branch
    %3846 = sbr.rel (0) target = $region49
  $region48: #{double_conv_pallas.1} parent=0 // pred_region
    _
  $region49: #{double_conv_pallas.1} parent=0 // pred_fallthru
    _
  // Predicated region
  $region50: #{double_conv_pallas.1} parent=0 // pred_check
    _
  $region51: #{double_conv_pallas.1} parent=0 // pred_check_branch
    %3848 = sbr.rel (0) target = $region53
  $region52: #{double_conv_pallas.1} parent=0 // pred_region
    _
  $region53: #{double_conv_pallas.1} parent=0 // pred_fallthru
    _

</llo_original>
